<compile_context>
chip_gen: v7x
topology: tpu7x:2x2x1
jax: 0.10.0
libtpu: 0.0.40
codegen_flags: <defaults>
</compile_context>

<pallas_src>
import functools

import jax
import jax.numpy as jnp
from jax import lax
from jax.experimental import pallas as pl
from jax.experimental.pallas import tpu as pltpu


def _round_up(x, m):
    return (x + m - 1) // m * m


def _sign(x):
    # torch.sign forward semantics of BinaryActivation: -1 / 0 / +1
    return jnp.where(x > 0, 1.0, jnp.where(x < 0, -1.0, 0.0)).astype(x.dtype)


# --------------------------------- Pallas kernel ------------------------------------
def _basic_block_kernel(x_ref, b11_ref, w3_ref, b12_ref, p1_ref, b13_ref,
                        b21_ref, wpw_ref, b22_ref, p2_ref, b23_ref,
                        out_ref, *, scale1, scale2):
    """One (batch image, H tile) per grid step.

    x_ref   : (1, H, W, Cp) f32   full input image (NHWC, channel-padded);
                                  block index only changes with the batch axis
    w3_ref  : (3, 3*Cp, Cp) bf16  3x3 weights: one (3*Cin, Cout) block per row
                                  tap (kh), alpha already folded in
    wpw_ref : (Cp, Cp)      bf16  1x1 weights (Cin, Cout), alpha folded in
    b*/p*   : (1, Cp)       f32   LearnableBias / PReLU params (beta folded
                                  into b11/b21 when beta > 0, otherwise
                                  scale1/scale2 carry the multiplier)
    out_ref : (1, th, W, Cp) f32  output row band for this grid step
    """
    _, H, W, Cp = x_ref.shape
    th = out_ref.shape[1]
    thw = th * W
    bf16 = jnp.bfloat16
    f32 = jnp.float32

    t = pl.program_id(1)
    nt = pl.num_programs(1)
    row0 = pl.multiple_of(t * th, th)

    # ---- branch 1: move11 -> binary activation (cheap sign, bf16 direct) ----
    def binact1(v):
        if scale1 is not None:
            pre = v * scale1 + b11_ref[...]
        else:
            pre = v + b11_ref[...]
        return (pre > 0).astype(bf16) - (pre < 0).astype(bf16)

    xc = x_ref[0, pl.ds(row0, th)]                               # (th, W, Cp) f32
    a1c = binact1(xc)                                            # (th, W, Cp) bf16

    # 1-row halo above/below, clamped reads, masked to zero at image boundary.
    top = x_ref[0, pl.ds(jnp.maximum(row0 - 1, 0), 1)]           # (1, W, Cp)
    bot = x_ref[0, pl.ds(jnp.minimum(row0 + th, H - 1), 1)]      # (1, W, Cp)
    a1t = binact1(top) * (t > 0).astype(bf16)
    a1b = binact1(bot) * (t < nt - 1).astype(bf16)
    a1 = jnp.concatenate([a1t, a1c, a1b], axis=0)                # (th+2, W, Cp) bf16

    # Horizontal (W) taps fused into the lane dim, built entirely in bf16:
    #   xcat[r, w, kw*Cp + ci] = a1[r, w + kw - 1, ci], zero outside the image.
    zcol = jnp.zeros((th + 2, 1, Cp), bf16)
    west = jnp.concatenate([zcol, a1[:, :W - 1, :]], axis=1)
    east = jnp.concatenate([a1[:, 1:, :], zcol], axis=1)
    xcat = jnp.concatenate([west, a1, east], axis=2)             # (th+2, W, 3*Cp)
    xf = xcat.reshape((th + 2) * W, 3 * Cp)

    # 3x3 conv = three bf16 MXU matmuls with K = 3*Cp, f32 accumulation.
    # Vertical taps are row-offset slices of the shared window (no x_n/x_s copies).
    conv3 = jnp.dot(xf[W:W + thw], w3_ref[1], preferred_element_type=f32)            # kh=1
    conv3 = conv3 + jnp.dot(xf[:thw], w3_ref[0], preferred_element_type=f32)          # kh=0
    conv3 = conv3 + jnp.dot(xf[2 * W:2 * W + thw], w3_ref[2], preferred_element_type=f32)  # kh=2

    out1 = xc.reshape(thw, Cp) + conv3                           # residual (stride == 1)
    out1 = out1 + b12_ref[...]                                   # move12
    out1 = jnp.where(out1 >= 0, out1, p1_ref[...] * out1)        # prelu1
    out1 = out1 + b13_ref[...]                                   # move13

    # ---- branch 2: move21 -> binary activation -> 1x1 ScaledStd conv ----
    if scale2 is not None:
        pre2 = out1 * scale2 + b21_ref[...]
    else:
        pre2 = out1 + b21_ref[...]
    a2 = (pre2 > 0).astype(bf16) - (pre2 < 0).astype(bf16)       # (thw, Cp) bf16
    conv1 = jnp.dot(a2, wpw_ref[...], preferred_element_type=f32)

    out2 = conv1 + out1                                          # residual
    out2 = out2 + b22_ref[...]                                   # move22
    out2 = jnp.where(out2 >= 0, out2, p2_ref[...] * out2)        # prelu2
    out2 = out2 + b23_ref[...]                                   # move23

    out_ref[...] = out2.reshape(1, th, W, Cp).astype(out_ref.dtype)


# --------------------------------- glue (plain JAX) ----------------------------------
def scaled_std_weight(w, gain, gamma=1.0, eps=1e-6):
    """ScaledStdConv2d weight standardization (timm semantics: /sqrt(var+eps)).

    w: (Cout, Cin, kh, kw) OIHW, gain: (Cout, 1, 1, 1)
    """
    fan_in = w.shape[1] * w.shape[2] * w.shape[3]
    scale = gamma * fan_in ** -0.5
    mean = jnp.mean(w, axis=(1, 2, 3), keepdims=True)
    var = jnp.var(w, axis=(1, 2, 3), keepdims=True)
    return gain * scale * (w - mean) * lax.rsqrt(var + eps)


def effective_weights(params, alpha):
    """Standardized conv weights with alpha folded in, rounded to bf16 (the
    MXU operand precision used by the kernel). Returned in OIHW, bf16."""
    w3 = (scaled_std_weight(params["w3"], params["g3"]) * alpha).astype(jnp.bfloat16)
    wpw = (scaled_std_weight(params["wpw"], params["gpw"]) * alpha).astype(jnp.bfloat16)
    return w3, wpw


def _vmem_limit_bytes():
    cap = 64 * 1024 * 1024
    try:
        info = pltpu.get_tpu_info()
        cap = int(getattr(info, "vmem_capacity_bytes", cap) or cap)
    except Exception:
        pass
    return min(int(cap * 0.85), 110 * 1024 * 1024)


def _choose_tile_h(H, W, Cp, vmem_limit):
    """Largest divisor of H (preferring multiples of 8) whose per-tile
    intermediates fit the VMEM budget left after fixed blocks."""
    fixed = 2 * H * W * Cp * 4 + (3 * 3 * Cp * Cp + Cp * Cp) * 2 + (1 << 20)
    budget = max(vmem_limit - fixed, 1 << 20)

    def cost(th):
        im2col = (th + 2) * W * 3 * Cp * 2          # xcat bf16
        win = 3 * (th + 2) * W * Cp * 2             # a1 / west / east bf16
        f32tmp = 6 * th * W * Cp * 4                # conv / out1 / out2 / pre f32
        outbuf = 2 * th * W * Cp * 4                # double-buffered out block
        return im2col + win + f32tmp + outbuf

    divisors = [d for d in range(H, 0, -1) if H % d == 0]
    for prefer_aligned in (True, False):
        for th in divisors:
            if prefer_aligned and th % 8 != 0:
                continue
            if cost(th) <= budget:
                return th
    return 1


def basic_block_forward(x_nchw, params, *, alpha, beta1, beta2,
                        inplanes, planes, stride=1, tile_h=None):
    if not (stride == 1 and inplanes == planes):
        # TODO(synk): stride-2 / channel-doubling downsample branch (AvgPool2d
        # of x_in, binary_pw_down1/2 + channel concat) is not implemented.
        raise NotImplementedError("only stride=1, inplanes==planes is implemented")

    N, C, H, W = x_nchw.shape
    Cp = _round_up(C, 128)          # lane-dense channel padding (small-C layers)
    pad_c = Cp - C

    vmem_limit = _vmem_limit_bytes()
    if tile_h is None:
        tile_h = _choose_tile_h(H, W, Cp, vmem_limit)
    assert H % tile_h == 0, "tile_h must divide H"
    HT = H // tile_h

    x = jnp.transpose(x_nchw, (0, 2, 3, 1)).astype(jnp.float32)     # NCHW -> NHWC
    if pad_c:
        x = jnp.pad(x, ((0, 0), (0, 0), (0, 0), (0, pad_c)))

    # weight prep: standardization + alpha fold + bf16 + channel padding + layout
    w3_bf, wpw_bf = effective_weights(params, alpha)                # OIHW bf16
    if pad_c:
        w3_bf = jnp.pad(w3_bf, ((0, pad_c), (0, pad_c), (0, 0), (0, 0)))
        wpw_bf = jnp.pad(wpw_bf, ((0, pad_c), (0, pad_c), (0, 0), (0, 0)))
    # (kh, kw*Cin + ci, Cout) blocks for the row-tap-fused matmuls
    w3_taps = jnp.transpose(w3_bf, (2, 3, 1, 0)).reshape(3, 3 * Cp, Cp)
    wpw_t = jnp.transpose(wpw_bf[:, :, 0, 0], (1, 0))               # (Cin, Cout)

    def cvec(v):
        v = jnp.asarray(v, jnp.float32).reshape(1, C)
        return jnp.pad(v, ((0, 0), (0, pad_c))) if pad_c else v

    # fold beta into the sign bias when legal: sign(b*x + c) == sign(x + c/b) for b > 0
    if beta1 > 0:
        b11, scale1 = cvec(params["b11"] / beta1), None
    else:
        b11, scale1 = cvec(params["b11"]), float(beta1)
    if beta2 > 0:
        b21, scale2 = cvec(params["b21"] / beta2), None
    else:
        b21, scale2 = cvec(params["b21"]), float(beta2)

    kernel = functools.partial(_basic_block_kernel, scale1=scale1, scale2=scale2)

    args = (x, b11, w3_taps, cvec(params["b12"]), cvec(params["p1"]),
            cvec(params["b13"]), b21, wpw_t, cvec(params["b22"]),
            cvec(params["p2"]), cvec(params["b23"]))

    def build(single_buffer_params):
        # grid-invariant operands: single-buffer to save VMEM (no re-DMA anyway)
        pm = {"pipeline_mode": pl.Buffered(1)} if single_buffer_params else {}
        vec_spec = pl.BlockSpec((1, Cp), lambda n, t: (0, 0), **pm)
        w3_spec = pl.BlockSpec((3, 3 * Cp, Cp), lambda n, t: (0, 0, 0), **pm)
        wpw_spec = pl.BlockSpec((Cp, Cp), lambda n, t: (0, 0), **pm)
        # full image per batch element (block index constant across the H-tile axis)
        x_spec = pl.BlockSpec((1, H, W, Cp), lambda n, t: (n, 0, 0, 0))
        out_spec = pl.BlockSpec((1, tile_h, W, Cp), lambda n, t: (n, t, 0, 0))
        return pl.pallas_call(
            kernel,
            out_shape=jax.ShapeDtypeStruct((N, H, W, Cp), jnp.float32),
            grid=(N, HT),
            in_specs=[x_spec, vec_spec, w3_spec, vec_spec, vec_spec, vec_spec,
                      vec_spec, wpw_spec, vec_spec, vec_spec, vec_spec],
            out_specs=out_spec,
            compiler_params=pltpu.CompilerParams(
                dimension_semantics=("parallel", "parallel"),
                vmem_limit_bytes=vmem_limit),
        )

    try:
        out = build(True)(*args)
    except Exception:
        # fallback if this JAX build rejects pl.Buffered(1) on grid-invariant specs
        out = build(False)(*args)

    # TODO(synk): keep consecutive BasicBlocks in padded NHWC and skip this
    #             second full pass (slice + transpose) over the output.
    out = out[..., :C]                                              # drop channel pad
    return jnp.transpose(out, (0, 3, 1, 2))                         # NHWC -> NCHW


# --------------------------- pure-JAX reference (NCHW) -------------------------------
def basic_block_reference(x, params, *, alpha, beta1, beta2):
    """Follows the PyTorch forward literally, but uses the same bf16-rounded,
    alpha-folded standardized weights as the kernel (fair same-math check)."""
    C = x.shape[1]
    badd = lambda t, b: t + b.reshape(1, C, 1, 1)
    prelu = lambda t, a: jnp.where(t >= 0, t, a.reshape(1, C, 1, 1) * t)
    w3_bf, wpw_bf = effective_weights(params, alpha)
    w3 = w3_bf.astype(jnp.float32)
    wpw = wpw_bf.astype(jnp.float32)
    dn = ("NCHW", "OIHW", "NCHW")

    x_in = x * beta1
    out1 = _sign(badd(x_in, params["b11"]))
    out1 = lax.conv_general_dilated(out1, w3, (1, 1), ((1, 1), (1, 1)),
                                    dimension_numbers=dn)
    out1 = x + out1                       # alpha already folded into w3
    out1 = badd(out1, params["b12"])
    out1 = prelu(out1, params["p1"])
    out1 = badd(out1, params["b13"])

    out2 = _sign(badd(out1 * beta2, params["b21"]))
    out2 = lax.conv_general_dilated(out2, wpw, (1, 1), ((0, 0), (0, 0)),
                                    dimension_numbers=dn)
    out2 = out2 + out1                    # alpha already folded into wpw
    out2 = badd(out2, params["b22"])
    out2 = prelu(out2, params["p2"])
    out2 = badd(out2, params["b23"])
    return out2


# ------------------------------------- main ------------------------------------------
if __name__ == "__main__":
    N, C, H, W = 2, 8, 16, 16
    inplanes = planes = C
    alpha, beta1, beta2 = 0.2, 1.0, 0.8

    key = jax.random.PRNGKey(0)
    ks = jax.random.split(key, 13)
    params = {
        "w3":  0.1 * jax.random.normal(ks[0], (C, C, 3, 3), jnp.float32),
        "g3":  1.0 + 0.1 * jax.random.normal(ks[1], (C, 1, 1, 1), jnp.float32),
        "wpw": 0.1 * jax.random.normal(ks[2], (C, C, 1, 1), jnp.float32),
        "gpw": 1.0 + 0.1 * jax.random.normal(ks[3], (C, 1, 1, 1), jnp.float32),
        "b11": 0.1 * jax.random.normal(ks[4], (C,), jnp.float32),
        "b12": 0.1 * jax.random.normal(ks[5], (C,), jnp.float32),
        "b13": 0.1 * jax.random.normal(ks[6], (C,), jnp.float32),
        "b21": 0.1 * jax.random.normal(ks[7], (C,), jnp.float32),
        "b22": 0.1 * jax.random.normal(ks[8], (C,), jnp.float32),
        "b23": 0.1 * jax.random.normal(ks[9], (C,), jnp.float32),
        "p1":  0.25 + 0.05 * jax.random.normal(ks[10], (C,), jnp.float32),
        "p2":  0.25 + 0.05 * jax.random.normal(ks[11], (C,), jnp.float32),
    }
    x = jax.random.normal(ks[12], (N, C, H, W), jnp.float32)

    # tile_h=8 -> 2 H tiles per image: exercises the halo / boundary-mask path.
    out = basic_block_forward(x, params, alpha=alpha, beta1=beta1, beta2=beta2,
                              inplanes=inplanes, planes=planes, stride=1, tile_h=8)
    out = jax.block_until_ready(out)

    ref = basic_block_reference(x, params, alpha=alpha, beta1=beta1, beta2=beta2)
    diff = jnp.abs(out - ref)
    assert out.shape == (N, C, H, W)
    # lenient check: tolerate rare sign flips exactly at binarization boundaries
    assert float(jnp.mean(diff > 1e-2)) < 0.01 and float(jnp.mean(diff)) < 1e-2

    print("KERNEL_OK")
</pallas_src>

<mosaic_0001>
module attributes {stable_mosaic.version = 11 : i64} {
  func.func @_basic_block_kernel(%arg0: i32, %arg1: i32, %arg2: memref<1x16x16x128xf32, #tpu.memory_space<vmem>>, %arg3: memref<1x128xf32, #tpu.memory_space<vmem>>, %arg4: memref<3x384x128xbf16, #tpu.memory_space<vmem>>, %arg5: memref<1x128xf32, #tpu.memory_space<vmem>>, %arg6: memref<1x128xf32, #tpu.memory_space<vmem>>, %arg7: memref<1x128xf32, #tpu.memory_space<vmem>>, %arg8: memref<1x128xf32, #tpu.memory_space<vmem>>, %arg9: memref<128x128xbf16, #tpu.memory_space<vmem>>, %arg10: memref<1x128xf32, #tpu.memory_space<vmem>>, %arg11: memref<1x128xf32, #tpu.memory_space<vmem>>, %arg12: memref<1x128xf32, #tpu.memory_space<vmem>>, %arg13: memref<1x8x16x128xf32, #tpu.memory_space<vmem>>) attributes {dimension_semantics = [#tpu.dimension_semantics<parallel>, #tpu.dimension_semantics<parallel>], iteration_bounds = array<i64: 2, 2>, scalar_prefetch = 0 : i64, scratch_operands = 0 : i64, tpu.core_type = #tpu.core_type<tc>, window_params = [{transform_indices = @transform_0, window_bounds = array<i64: 1, 16, 16, 128>}, {pipeline_mode = #tpu.pipeline_mode<synchronous>, transform_indices = @transform_1, window_bounds = array<i64: 1, 128>}, {pipeline_mode = #tpu.pipeline_mode<synchronous>, transform_indices = @transform_2, window_bounds = array<i64: 3, 384, 128>}, {pipeline_mode = #tpu.pipeline_mode<synchronous>, transform_indices = @transform_3, window_bounds = array<i64: 1, 128>}, {pipeline_mode = #tpu.pipeline_mode<synchronous>, transform_indices = @transform_4, window_bounds = array<i64: 1, 128>}, {pipeline_mode = #tpu.pipeline_mode<synchronous>, transform_indices = @transform_5, window_bounds = array<i64: 1, 128>}, {pipeline_mode = #tpu.pipeline_mode<synchronous>, transform_indices = @transform_6, window_bounds = array<i64: 1, 128>}, {pipeline_mode = #tpu.pipeline_mode<synchronous>, transform_indices = @transform_7, window_bounds = array<i64: 128, 128>}, {pipeline_mode = #tpu.pipeline_mode<synchronous>, transform_indices = @transform_8, window_bounds = array<i64: 1, 128>}, {pipeline_mode = #tpu.pipeline_mode<synchronous>, transform_indices = @transform_9, window_bounds = array<i64: 1, 128>}, {pipeline_mode = #tpu.pipeline_mode<synchronous>, transform_indices = @transform_10, window_bounds = array<i64: 1, 128>}, {transform_indices = @transform_11, window_bounds = array<i64: 1, 8, 16, 128>}]} {
    %c8_i32 = arith.constant 8 : i32
    %0 = arith.muli %arg1, %c8_i32 : i32
    %1 = tpu.assume_multiple %0, 8 : i32
    %c0 = arith.constant 0 : index
    %2 = arith.index_cast %1 : i32 to index
    %c0_0 = arith.constant 0 : index
    %c0_1 = arith.constant 0 : index
    %3 = vector.load %arg2[%c0, %2, %c0_0, %c0_1] : memref<1x16x16x128xf32, #tpu.memory_space<vmem>>, vector<1x8x16x128xf32>
    %4 = vector.shape_cast %3 : vector<1x8x16x128xf32> to vector<8x16x128xf32>
    %c0_2 = arith.constant 0 : index
    %c0_3 = arith.constant 0 : index
    %5 = vector.load %arg3[%c0_2, %c0_3] : memref<1x128xf32, #tpu.memory_space<vmem>>, vector<1x128xf32>
    %6 = vector.shape_cast %5 : vector<1x128xf32> to vector<1x1x128xf32>
    %7 = vector.broadcast %6 : vector<1x1x128xf32> to vector<8x16x128xf32>
    %8 = arith.addf %4, %7 : vector<8x16x128xf32>
    %cst = arith.constant 0.000000e+00 : f32
    %9 = vector.broadcast %cst : f32 to vector<8x16x128xf32>
    %10 = arith.cmpf ogt, %8, %9 : vector<8x16x128xf32>
    %11 = arith.extui %10 : vector<8x16x128xi1> to vector<8x16x128xi32>
    %12 = arith.sitofp %11 : vector<8x16x128xi32> to vector<8x16x128xf32>
    %13 = arith.truncf %12 : vector<8x16x128xf32> to vector<8x16x128xbf16>
    %cst_4 = arith.constant 0.000000e+00 : f32
    %14 = vector.broadcast %cst_4 : f32 to vector<8x16x128xf32>
    %15 = arith.cmpf olt, %8, %14 : vector<8x16x128xf32>
    %16 = arith.extui %15 : vector<8x16x128xi1> to vector<8x16x128xi32>
    %17 = arith.sitofp %16 : vector<8x16x128xi32> to vector<8x16x128xf32>
    %18 = arith.truncf %17 : vector<8x16x128xf32> to vector<8x16x128xbf16>
    %19 = arith.subf %13, %18 : vector<8x16x128xbf16>
    %c1_i32 = arith.constant 1 : i32
    %20 = arith.subi %1, %c1_i32 : i32
    %c0_i32 = arith.constant 0 : i32
    %21 = arith.maxsi %20, %c0_i32 : i32
    %c0_5 = arith.constant 0 : index
    %22 = arith.index_cast %21 : i32 to index
    %c0_6 = arith.constant 0 : index
    %c0_7 = arith.constant 0 : index
    %23 = vector.load %arg2[%c0_5, %22, %c0_6, %c0_7] : memref<1x16x16x128xf32, #tpu.memory_space<vmem>>, vector<1x1x16x128xf32>
    %24 = vector.shape_cast %23 : vector<1x1x16x128xf32> to vector<1x16x128xf32>
    %c8_i32_8 = arith.constant 8 : i32
    %25 = arith.addi %1, %c8_i32_8 : i32
    %c15_i32 = arith.constant 15 : i32
    %26 = arith.minsi %25, %c15_i32 : i32
    %c0_9 = arith.constant 0 : index
    %27 = arith.index_cast %26 : i32 to index
    %c0_10 = arith.constant 0 : index
    %c0_11 = arith.constant 0 : index
    %28 = vector.load %arg2[%c0_9, %27, %c0_10, %c0_11] : memref<1x16x16x128xf32, #tpu.memory_space<vmem>>, vector<1x1x16x128xf32>
    %29 = vector.shape_cast %28 : vector<1x1x16x128xf32> to vector<1x16x128xf32>
    %c0_12 = arith.constant 0 : index
    %c0_13 = arith.constant 0 : index
    %30 = vector.load %arg3[%c0_12, %c0_13] : memref<1x128xf32, #tpu.memory_space<vmem>>, vector<1x128xf32>
    %31 = vector.shape_cast %30 : vector<1x128xf32> to vector<1x1x128xf32>
    %32 = vector.broadcast %31 : vector<1x1x128xf32> to vector<1x16x128xf32>
    %33 = arith.addf %24, %32 : vector<1x16x128xf32>
    %cst_14 = arith.constant 0.000000e+00 : f32
    %34 = vector.broadcast %cst_14 : f32 to vector<1x16x128xf32>
    %35 = arith.cmpf ogt, %33, %34 : vector<1x16x128xf32>
    %36 = arith.extui %35 : vector<1x16x128xi1> to vector<1x16x128xi32>
    %37 = arith.sitofp %36 : vector<1x16x128xi32> to vector<1x16x128xf32>
    %38 = arith.truncf %37 : vector<1x16x128xf32> to vector<1x16x128xbf16>
    %cst_15 = arith.constant 0.000000e+00 : f32
    %39 = vector.broadcast %cst_15 : f32 to vector<1x16x128xf32>
    %40 = arith.cmpf olt, %33, %39 : vector<1x16x128xf32>
    %41 = arith.extui %40 : vector<1x16x128xi1> to vector<1x16x128xi32>
    %42 = arith.sitofp %41 : vector<1x16x128xi32> to vector<1x16x128xf32>
    %43 = arith.truncf %42 : vector<1x16x128xf32> to vector<1x16x128xbf16>
    %44 = arith.subf %38, %43 : vector<1x16x128xbf16>
    %c0_i32_16 = arith.constant 0 : i32
    %45 = arith.cmpi sgt, %arg1, %c0_i32_16 : i32
    %46 = arith.extui %45 : i1 to i32
    %47 = arith.sitofp %46 : i32 to f32
    %48 = arith.truncf %47 : f32 to bf16
    %49 = vector.broadcast %48 : bf16 to vector<1x16x128xbf16>
    %50 = arith.mulf %44, %49 : vector<1x16x128xbf16>
    %c0_17 = arith.constant 0 : index
    %c0_18 = arith.constant 0 : index
    %51 = vector.load %arg3[%c0_17, %c0_18] : memref<1x128xf32, #tpu.memory_space<vmem>>, vector<1x128xf32>
    %52 = vector.shape_cast %51 : vector<1x128xf32> to vector<1x1x128xf32>
    %53 = vector.broadcast %52 : vector<1x1x128xf32> to vector<1x16x128xf32>
    %54 = arith.addf %29, %53 : vector<1x16x128xf32>
    %cst_19 = arith.constant 0.000000e+00 : f32
    %55 = vector.broadcast %cst_19 : f32 to vector<1x16x128xf32>
    %56 = arith.cmpf ogt, %54, %55 : vector<1x16x128xf32>
    %57 = arith.extui %56 : vector<1x16x128xi1> to vector<1x16x128xi32>
    %58 = arith.sitofp %57 : vector<1x16x128xi32> to vector<1x16x128xf32>
    %59 = arith.truncf %58 : vector<1x16x128xf32> to vector<1x16x128xbf16>
    %cst_20 = arith.constant 0.000000e+00 : f32
    %60 = vector.broadcast %cst_20 : f32 to vector<1x16x128xf32>
    %61 = arith.cmpf olt, %54, %60 : vector<1x16x128xf32>
    %62 = arith.extui %61 : vector<1x16x128xi1> to vector<1x16x128xi32>
    %63 = arith.sitofp %62 : vector<1x16x128xi32> to vector<1x16x128xf32>
    %64 = arith.truncf %63 : vector<1x16x128xf32> to vector<1x16x128xbf16>
    %65 = arith.subf %59, %64 : vector<1x16x128xbf16>
    %c1_i32_21 = arith.constant 1 : i32
    %66 = arith.cmpi slt, %arg1, %c1_i32_21 : i32
    %67 = arith.extui %66 : i1 to i32
    %68 = arith.sitofp %67 : i32 to f32
    %69 = arith.truncf %68 : f32 to bf16
    %70 = vector.broadcast %69 : bf16 to vector<1x16x128xbf16>
    %71 = arith.mulf %65, %70 : vector<1x16x128xbf16>
    %72 = tpu.concatenate %50, %19, %71 in 0 : vector<1x16x128xbf16>, vector<8x16x128xbf16>, vector<1x16x128xbf16> -> vector<10x16x128xbf16>
    %cst_22 = arith.constant 0.000000e+00 : bf16
    %73 = vector.broadcast %cst_22 : bf16 to vector<10x1x128xbf16>
    %74 = vector.extract_strided_slice %72 {offsets = [0, 0, 0], sizes = [10, 15, 128], strides = [1, 1, 1]} : vector<10x16x128xbf16> to vector<10x15x128xbf16>
    %75 = tpu.concatenate %73, %74 in 1 : vector<10x1x128xbf16>, vector<10x15x128xbf16> -> vector<10x16x128xbf16>
    %76 = vector.extract_strided_slice %72 {offsets = [0, 1, 0], sizes = [10, 15, 128], strides = [1, 1, 1]} : vector<10x16x128xbf16> to vector<10x15x128xbf16>
    %77 = tpu.concatenate %76, %73 in 1 : vector<10x15x128xbf16>, vector<10x1x128xbf16> -> vector<10x16x128xbf16>
    %78 = tpu.concatenate %75, %72, %77 in 2 : vector<10x16x128xbf16>, vector<10x16x128xbf16>, vector<10x16x128xbf16> -> vector<10x16x384xbf16>
    %79 = vector.shape_cast %78 : vector<10x16x384xbf16> to vector<160x384xbf16>
    %80 = vector.extract_strided_slice %79 {offsets = [16, 0], sizes = [128, 384], strides = [1, 1]} : vector<160x384xbf16> to vector<128x384xbf16>
    %c1 = arith.constant 1 : index
    %c0_23 = arith.constant 0 : index
    %c0_24 = arith.constant 0 : index
    %81 = vector.load %arg4[%c1, %c0_23, %c0_24] : memref<3x384x128xbf16, #tpu.memory_space<vmem>>, vector<1x384x128xbf16>
    %82 = vector.shape_cast %81 : vector<1x384x128xbf16> to vector<384x128xbf16>
    %cst_25 = arith.constant dense<0.000000e+00> : vector<128x128xf32>
    %83 = tpu.matmul %80, %82, %cst_25 {dimension_numbers = #tpu.dot_dimension_numbers<[1], [0], [0], [1], [0, 0, 1, 1], [], []>} : vector<128x384xbf16>, vector<384x128xbf16>, vector<128x128xf32> -> vector<128x128xf32>
    %84 = vector.extract_strided_slice %79 {offsets = [0, 0], sizes = [128, 384], strides = [1, 1]} : vector<160x384xbf16> to vector<128x384xbf16>
    %c0_26 = arith.constant 0 : index
    %c0_27 = arith.constant 0 : index
    %c0_28 = arith.constant 0 : index
    %85 = vector.load %arg4[%c0_26, %c0_27, %c0_28] : memref<3x384x128xbf16, #tpu.memory_space<vmem>>, vector<1x384x128xbf16>
    %86 = vector.shape_cast %85 : vector<1x384x128xbf16> to vector<384x128xbf16>
    %cst_29 = arith.constant dense<0.000000e+00> : vector<128x128xf32>
    %87 = tpu.matmul %84, %86, %cst_29 {dimension_numbers = #tpu.dot_dimension_numbers<[1], [0], [0], [1], [0, 0, 1, 1], [], []>} : vector<128x384xbf16>, vector<384x128xbf16>, vector<128x128xf32> -> vector<128x128xf32>
    %88 = arith.addf %83, %87 : vector<128x128xf32>
    %89 = vector.extract_strided_slice %79 {offsets = [32, 0], sizes = [128, 384], strides = [1, 1]} : vector<160x384xbf16> to vector<128x384xbf16>
    %c2 = arith.constant 2 : index
    %c0_30 = arith.constant 0 : index
    %c0_31 = arith.constant 0 : index
    %90 = vector.load %arg4[%c2, %c0_30, %c0_31] : memref<3x384x128xbf16, #tpu.memory_space<vmem>>, vector<1x384x128xbf16>
    %91 = vector.shape_cast %90 : vector<1x384x128xbf16> to vector<384x128xbf16>
    %cst_32 = arith.constant dense<0.000000e+00> : vector<128x128xf32>
    %92 = tpu.matmul %89, %91, %cst_32 {dimension_numbers = #tpu.dot_dimension_numbers<[1], [0], [0], [1], [0, 0, 1, 1], [], []>} : vector<128x384xbf16>, vector<384x128xbf16>, vector<128x128xf32> -> vector<128x128xf32>
    %93 = arith.addf %88, %92 : vector<128x128xf32>
    %94 = vector.shape_cast %4 : vector<8x16x128xf32> to vector<128x128xf32>
    %95 = arith.addf %94, %93 : vector<128x128xf32>
    %c0_33 = arith.constant 0 : index
    %c0_34 = arith.constant 0 : index
    %96 = vector.load %arg5[%c0_33, %c0_34] : memref<1x128xf32, #tpu.memory_space<vmem>>, vector<1x128xf32>
    %97 = vector.broadcast %96 : vector<1x128xf32> to vector<128x128xf32>
    %98 = arith.addf %95, %97 : vector<128x128xf32>
    %cst_35 = arith.constant 0.000000e+00 : f32
    %99 = vector.broadcast %cst_35 : f32 to vector<128x128xf32>
    %100 = arith.cmpf oge, %98, %99 : vector<128x128xf32>
    %c0_36 = arith.constant 0 : index
    %c0_37 = arith.constant 0 : index
    %101 = vector.load %arg6[%c0_36, %c0_37] : memref<1x128xf32, #tpu.memory_space<vmem>>, vector<1x128xf32>
    %102 = vector.broadcast %101 : vector<1x128xf32> to vector<128x128xf32>
    %103 = arith.mulf %102, %98 : vector<128x128xf32>
    %104 = arith.select %100, %98, %103 : vector<128x128xi1>, vector<128x128xf32>
    %c0_38 = arith.constant 0 : index
    %c0_39 = arith.constant 0 : index
    %105 = vector.load %arg7[%c0_38, %c0_39] : memref<1x128xf32, #tpu.memory_space<vmem>>, vector<1x128xf32>
    %106 = vector.broadcast %105 : vector<1x128xf32> to vector<128x128xf32>
    %107 = arith.addf %104, %106 : vector<128x128xf32>
    %c0_40 = arith.constant 0 : index
    %c0_41 = arith.constant 0 : index
    %108 = vector.load %arg8[%c0_40, %c0_41] : memref<1x128xf32, #tpu.memory_space<vmem>>, vector<1x128xf32>
    %109 = vector.broadcast %108 : vector<1x128xf32> to vector<128x128xf32>
    %110 = arith.addf %107, %109 : vector<128x128xf32>
    %cst_42 = arith.constant 0.000000e+00 : f32
    %111 = vector.broadcast %cst_42 : f32 to vector<128x128xf32>
    %112 = arith.cmpf ogt, %110, %111 : vector<128x128xf32>
    %113 = arith.extui %112 : vector<128x128xi1> to vector<128x128xi32>
    %114 = arith.sitofp %113 : vector<128x128xi32> to vector<128x128xf32>
    %115 = arith.truncf %114 : vector<128x128xf32> to vector<128x128xbf16>
    %cst_43 = arith.constant 0.000000e+00 : f32
    %116 = vector.broadcast %cst_43 : f32 to vector<128x128xf32>
    %117 = arith.cmpf olt, %110, %116 : vector<128x128xf32>
    %118 = arith.extui %117 : vector<128x128xi1> to vector<128x128xi32>
    %119 = arith.sitofp %118 : vector<128x128xi32> to vector<128x128xf32>
    %120 = arith.truncf %119 : vector<128x128xf32> to vector<128x128xbf16>
    %121 = arith.subf %115, %120 : vector<128x128xbf16>
    %c0_44 = arith.constant 0 : index
    %c0_45 = arith.constant 0 : index
    %122 = vector.load %arg9[%c0_44, %c0_45] : memref<128x128xbf16, #tpu.memory_space<vmem>>, vector<128x128xbf16>
    %cst_46 = arith.constant dense<0.000000e+00> : vector<128x128xf32>
    %123 = tpu.matmul %121, %122, %cst_46 {dimension_numbers = #tpu.dot_dimension_numbers<[1], [0], [0], [1], [0, 0, 1, 1], [], []>} : vector<128x128xbf16>, vector<128x128xbf16>, vector<128x128xf32> -> vector<128x128xf32>
    %124 = arith.addf %123, %107 : vector<128x128xf32>
    %c0_47 = arith.constant 0 : index
    %c0_48 = arith.constant 0 : index
    %125 = vector.load %arg10[%c0_47, %c0_48] : memref<1x128xf32, #tpu.memory_space<vmem>>, vector<1x128xf32>
    %126 = vector.broadcast %125 : vector<1x128xf32> to vector<128x128xf32>
    %127 = arith.addf %124, %126 : vector<128x128xf32>
    %cst_49 = arith.constant 0.000000e+00 : f32
    %128 = vector.broadcast %cst_49 : f32 to vector<128x128xf32>
    %129 = arith.cmpf oge, %127, %128 : vector<128x128xf32>
    %c0_50 = arith.constant 0 : index
    %c0_51 = arith.constant 0 : index
    %130 = vector.load %arg11[%c0_50, %c0_51] : memref<1x128xf32, #tpu.memory_space<vmem>>, vector<1x128xf32>
    %131 = vector.broadcast %130 : vector<1x128xf32> to vector<128x128xf32>
    %132 = arith.mulf %131, %127 : vector<128x128xf32>
    %133 = arith.select %129, %127, %132 : vector<128x128xi1>, vector<128x128xf32>
    %c0_52 = arith.constant 0 : index
    %c0_53 = arith.constant 0 : index
    %134 = vector.load %arg12[%c0_52, %c0_53] : memref<1x128xf32, #tpu.memory_space<vmem>>, vector<1x128xf32>
    %135 = vector.broadcast %134 : vector<1x128xf32> to vector<128x128xf32>
    %136 = arith.addf %133, %135 : vector<128x128xf32>
    %137 = vector.shape_cast %136 : vector<128x128xf32> to vector<1x8x16x128xf32>
    %c0_54 = arith.constant 0 : index
    %c0_55 = arith.constant 0 : index
    %c0_56 = arith.constant 0 : index
    %c0_57 = arith.constant 0 : index
    %138 = vector.load %arg13[%c0_54, %c0_55, %c0_56, %c0_57] : memref<1x8x16x128xf32, #tpu.memory_space<vmem>>, vector<1x8x16x128xf32>
    tpu.vector_store %arg13[%c0_54, %c0_55, %c0_56, %c0_57], %137 {strides = array<i32>} : memref<1x8x16x128xf32, #tpu.memory_space<vmem>>, vector<1x8x16x128xf32>,
    return
  }
  func.func @transform_0(%arg0: i32, %arg1: i32) -> (i32, i32, i32, i32) {
    %c0_i32 = arith.constant 0 : i32
    %c0_i32_0 = arith.constant 0 : i32
    %c0_i32_1 = arith.constant 0 : i32
    %c0_i32_2 = arith.constant 0 : i32
    return %arg0, %c0_i32, %c0_i32_0, %c0_i32_1 : i32, i32, i32, i32
  }
  func.func @transform_1(%arg0: i32, %arg1: i32) -> (i32, i32) {
    %c0_i32 = arith.constant 0 : i32
    %c0_i32_0 = arith.constant 0 : i32
    %c0_i32_1 = arith.constant 0 : i32
    return %c0_i32, %c0_i32_0 : i32, i32
  }
  func.func @transform_2(%arg0: i32, %arg1: i32) -> (i32, i32, i32) {
    %c0_i32 = arith.constant 0 : i32
    %c0_i32_0 = arith.constant 0 : i32
    %c0_i32_1 = arith.constant 0 : i32
    %c0_i32_2 = arith.constant 0 : i32
    return %c0_i32, %c0_i32_0, %c0_i32_1 : i32, i32, i32
  }
  func.func @transform_3(%arg0: i32, %arg1: i32) -> (i32, i32) {
    %c0_i32 = arith.constant 0 : i32
    %c0_i32_0 = arith.constant 0 : i32
    %c0_i32_1 = arith.constant 0 : i32
    return %c0_i32, %c0_i32_0 : i32, i32
  }
  func.func @transform_4(%arg0: i32, %arg1: i32) -> (i32, i32) {
    %c0_i32 = arith.constant 0 : i32
    %c0_i32_0 = arith.constant 0 : i32
    %c0_i32_1 = arith.constant 0 : i32
    return %c0_i32, %c0_i32_0 : i32, i32
  }
  func.func @transform_5(%arg0: i32, %arg1: i32) -> (i32, i32) {
    %c0_i32 = arith.constant 0 : i32
    %c0_i32_0 = arith.constant 0 : i32
    %c0_i32_1 = arith.constant 0 : i32
    return %c0_i32, %c0_i32_0 : i32, i32
  }
  func.func @transform_6(%arg0: i32, %arg1: i32) -> (i32, i32) {
    %c0_i32 = arith.constant 0 : i32
    %c0_i32_0 = arith.constant 0 : i32
    %c0_i32_1 = arith.constant 0 : i32
    return %c0_i32, %c0_i32_0 : i32, i32
  }
  func.func @transform_7(%arg0: i32, %arg1: i32) -> (i32, i32) {
    %c0_i32 = arith.constant 0 : i32
    %c0_i32_0 = arith.constant 0 : i32
    %c0_i32_1 = arith.constant 0 : i32
    return %c0_i32, %c0_i32_0 : i32, i32
  }
  func.func @transform_8(%arg0: i32, %arg1: i32) -> (i32, i32) {
    %c0_i32 = arith.constant 0 : i32
    %c0_i32_0 = arith.constant 0 : i32
    %c0_i32_1 = arith.constant 0 : i32
    return %c0_i32, %c0_i32_0 : i32, i32
  }
  func.func @transform_9(%arg0: i32, %arg1: i32) -> (i32, i32) {
    %c0_i32 = arith.constant 0 : i32
    %c0_i32_0 = arith.constant 0 : i32
    %c0_i32_1 = arith.constant 0 : i32
    return %c0_i32, %c0_i32_0 : i32, i32
  }
  func.func @transform_10(%arg0: i32, %arg1: i32) -> (i32, i32) {
    %c0_i32 = arith.constant 0 : i32
    %c0_i32_0 = arith.constant 0 : i32
    %c0_i32_1 = arith.constant 0 : i32
    return %c0_i32, %c0_i32_0 : i32, i32
  }
  func.func @transform_11(%arg0: i32, %arg1: i32) -> (i32, i32, i32, i32) {
    %c0_i32 = arith.constant 0 : i32
    %c0_i32_0 = arith.constant 0 : i32
    %c0_i32_1 = arith.constant 0 : i32
    return %arg0, %arg1, %c0_i32, %c0_i32_0 : i32, i32, i32, i32
  }
}

module attributes {stable_mosaic.version = 11 : i64} {
  func.func @_basic_block_kernel(%arg0: i32, %arg1: i32, %arg2: memref<1x16x16x128xf32, #tpu.memory_space<vmem>>, %arg3: memref<1x128xf32, #tpu.memory_space<vmem>>, %arg4: memref<3x384x128xbf16, #tpu.memory_space<vmem>>, %arg5: memref<1x128xf32, #tpu.memory_space<vmem>>, %arg6: memref<1x128xf32, #tpu.memory_space<vmem>>, %arg7: memref<1x128xf32, #tpu.memory_space<vmem>>, %arg8: memref<1x128xf32, #tpu.memory_space<vmem>>, %arg9: memref<128x128xbf16, #tpu.memory_space<vmem>>, %arg10: memref<1x128xf32, #tpu.memory_space<vmem>>, %arg11: memref<1x128xf32, #tpu.memory_space<vmem>>, %arg12: memref<1x128xf32, #tpu.memory_space<vmem>>, %arg13: memref<1x8x16x128xf32, #tpu.memory_space<vmem>>) attributes {dimension_semantics = [#tpu.dimension_semantics<parallel>, #tpu.dimension_semantics<parallel>], iteration_bounds = array<i64: 2, 2>, scalar_prefetch = 0 : i64, scratch_operands = 0 : i64, tpu.core_type = #tpu.core_type<tc>, window_params = [{transform_indices = @transform_0, window_bounds = array<i64: 1, 16, 16, 128>}, {pipeline_mode = #tpu.pipeline_mode<synchronous>, transform_indices = @transform_1, window_bounds = array<i64: 1, 128>}, {pipeline_mode = #tpu.pipeline_mode<synchronous>, transform_indices = @transform_2, window_bounds = array<i64: 3, 384, 128>}, {pipeline_mode = #tpu.pipeline_mode<synchronous>, transform_indices = @transform_3, window_bounds = array<i64: 1, 128>}, {pipeline_mode = #tpu.pipeline_mode<synchronous>, transform_indices = @transform_4, window_bounds = array<i64: 1, 128>}, {pipeline_mode = #tpu.pipeline_mode<synchronous>, transform_indices = @transform_5, window_bounds = array<i64: 1, 128>}, {pipeline_mode = #tpu.pipeline_mode<synchronous>, transform_indices = @transform_6, window_bounds = array<i64: 1, 128>}, {pipeline_mode = #tpu.pipeline_mode<synchronous>, transform_indices = @transform_7, window_bounds = array<i64: 128, 128>}, {pipeline_mode = #tpu.pipeline_mode<synchronous>, transform_indices = @transform_8, window_bounds = array<i64: 1, 128>}, {pipeline_mode = #tpu.pipeline_mode<synchronous>, transform_indices = @transform_9, window_bounds = array<i64: 1, 128>}, {pipeline_mode = #tpu.pipeline_mode<synchronous>, transform_indices = @transform_10, window_bounds = array<i64: 1, 128>}, {transform_indices = @transform_11, window_bounds = array<i64: 1, 8, 16, 128>}]} {
    %c8_i32 = arith.constant 8 : i32
    %0 = arith.muli %arg1, %c8_i32 : i32
    %1 = tpu.assume_multiple %0, 8 : i32
    %c0 = arith.constant 0 : index
    %2 = arith.index_cast %1 : i32 to index
    %c0_0 = arith.constant 0 : index
    %c0_1 = arith.constant 0 : index
    %3 = vector.load %arg2[%c0, %2, %c0_0, %c0_1] : memref<1x16x16x128xf32, #tpu.memory_space<vmem>>, vector<1x8x16x128xf32>
    %4 = vector.shape_cast %3 : vector<1x8x16x128xf32> to vector<8x16x128xf32>
    %c0_2 = arith.constant 0 : index
    %c0_3 = arith.constant 0 : index
    %5 = vector.load %arg3[%c0_2, %c0_3] : memref<1x128xf32, #tpu.memory_space<vmem>>, vector<1x128xf32>
    %6 = vector.shape_cast %5 : vector<1x128xf32> to vector<1x1x128xf32>
    %7 = vector.broadcast %6 : vector<1x1x128xf32> to vector<8x16x128xf32>
    %8 = arith.addf %4, %7 : vector<8x16x128xf32>
    %cst = arith.constant 0.000000e+00 : f32
    %9 = vector.broadcast %cst : f32 to vector<8x16x128xf32>
    %10 = arith.cmpf ogt, %8, %9 : vector<8x16x128xf32>
    %11 = arith.extui %10 : vector<8x16x128xi1> to vector<8x16x128xi32>
    %12 = arith.sitofp %11 : vector<8x16x128xi32> to vector<8x16x128xf32>
    %13 = arith.truncf %12 : vector<8x16x128xf32> to vector<8x16x128xbf16>
    %cst_4 = arith.constant 0.000000e+00 : f32
    %14 = vector.broadcast %cst_4 : f32 to vector<8x16x128xf32>
    %15 = arith.cmpf olt, %8, %14 : vector<8x16x128xf32>
    %16 = arith.extui %15 : vector<8x16x128xi1> to vector<8x16x128xi32>
    %17 = arith.sitofp %16 : vector<8x16x128xi32> to vector<8x16x128xf32>
    %18 = arith.truncf %17 : vector<8x16x128xf32> to vector<8x16x128xbf16>
    %19 = arith.subf %13, %18 : vector<8x16x128xbf16>
    %c1_i32 = arith.constant 1 : i32
    %20 = arith.subi %1, %c1_i32 : i32
    %c0_i32 = arith.constant 0 : i32
    %21 = arith.maxsi %20, %c0_i32 : i32
    %c0_5 = arith.constant 0 : index
    %22 = arith.index_cast %21 : i32 to index
    %c0_6 = arith.constant 0 : index
    %c0_7 = arith.constant 0 : index
    %23 = vector.load %arg2[%c0_5, %22, %c0_6, %c0_7] : memref<1x16x16x128xf32, #tpu.memory_space<vmem>>, vector<1x1x16x128xf32>
    %24 = vector.shape_cast %23 : vector<1x1x16x128xf32> to vector<1x16x128xf32>
    %c8_i32_8 = arith.constant 8 : i32
    %25 = arith.addi %1, %c8_i32_8 : i32
    %c15_i32 = arith.constant 15 : i32
    %26 = arith.minsi %25, %c15_i32 : i32
    %c0_9 = arith.constant 0 : index
    %27 = arith.index_cast %26 : i32 to index
    %c0_10 = arith.constant 0 : index
    %c0_11 = arith.constant 0 : index
    %28 = vector.load %arg2[%c0_9, %27, %c0_10, %c0_11] : memref<1x16x16x128xf32, #tpu.memory_space<vmem>>, vector<1x1x16x128xf32>
    %29 = vector.shape_cast %28 : vector<1x1x16x128xf32> to vector<1x16x128xf32>
    %c0_12 = arith.constant 0 : index
    %c0_13 = arith.constant 0 : index
    %30 = vector.load %arg3[%c0_12, %c0_13] : memref<1x128xf32, #tpu.memory_space<vmem>>, vector<1x128xf32>
    %31 = vector.shape_cast %30 : vector<1x128xf32> to vector<1x1x128xf32>
    %32 = vector.broadcast %31 : vector<1x1x128xf32> to vector<1x16x128xf32>
    %33 = arith.addf %24, %32 : vector<1x16x128xf32>
    %cst_14 = arith.constant 0.000000e+00 : f32
    %34 = vector.broadcast %cst_14 : f32 to vector<1x16x128xf32>
    %35 = arith.cmpf ogt, %33, %34 : vector<1x16x128xf32>
    %36 = arith.extui %35 : vector<1x16x128xi1> to vector<1x16x128xi32>
    %37 = arith.sitofp %36 : vector<1x16x128xi32> to vector<1x16x128xf32>
    %38 = arith.truncf %37 : vector<1x16x128xf32> to vector<1x16x128xbf16>
    %cst_15 = arith.constant 0.000000e+00 : f32
    %39 = vector.broadcast %cst_15 : f32 to vector<1x16x128xf32>
    %40 = arith.cmpf olt, %33, %39 : vector<1x16x128xf32>
    %41 = arith.extui %40 : vector<1x16x128xi1> to vector<1x16x128xi32>
    %42 = arith.sitofp %41 : vector<1x16x128xi32> to vector<1x16x128xf32>
    %43 = arith.truncf %42 : vector<1x16x128xf32> to vector<1x16x128xbf16>
    %44 = arith.subf %38, %43 : vector<1x16x128xbf16>
    %c0_i32_16 = arith.constant 0 : i32
    %45 = arith.cmpi sgt, %arg1, %c0_i32_16 : i32
    %46 = arith.extui %45 : i1 to i32
    %47 = arith.sitofp %46 : i32 to f32
    %48 = arith.truncf %47 : f32 to bf16
    %49 = vector.broadcast %48 : bf16 to vector<1x16x128xbf16>
    %50 = arith.mulf %44, %49 : vector<1x16x128xbf16>
    %c0_17 = arith.constant 0 : index
    %c0_18 = arith.constant 0 : index
    %51 = vector.load %arg3[%c0_17, %c0_18] : memref<1x128xf32, #tpu.memory_space<vmem>>, vector<1x128xf32>
    %52 = vector.shape_cast %51 : vector<1x128xf32> to vector<1x1x128xf32>
    %53 = vector.broadcast %52 : vector<1x1x128xf32> to vector<1x16x128xf32>
    %54 = arith.addf %29, %53 : vector<1x16x128xf32>
    %cst_19 = arith.constant 0.000000e+00 : f32
    %55 = vector.broadcast %cst_19 : f32 to vector<1x16x128xf32>
    %56 = arith.cmpf ogt, %54, %55 : vector<1x16x128xf32>
    %57 = arith.extui %56 : vector<1x16x128xi1> to vector<1x16x128xi32>
    %58 = arith.sitofp %57 : vector<1x16x128xi32> to vector<1x16x128xf32>
    %59 = arith.truncf %58 : vector<1x16x128xf32> to vector<1x16x128xbf16>
    %cst_20 = arith.constant 0.000000e+00 : f32
    %60 = vector.broadcast %cst_20 : f32 to vector<1x16x128xf32>
    %61 = arith.cmpf olt, %54, %60 : vector<1x16x128xf32>
    %62 = arith.extui %61 : vector<1x16x128xi1> to vector<1x16x128xi32>
    %63 = arith.sitofp %62 : vector<1x16x128xi32> to vector<1x16x128xf32>
    %64 = arith.truncf %63 : vector<1x16x128xf32> to vector<1x16x128xbf16>
    %65 = arith.subf %59, %64 : vector<1x16x128xbf16>
    %c1_i32_21 = arith.constant 1 : i32
    %66 = arith.cmpi slt, %arg1, %c1_i32_21 : i32
    %67 = arith.extui %66 : i1 to i32
    %68 = arith.sitofp %67 : i32 to f32
    %69 = arith.truncf %68 : f32 to bf16
    %70 = vector.broadcast %69 : bf16 to vector<1x16x128xbf16>
    %71 = arith.mulf %65, %70 : vector<1x16x128xbf16>
    %72 = tpu.concatenate %50, %19, %71 in 0 : vector<1x16x128xbf16>, vector<8x16x128xbf16>, vector<1x16x128xbf16> -> vector<10x16x128xbf16>
    %cst_22 = arith.constant 0.000000e+00 : bf16
    %73 = vector.broadcast %cst_22 : bf16 to vector<10x1x128xbf16>
    %74 = vector.extract_strided_slice %72 {offsets = [0, 0, 0], sizes = [10, 15, 128], strides = [1, 1, 1]} : vector<10x16x128xbf16> to vector<10x15x128xbf16>
    %75 = tpu.concatenate %73, %74 in 1 : vector<10x1x128xbf16>, vector<10x15x128xbf16> -> vector<10x16x128xbf16>
    %76 = vector.extract_strided_slice %72 {offsets = [0, 1, 0], sizes = [10, 15, 128], strides = [1, 1, 1]} : vector<10x16x128xbf16> to vector<10x15x128xbf16>
    %77 = tpu.concatenate %76, %73 in 1 : vector<10x15x128xbf16>, vector<10x1x128xbf16> -> vector<10x16x128xbf16>
    %78 = tpu.concatenate %75, %72, %77 in 2 : vector<10x16x128xbf16>, vector<10x16x128xbf16>, vector<10x16x128xbf16> -> vector<10x16x384xbf16>
    %79 = vector.shape_cast %78 : vector<10x16x384xbf16> to vector<160x384xbf16>
    %80 = vector.extract_strided_slice %79 {offsets = [16, 0], sizes = [128, 384], strides = [1, 1]} : vector<160x384xbf16> to vector<128x384xbf16>
    %c1 = arith.constant 1 : index
    %c0_23 = arith.constant 0 : index
    %c0_24 = arith.constant 0 : index
    %81 = vector.load %arg4[%c1, %c0_23, %c0_24] : memref<3x384x128xbf16, #tpu.memory_space<vmem>>, vector<1x384x128xbf16>
    %82 = vector.shape_cast %81 : vector<1x384x128xbf16> to vector<384x128xbf16>
    %cst_25 = arith.constant dense<0.000000e+00> : vector<128x128xf32>
    %83 = tpu.matmul %80, %82, %cst_25 {dimension_numbers = #tpu.dot_dimension_numbers<[1], [0], [0], [1], [0, 0, 1, 1], [], []>} : vector<128x384xbf16>, vector<384x128xbf16>, vector<128x128xf32> -> vector<128x128xf32>
    %84 = vector.extract_strided_slice %79 {offsets = [0, 0], sizes = [128, 384], strides = [1, 1]} : vector<160x384xbf16> to vector<128x384xbf16>
    %c0_26 = arith.constant 0 : index
    %c0_27 = arith.constant 0 : index
    %c0_28 = arith.constant 0 : index
    %85 = vector.load %arg4[%c0_26, %c0_27, %c0_28] : memref<3x384x128xbf16, #tpu.memory_space<vmem>>, vector<1x384x128xbf16>
    %86 = vector.shape_cast %85 : vector<1x384x128xbf16> to vector<384x128xbf16>
    %cst_29 = arith.constant dense<0.000000e+00> : vector<128x128xf32>
    %87 = tpu.matmul %84, %86, %cst_29 {dimension_numbers = #tpu.dot_dimension_numbers<[1], [0], [0], [1], [0, 0, 1, 1], [], []>} : vector<128x384xbf16>, vector<384x128xbf16>, vector<128x128xf32> -> vector<128x128xf32>
    %88 = arith.addf %83, %87 : vector<128x128xf32>
    %89 = vector.extract_strided_slice %79 {offsets = [32, 0], sizes = [128, 384], strides = [1, 1]} : vector<160x384xbf16> to vector<128x384xbf16>
    %c2 = arith.constant 2 : index
    %c0_30 = arith.constant 0 : index
    %c0_31 = arith.constant 0 : index
    %90 = vector.load %arg4[%c2, %c0_30, %c0_31] : memref<3x384x128xbf16, #tpu.memory_space<vmem>>, vector<1x384x128xbf16>
    %91 = vector.shape_cast %90 : vector<1x384x128xbf16> to vector<384x128xbf16>
    %cst_32 = arith.constant dense<0.000000e+00> : vector<128x128xf32>
    %92 = tpu.matmul %89, %91, %cst_32 {dimension_numbers = #tpu.dot_dimension_numbers<[1], [0], [0], [1], [0, 0, 1, 1], [], []>} : vector<128x384xbf16>, vector<384x128xbf16>, vector<128x128xf32> -> vector<128x128xf32>
    %93 = arith.addf %88, %92 : vector<128x128xf32>
    %94 = vector.shape_cast %4 : vector<8x16x128xf32> to vector<128x128xf32>
    %95 = arith.addf %94, %93 : vector<128x128xf32>
    %c0_33 = arith.constant 0 : index
    %c0_34 = arith.constant 0 : index
    %96 = vector.load %arg5[%c0_33, %c0_34] : memref<1x128xf32, #tpu.memory_space<vmem>>, vector<1x128xf32>
    %97 = vector.broadcast %96 : vector<1x128xf32> to vector<128x128xf32>
    %98 = arith.addf %95, %97 : vector<128x128xf32>
    %cst_35 = arith.constant 0.000000e+00 : f32
    %99 = vector.broadcast %cst_35 : f32 to vector<128x128xf32>
    %100 = arith.cmpf oge, %98, %99 : vector<128x128xf32>
    %c0_36 = arith.constant 0 : index
    %c0_37 = arith.constant 0 : index
    %101 = vector.load %arg6[%c0_36, %c0_37] : memref<1x128xf32, #tpu.memory_space<vmem>>, vector<1x128xf32>
    %102 = vector.broadcast %101 : vector<1x128xf32> to vector<128x128xf32>
    %103 = arith.mulf %102, %98 : vector<128x128xf32>
    %104 = arith.select %100, %98, %103 : vector<128x128xi1>, vector<128x128xf32>
    %c0_38 = arith.constant 0 : index
    %c0_39 = arith.constant 0 : index
    %105 = vector.load %arg7[%c0_38, %c0_39] : memref<1x128xf32, #tpu.memory_space<vmem>>, vector<1x128xf32>
    %106 = vector.broadcast %105 : vector<1x128xf32> to vector<128x128xf32>
    %107 = arith.addf %104, %106 : vector<128x128xf32>
    %c0_40 = arith.constant 0 : index
    %c0_41 = arith.constant 0 : index
    %108 = vector.load %arg8[%c0_40, %c0_41] : memref<1x128xf32, #tpu.memory_space<vmem>>, vector<1x128xf32>
    %109 = vector.broadcast %108 : vector<1x128xf32> to vector<128x128xf32>
    %110 = arith.addf %107, %109 : vector<128x128xf32>
    %cst_42 = arith.constant 0.000000e+00 : f32
    %111 = vector.broadcast %cst_42 : f32 to vector<128x128xf32>
    %112 = arith.cmpf ogt, %110, %111 : vector<128x128xf32>
    %113 = arith.extui %112 : vector<128x128xi1> to vector<128x128xi32>
    %114 = arith.sitofp %113 : vector<128x128xi32> to vector<128x128xf32>
    %115 = arith.truncf %114 : vector<128x128xf32> to vector<128x128xbf16>
    %cst_43 = arith.constant 0.000000e+00 : f32
    %116 = vector.broadcast %cst_43 : f32 to vector<128x128xf32>
    %117 = arith.cmpf olt, %110, %116 : vector<128x128xf32>
    %118 = arith.extui %117 : vector<128x128xi1> to vector<128x128xi32>
    %119 = arith.sitofp %118 : vector<128x128xi32> to vector<128x128xf32>
    %120 = arith.truncf %119 : vector<128x128xf32> to vector<128x128xbf16>
    %121 = arith.subf %115, %120 : vector<128x128xbf16>
    %c0_44 = arith.constant 0 : index
    %c0_45 = arith.constant 0 : index
    %122 = vector.load %arg9[%c0_44, %c0_45] : memref<128x128xbf16, #tpu.memory_space<vmem>>, vector<128x128xbf16>
    %cst_46 = arith.constant dense<0.000000e+00> : vector<128x128xf32>
    %123 = tpu.matmul %121, %122, %cst_46 {dimension_numbers = #tpu.dot_dimension_numbers<[1], [0], [0], [1], [0, 0, 1, 1], [], []>} : vector<128x128xbf16>, vector<128x128xbf16>, vector<128x128xf32> -> vector<128x128xf32>
    %124 = arith.addf %123, %107 : vector<128x128xf32>
    %c0_47 = arith.constant 0 : index
    %c0_48 = arith.constant 0 : index
    %125 = vector.load %arg10[%c0_47, %c0_48] : memref<1x128xf32, #tpu.memory_space<vmem>>, vector<1x128xf32>
    %126 = vector.broadcast %125 : vector<1x128xf32> to vector<128x128xf32>
    %127 = arith.addf %124, %126 : vector<128x128xf32>
    %cst_49 = arith.constant 0.000000e+00 : f32
    %128 = vector.broadcast %cst_49 : f32 to vector<128x128xf32>
    %129 = arith.cmpf oge, %127, %128 : vector<128x128xf32>
    %c0_50 = arith.constant 0 : index
    %c0_51 = arith.constant 0 : index
    %130 = vector.load %arg11[%c0_50, %c0_51] : memref<1x128xf32, #tpu.memory_space<vmem>>, vector<1x128xf32>
    %131 = vector.broadcast %130 : vector<1x128xf32> to vector<128x128xf32>
    %132 = arith.mulf %131, %127 : vector<128x128xf32>
    %133 = arith.select %129, %127, %132 : vector<128x128xi1>, vector<128x128xf32>
    %c0_52 = arith.constant 0 : index
    %c0_53 = arith.constant 0 : index
    %134 = vector.load %arg12[%c0_52, %c0_53] : memref<1x128xf32, #tpu.memory_space<vmem>>, vector<1x128xf32>
    %135 = vector.broadcast %134 : vector<1x128xf32> to vector<128x128xf32>
    %136 = arith.addf %133, %135 : vector<128x128xf32>
    %137 = vector.shape_cast %136 : vector<128x128xf32> to vector<1x8x16x128xf32>
    %c0_54 = arith.constant 0 : index
    %c0_55 = arith.constant 0 : index
    %c0_56 = arith.constant 0 : index
    %c0_57 = arith.constant 0 : index
    %138 = vector.load %arg13[%c0_54, %c0_55, %c0_56, %c0_57] : memref<1x8x16x128xf32, #tpu.memory_space<vmem>>, vector<1x8x16x128xf32>
    tpu.vector_store %arg13[%c0_54, %c0_55, %c0_56, %c0_57], %137 {strides = array<i32>} : memref<1x8x16x128xf32, #tpu.memory_space<vmem>>, vector<1x8x16x128xf32>,
    return
  }
  func.func @transform_0(%arg0: i32, %arg1: i32) -> (i32, i32, i32, i32) {
    %c0_i32 = arith.constant 0 : i32
    %c0_i32_0 = arith.constant 0 : i32
    %c0_i32_1 = arith.constant 0 : i32
    %c0_i32_2 = arith.constant 0 : i32
    return %arg0, %c0_i32, %c0_i32_0, %c0_i32_1 : i32, i32, i32, i32
  }
  func.func @transform_1(%arg0: i32, %arg1: i32) -> (i32, i32) {
    %c0_i32 = arith.constant 0 : i32
    %c0_i32_0 = arith.constant 0 : i32
    %c0_i32_1 = arith.constant 0 : i32
    return %c0_i32, %c0_i32_0 : i32, i32
  }
  func.func @transform_2(%arg0: i32, %arg1: i32) -> (i32, i32, i32) {
    %c0_i32 = arith.constant 0 : i32
    %c0_i32_0 = arith.constant 0 : i32
    %c0_i32_1 = arith.constant 0 : i32
    %c0_i32_2 = arith.constant 0 : i32
    return %c0_i32, %c0_i32_0, %c0_i32_1 : i32, i32, i32
  }
  func.func @transform_3(%arg0: i32, %arg1: i32) -> (i32, i32) {
    %c0_i32 = arith.constant 0 : i32
    %c0_i32_0 = arith.constant 0 : i32
    %c0_i32_1 = arith.constant 0 : i32
    return %c0_i32, %c0_i32_0 : i32, i32
  }
  func.func @transform_4(%arg0: i32, %arg1: i32) -> (i32, i32) {
    %c0_i32 = arith.constant 0 : i32
    %c0_i32_0 = arith.constant 0 : i32
    %c0_i32_1 = arith.constant 0 : i32
    return %c0_i32, %c0_i32_0 : i32, i32
  }
  func.func @transform_5(%arg0: i32, %arg1: i32) -> (i32, i32) {
    %c0_i32 = arith.constant 0 : i32
    %c0_i32_0 = arith.constant 0 : i32
    %c0_i32_1 = arith.constant 0 : i32
    return %c0_i32, %c0_i32_0 : i32, i32
  }
  func.func @transform_6(%arg0: i32, %arg1: i32) -> (i32, i32) {
    %c0_i32 = arith.constant 0 : i32
    %c0_i32_0 = arith.constant 0 : i32
    %c0_i32_1 = arith.constant 0 : i32
    return %c0_i32, %c0_i32_0 : i32, i32
  }
  func.func @transform_7(%arg0: i32, %arg1: i32) -> (i32, i32) {
    %c0_i32 = arith.constant 0 : i32
    %c0_i32_0 = arith.constant 0 : i32
    %c0_i32_1 = arith.constant 0 : i32
    return %c0_i32, %c0_i32_0 : i32, i32
  }
  func.func @transform_8(%arg0: i32, %arg1: i32) -> (i32, i32) {
    %c0_i32 = arith.constant 0 : i32
    %c0_i32_0 = arith.constant 0 : i32
    %c0_i32_1 = arith.constant 0 : i32
    return %c0_i32, %c0_i32_0 : i32, i32
  }
  func.func @transform_9(%arg0: i32, %arg1: i32) -> (i32, i32) {
    %c0_i32 = arith.constant 0 : i32
    %c0_i32_0 = arith.constant 0 : i32
    %c0_i32_1 = arith.constant 0 : i32
    return %c0_i32, %c0_i32_0 : i32, i32
  }
  func.func @transform_10(%arg0: i32, %arg1: i32) -> (i32, i32) {
    %c0_i32 = arith.constant 0 : i32
    %c0_i32_0 = arith.constant 0 : i32
    %c0_i32_1 = arith.constant 0 : i32
    return %c0_i32, %c0_i32_0 : i32, i32
  }
  func.func @transform_11(%arg0: i32, %arg1: i32) -> (i32, i32, i32, i32) {
    %c0_i32 = arith.constant 0 : i32
    %c0_i32_0 = arith.constant 0 : i32
    %c0_i32_1 = arith.constant 0 : i32
    return %arg0, %arg1, %c0_i32, %c0_i32_0 : i32, i32, i32, i32
  }
}

</mosaic_0001>

<llo_original>
// kernel: tpu_custom_call.1
$region0: #{tpu_custom_call.1}
  #allocation0 [shape = 'u32[]', space=smem, size = 0x4, offset = 0x4, fixed_abs, tag = 'smem constant byte address 0x4 - core index']
  #allocation1 [shape = 'u32[144,128]{1,0:T(1,128)}', space=vmem, size = 0x12000, scoped, tag = 'internal scratch']
  %s0 = inlined_call_operand.hbm [shape: f32[2,16,16,128], index: 0, kind: input, shape index: {}]
  %s1 = inlined_call_operand.vmem [shape: f32[1,128], index: 1, kind: input, shape index: {}]
  %s2 = inlined_call_operand.hbm [shape: bf16[3,384,128], index: 2, kind: input, shape index: {}]
  %s3 = inlined_call_operand.vmem [shape: f32[1,128], index: 3, kind: input, shape index: {}]
  %s4 = inlined_call_operand.vmem [shape: f32[1,128], index: 4, kind: input, shape index: {}]
  %s5 = inlined_call_operand.vmem [shape: f32[1,128], index: 5, kind: input, shape index: {}]
  %s6 = inlined_call_operand.vmem [shape: f32[1,128], index: 6, kind: input, shape index: {}]
  %s7 = inlined_call_operand.hbm [shape: bf16[128,128], index: 7, kind: input, shape index: {}]
  %s8 = inlined_call_operand.vmem [shape: f32[1,128], index: 8, kind: input, shape index: {}]
  %s9 = inlined_call_operand.vmem [shape: f32[1,128], index: 9, kind: input, shape index: {}]
  %s10 = inlined_call_operand.vmem [shape: f32[1,128], index: 10, kind: input, shape index: {}]
  %s11 = inlined_call_operand.hbm [shape: f32[2,16,16,128], index: 11, kind: output, shape index: {}]
  %s12 = sld [smem:[#allocation0]]
  $region89: #{tpu_custom_call.1} parent=0
    _
  %s14 = ssub.s32 1, %s12
  %s15 = scalar_select 0, %s14, %s12
  $region1: #{tpu_custom_call.1} parent=0
    #allocation2 [shape = 'u8[262144]{0}', space=vmem, size = 0x40000, scoped, tag = 'input window, operand 0']
    #allocation3 [shape = 's32[2]{0}', space=sflag, size = 0x8, scoped, tag = 'scoped memory for tpu_custom_call.1']
    #allocation4 [shape = 's32[2]{0}', space=sflag, size = 0x8, scoped, tag = 'scoped memory for tpu_custom_call.1']
    #allocation5 [shape = 'u8[294912]{0}', space=vmem, size = 0x48000, scoped, tag = 'input window, operand 2, single buffered']
    #allocation6 [shape = 's32[1]{0}', space=sflag, size = 0x4, scoped, tag = 'scoped memory for tpu_custom_call.1']
    #allocation7 [shape = 'u8[32768]{0}', space=vmem, size = 0x8000, scoped, tag = 'input window, operand 7, single buffered']
    #allocation8 [shape = 'u8[131072]{0}', space=vmem, size = 0x20000, scoped, tag = 'output window, operand 0']
    %16 = vsyncpa [#allocation3], 0
    %s17 = scalar_lea.sflag [#allocation3], 1
    %18 = vsyncpa %s17, 0
    %19 = vsyncpa [#allocation6], 0
    %20 = vsyncpa [#allocation4], 0
    %s21 = scalar_lea.sflag [#allocation4], 1
    %22 = vsyncpa %s21, 0
    loop: start=0, step=1, limit=6
    $region2: #{tpu_custom_call.1} parent=1 // loop_pre_header
      _
    $region3: #{tpu_custom_call.1} parent=1 // loop_header
      %s24 = sphi 0, %s28
      %p25 = scmp.ge.s32.totalorder %s24, 6
      %s31 = sphi 0, %s43
      %s32 = sphi 0, %s39
      %s33 = sphi 0, %s31
      %s34 = sphi 0, %s32
      %s35 = sphi 0, %s33
      %s36 = sphi 0, %s34
      %s46 = sphi 0, %s48
      %s49 = sphi 0, %s46
      %s50 = sphi 0, %s49
      %s66 = sphi 0, %s50
      %s70 = sphi 0, %s70
      %s72 = sphi 0, %s70
      %s73 = sphi 0, %s72
      %s87 = sphi 0, %s73
      %s91 = sphi 0, %s91
      %s93 = sphi 0, %s91
      %s94 = sphi 0, %s93
      %s108 = sphi 0, %s94
      %s112 = sphi 0, %s112
      %s114 = sphi 0, %s112
      %s115 = sphi 0, %s114
      %s129 = sphi 0, %s115
      %s133 = sphi 0, %s133
      %s135 = sphi 0, %s133
      %s136 = sphi 0, %s135
      %s150 = sphi 0, %s136
      %s154 = sphi 0, %s154
      %s156 = sphi 0, %s154
      %s157 = sphi 0, %s156
      %s171 = sphi 0, %s157
      %s175 = sphi 0, %s175
      %s177 = sphi 0, %s175
      %s178 = sphi 0, %s177
      %s192 = sphi 0, %s178
      %s196 = sphi 0, %s196
      %s198 = sphi 0, %s196
      %s199 = sphi 0, %s198
      %s213 = sphi 0, %s199
      %s217 = sphi 0, %s217
      %s219 = sphi 0, %s217
      %s220 = sphi 0, %s219
      %s234 = sphi 0, %s220
      %s238 = sphi 0, %s238
      %s240 = sphi 0, %s238
      %s241 = sphi 0, %s240
      %s255 = sphi 0, %s241
      %s259 = sphi 0, %s259
      %s261 = sphi 0, %s259
      %s262 = sphi 0, %s261
      %s276 = sphi 0, %s262
      %s284 = sphi 0, %s286
      %s287 = sphi 0, %s284
      %s288 = sphi 0, %s287
      %s304 = sphi 0, %s288
    $region4: #{tpu_custom_call.1} parent=1 // loop_header_branch
      %27 = sbr.rel (%p25) target = $region8
    $region5: #{tpu_custom_call.1} parent=1 // loop_body
      %s29 = ssub.s32 %s24, 1
      %s30 = ssub.s32 %s24, 2
      %s37 = sadd.s32 1, %s32
      %p38 = scmp.ge.s32.totalorder %s37, 2
      %s39 = scalar_select %p38, 0, %s37
      %s40 = sadd.s32 1, %s31
      %s41 = scalar_select %p38, %s40, %s31
      %p42 = scmp.ge.s32.totalorder %s41, 2
      %s43 = scalar_select %p42, 0, %s41
      %s44 = ssub.s32 %s31, %s43
      %p45 = scmp.eq.s32.totalorder %s44, 0
      %s47 = sadd.s32 %s46, 1
      %s48 = scalar_select %p45, %s46, %s47
      %p51 = pneg %p45
      %p52 = scmp.eq.s32.totalorder %s24, 3
      %p53 = por %p51, %p52
      %p54 = scmp.ne.s32.totalorder %s46, %s49
      %p55 = scmp.eq.s32.totalorder %s24, 0
      %p56 = por %p54, %p55
      %p57 = scmp.ne.s32.totalorder %s46, %s49
      %p58 = scmp.eq.s32.totalorder %s29, 3
      %p59 = por %p57, %p58
      %p60 = scmp.ne.s32.totalorder %s49, %s50
      %p61 = scmp.eq.s32.totalorder %s29, 0
      %p62 = por %p60, %p61
      %p63 = scmp.ne.s32.totalorder %s49, %s50
      %p64 = scmp.eq.s32.totalorder %s30, 3
      %p65 = por %p63, %p64
      %p67 = scmp.ne.s32.totalorder %s50, %s66
      %p68 = scmp.eq.s32.totalorder %s30, 0
      %p69 = por %p67, %p68
      %s71 = sadd.s32 %s70, 1
      %p74 = scmp.eq.s32.totalorder %s24, 3
      %p75 = scmp.ne.s32.totalorder %s70, %s72
      %p76 = scmp.eq.s32.totalorder %s24, 0
      %p77 = por %p75, %p76
      %p78 = scmp.ne.s32.totalorder %s70, %s72
      %p79 = scmp.eq.s32.totalorder %s29, 3
      %p80 = por %p78, %p79
      %p81 = scmp.ne.s32.totalorder %s72, %s73
      %p82 = scmp.eq.s32.totalorder %s29, 0
      %p83 = por %p81, %p82
      %p84 = scmp.ne.s32.totalorder %s72, %s73
      %p85 = scmp.eq.s32.totalorder %s30, 3
      %p86 = por %p84, %p85
      %p88 = scmp.ne.s32.totalorder %s73, %s87
      %p89 = scmp.eq.s32.totalorder %s30, 0
      %p90 = por %p88, %p89
      %s92 = sadd.s32 %s91, 1
      %p95 = scmp.eq.s32.totalorder %s24, 3
      %p96 = scmp.ne.s32.totalorder %s91, %s93
      %p97 = scmp.eq.s32.totalorder %s24, 0
      %p98 = por %p96, %p97
      %p99 = scmp.ne.s32.totalorder %s91, %s93
      %p100 = scmp.eq.s32.totalorder %s29, 3
      %p101 = por %p99, %p100
      %p102 = scmp.ne.s32.totalorder %s93, %s94
      %p103 = scmp.eq.s32.totalorder %s29, 0
      %p104 = por %p102, %p103
      %p105 = scmp.ne.s32.totalorder %s93, %s94
      %p106 = scmp.eq.s32.totalorder %s30, 3
      %p107 = por %p105, %p106
      %p109 = scmp.ne.s32.totalorder %s94, %s108
      %p110 = scmp.eq.s32.totalorder %s30, 0
      %p111 = por %p109, %p110
      %s113 = sadd.s32 %s112, 1
      %p116 = scmp.eq.s32.totalorder %s24, 3
      %p117 = scmp.ne.s32.totalorder %s112, %s114
      %p118 = scmp.eq.s32.totalorder %s24, 0
      %p119 = por %p117, %p118
      %p120 = scmp.ne.s32.totalorder %s112, %s114
      %p121 = scmp.eq.s32.totalorder %s29, 3
      %p122 = por %p120, %p121
      %p123 = scmp.ne.s32.totalorder %s114, %s115
      %p124 = scmp.eq.s32.totalorder %s29, 0
      %p125 = por %p123, %p124
      %p126 = scmp.ne.s32.totalorder %s114, %s115
      %p127 = scmp.eq.s32.totalorder %s30, 3
      %p128 = por %p126, %p127
      %p130 = scmp.ne.s32.totalorder %s115, %s129
      %p131 = scmp.eq.s32.totalorder %s30, 0
      %p132 = por %p130, %p131
      %s134 = sadd.s32 %s133, 1
      %p137 = scmp.eq.s32.totalorder %s24, 3
      %p138 = scmp.ne.s32.totalorder %s133, %s135
      %p139 = scmp.eq.s32.totalorder %s24, 0
      %p140 = por %p138, %p139
      %p141 = scmp.ne.s32.totalorder %s133, %s135
      %p142 = scmp.eq.s32.totalorder %s29, 3
      %p143 = por %p141, %p142
      %p144 = scmp.ne.s32.totalorder %s135, %s136
      %p145 = scmp.eq.s32.totalorder %s29, 0
      %p146 = por %p144, %p145
      %p147 = scmp.ne.s32.totalorder %s135, %s136
      %p148 = scmp.eq.s32.totalorder %s30, 3
      %p149 = por %p147, %p148
      %p151 = scmp.ne.s32.totalorder %s136, %s150
      %p152 = scmp.eq.s32.totalorder %s30, 0
      %p153 = por %p151, %p152
      %s155 = sadd.s32 %s154, 1
      %p158 = scmp.eq.s32.totalorder %s24, 3
      %p159 = scmp.ne.s32.totalorder %s154, %s156
      %p160 = scmp.eq.s32.totalorder %s24, 0
      %p161 = por %p159, %p160
      %p162 = scmp.ne.s32.totalorder %s154, %s156
      %p163 = scmp.eq.s32.totalorder %s29, 3
      %p164 = por %p162, %p163
      %p165 = scmp.ne.s32.totalorder %s156, %s157
      %p166 = scmp.eq.s32.totalorder %s29, 0
      %p167 = por %p165, %p166
      %p168 = scmp.ne.s32.totalorder %s156, %s157
      %p169 = scmp.eq.s32.totalorder %s30, 3
      %p170 = por %p168, %p169
      %p172 = scmp.ne.s32.totalorder %s157, %s171
      %p173 = scmp.eq.s32.totalorder %s30, 0
      %p174 = por %p172, %p173
      %s176 = sadd.s32 %s175, 1
      %p179 = scmp.eq.s32.totalorder %s24, 3
      %p180 = scmp.ne.s32.totalorder %s175, %s177
      %p181 = scmp.eq.s32.totalorder %s24, 0
      %p182 = por %p180, %p181
      %p183 = scmp.ne.s32.totalorder %s175, %s177
      %p184 = scmp.eq.s32.totalorder %s29, 3
      %p185 = por %p183, %p184
      %p186 = scmp.ne.s32.totalorder %s177, %s178
      %p187 = scmp.eq.s32.totalorder %s29, 0
      %p188 = por %p186, %p187
      %p189 = scmp.ne.s32.totalorder %s177, %s178
      %p190 = scmp.eq.s32.totalorder %s30, 3
      %p191 = por %p189, %p190
      %p193 = scmp.ne.s32.totalorder %s178, %s192
      %p194 = scmp.eq.s32.totalorder %s30, 0
      %p195 = por %p193, %p194
      %s197 = sadd.s32 %s196, 1
      %p200 = scmp.eq.s32.totalorder %s24, 3
      %p201 = scmp.ne.s32.totalorder %s196, %s198
      %p202 = scmp.eq.s32.totalorder %s24, 0
      %p203 = por %p201, %p202
      %p204 = scmp.ne.s32.totalorder %s196, %s198
      %p205 = scmp.eq.s32.totalorder %s29, 3
      %p206 = por %p204, %p205
      %p207 = scmp.ne.s32.totalorder %s198, %s199
      %p208 = scmp.eq.s32.totalorder %s29, 0
      %p209 = por %p207, %p208
      %p210 = scmp.ne.s32.totalorder %s198, %s199
      %p211 = scmp.eq.s32.totalorder %s30, 3
      %p212 = por %p210, %p211
      %p214 = scmp.ne.s32.totalorder %s199, %s213
      %p215 = scmp.eq.s32.totalorder %s30, 0
      %p216 = por %p214, %p215
      %s218 = sadd.s32 %s217, 1
      %p221 = scmp.eq.s32.totalorder %s24, 3
      %p222 = scmp.ne.s32.totalorder %s217, %s219
      %p223 = scmp.eq.s32.totalorder %s24, 0
      %p224 = por %p222, %p223
      %p225 = scmp.ne.s32.totalorder %s217, %s219
      %p226 = scmp.eq.s32.totalorder %s29, 3
      %p227 = por %p225, %p226
      %p228 = scmp.ne.s32.totalorder %s219, %s220
      %p229 = scmp.eq.s32.totalorder %s29, 0
      %p230 = por %p228, %p229
      %p231 = scmp.ne.s32.totalorder %s219, %s220
      %p232 = scmp.eq.s32.totalorder %s30, 3
      %p233 = por %p231, %p232
      %p235 = scmp.ne.s32.totalorder %s220, %s234
      %p236 = scmp.eq.s32.totalorder %s30, 0
      %p237 = por %p235, %p236
      %s239 = sadd.s32 %s238, 1
      %p242 = scmp.eq.s32.totalorder %s24, 3
      %p243 = scmp.ne.s32.totalorder %s238, %s240
      %p244 = scmp.eq.s32.totalorder %s24, 0
      %p245 = por %p243, %p244
      %p246 = scmp.ne.s32.totalorder %s238, %s240
      %p247 = scmp.eq.s32.totalorder %s29, 3
      %p248 = por %p246, %p247
      %p249 = scmp.ne.s32.totalorder %s240, %s241
      %p250 = scmp.eq.s32.totalorder %s29, 0
      %p251 = por %p249, %p250
      %p252 = scmp.ne.s32.totalorder %s240, %s241
      %p253 = scmp.eq.s32.totalorder %s30, 3
      %p254 = por %p252, %p253
      %p256 = scmp.ne.s32.totalorder %s241, %s255
      %p257 = scmp.eq.s32.totalorder %s30, 0
      %p258 = por %p256, %p257
      %s260 = sadd.s32 %s259, 1
      %p263 = scmp.eq.s32.totalorder %s24, 3
      %p264 = scmp.ne.s32.totalorder %s259, %s261
      %p265 = scmp.eq.s32.totalorder %s24, 0
      %p266 = por %p264, %p265
      %p267 = scmp.ne.s32.totalorder %s259, %s261
      %p268 = scmp.eq.s32.totalorder %s29, 3
      %p269 = por %p267, %p268
      %p270 = scmp.ne.s32.totalorder %s261, %s262
      %p271 = scmp.eq.s32.totalorder %s29, 0
      %p272 = por %p270, %p271
      %p273 = scmp.ne.s32.totalorder %s261, %s262
      %p274 = scmp.eq.s32.totalorder %s30, 3
      %p275 = por %p273, %p274
      %p277 = scmp.ne.s32.totalorder %s262, %s276
      %p278 = scmp.eq.s32.totalorder %s30, 0
      %p279 = por %p277, %p278
      %s280 = ssub.s32 %s31, %s43
      %s281 = ssub.s32 %s32, %s39
      %s282 = sor.u32 %s280, %s281
      %p283 = scmp.eq.s32.totalorder %s282, 0
      %s285 = sadd.s32 %s284, 1
      %s286 = scalar_select %p283, %s284, %s285
      %p289 = pneg %p283
      %p290 = scmp.eq.s32.totalorder %s24, 3
      %p291 = por %p289, %p290
      %p292 = scmp.ne.s32.totalorder %s284, %s287
      %p293 = scmp.eq.s32.totalorder %s24, 0
      %p294 = por %p292, %p293
      %p295 = scmp.ne.s32.totalorder %s284, %s287
      %p296 = scmp.eq.s32.totalorder %s29, 3
      %p297 = por %p295, %p296
      %p298 = scmp.ne.s32.totalorder %s287, %s288
      %p299 = scmp.eq.s32.totalorder %s29, 0
      %p300 = por %p298, %p299
      %p301 = scmp.ne.s32.totalorder %s287, %s288
      %p302 = scmp.eq.s32.totalorder %s30, 3
      %p303 = por %p301, %p302
      %p305 = scmp.ne.s32.totalorder %s288, %s304
      %p306 = scmp.eq.s32.totalorder %s30, 0
      %p307 = por %p305, %p306
      %p308 = scmp.le.s32.totalorder 1, %s24
      %p309 = scmp.lt.s32.totalorder %s24, 5
      %p310 = pnand %p308, %p309
      %p311 = pneg %p310
      // Predicated region
      $region9: #{tpu_custom_call.1} parent=5 // pred_check
        _
      $region10: #{tpu_custom_call.1} parent=5 // pred_check_branch
        %313 = sbr.rel (%p310) target = $region12
      $region11: #{tpu_custom_call.1} parent=5 // pred_region
        %s314 = ssub.s32 %s24, 1
        // Predicated region
        $region13: #{tpu_custom_call.1} parent=11 // pred_check
          %p315 = pneg %p83
        $region14: #{tpu_custom_call.1} parent=11 // pred_check_branch
          %317 = sbr.rel (%p315) target = $region16
        $region15: #{tpu_custom_call.1} parent=11 // pred_region
          _
        $region16: #{tpu_custom_call.1} parent=11 // pred_fallthru
          _
        // Predicated region
        $region17: #{tpu_custom_call.1} parent=11 // pred_check
          %p318 = pneg %p104
        $region18: #{tpu_custom_call.1} parent=11 // pred_check_branch
          %320 = sbr.rel (%p318) target = $region20
        $region19: #{tpu_custom_call.1} parent=11 // pred_region
          %s322 = ssub.s32 9216, 9216
          %323 = vsyncadd [#allocation6], %s322
          %s324 = sshll.u32 [#allocation5], 4
          %s325 = int_to_ptr.vmem [resolvable:$true] %s324
          %330 = dma.hbm_to_vmem [thread:$0]  %s2, 9216, %s325, [#allocation6], 64, 64, 4
        $region20: #{tpu_custom_call.1} parent=11 // pred_fallthru
          _
        // Predicated region
        $region21: #{tpu_custom_call.1} parent=11 // pred_check
          %p331 = pneg %p125
        $region22: #{tpu_custom_call.1} parent=11 // pred_check_branch
          %333 = sbr.rel (%p331) target = $region24
        $region23: #{tpu_custom_call.1} parent=11 // pred_region
          _
        $region24: #{tpu_custom_call.1} parent=11 // pred_fallthru
          _
        // Predicated region
        $region25: #{tpu_custom_call.1} parent=11 // pred_check
          %p334 = pneg %p146
        $region26: #{tpu_custom_call.1} parent=11 // pred_check_branch
          %336 = sbr.rel (%p334) target = $region28
        $region27: #{tpu_custom_call.1} parent=11 // pred_region
          _
        $region28: #{tpu_custom_call.1} parent=11 // pred_fallthru
          _
        // Predicated region
        $region29: #{tpu_custom_call.1} parent=11 // pred_check
          %p337 = pneg %p167
        $region30: #{tpu_custom_call.1} parent=11 // pred_check_branch
          %339 = sbr.rel (%p337) target = $region32
        $region31: #{tpu_custom_call.1} parent=11 // pred_region
          _
        $region32: #{tpu_custom_call.1} parent=11 // pred_fallthru
          _
        // Predicated region
        $region33: #{tpu_custom_call.1} parent=11 // pred_check
          %p340 = pneg %p188
        $region34: #{tpu_custom_call.1} parent=11 // pred_check_branch
          %342 = sbr.rel (%p340) target = $region36
        $region35: #{tpu_custom_call.1} parent=11 // pred_region
          _
        $region36: #{tpu_custom_call.1} parent=11 // pred_fallthru
          _
        // Predicated region
        $region37: #{tpu_custom_call.1} parent=11 // pred_check
          %p343 = pneg %p209
        $region38: #{tpu_custom_call.1} parent=11 // pred_check_branch
          %345 = sbr.rel (%p343) target = $region40
        $region39: #{tpu_custom_call.1} parent=11 // pred_region
          %s347 = ssub.s32 1024, 1024
          %348 = vsyncadd [#allocation6], %s347
          %s349 = sshll.u32 [#allocation7], 4
          %s350 = int_to_ptr.vmem [resolvable:$true] %s349
          %355 = dma.hbm_to_vmem [thread:$0]  %s7, 1024, %s350, [#allocation6], 64, 64, 4
        $region40: #{tpu_custom_call.1} parent=11 // pred_fallthru
          _
        // Predicated region
        $region41: #{tpu_custom_call.1} parent=11 // pred_check
          %p356 = pneg %p230
        $region42: #{tpu_custom_call.1} parent=11 // pred_check_branch
          %358 = sbr.rel (%p356) target = $region44
        $region43: #{tpu_custom_call.1} parent=11 // pred_region
          _
        $region44: #{tpu_custom_call.1} parent=11 // pred_fallthru
          _
        // Predicated region
        $region45: #{tpu_custom_call.1} parent=11 // pred_check
          %p359 = pneg %p251
        $region46: #{tpu_custom_call.1} parent=11 // pred_check_branch
          %361 = sbr.rel (%p359) target = $region48
        $region47: #{tpu_custom_call.1} parent=11 // pred_region
          _
        $region48: #{tpu_custom_call.1} parent=11 // pred_fallthru
          _
        // Predicated region
        $region49: #{tpu_custom_call.1} parent=11 // pred_check
          %p362 = pneg %p272
        $region50: #{tpu_custom_call.1} parent=11 // pred_check_branch
          %364 = sbr.rel (%p362) target = $region52
        $region51: #{tpu_custom_call.1} parent=11 // pred_region
          _
        $region52: #{tpu_custom_call.1} parent=11 // pred_fallthru
          _
      $region12: #{tpu_custom_call.1} parent=5 // pred_fallthru
        _
      %p365 = scmp.lt.s32.totalorder %s24, 4
      // Predicated region
      $region53: #{tpu_custom_call.1} parent=5 // pred_check
        %p366 = pneg %p365
      $region54: #{tpu_custom_call.1} parent=5 // pred_check_branch
        %368 = sbr.rel (%p366) target = $region56
      $region55: #{tpu_custom_call.1} parent=5 // pred_region
        // Predicated region
        $region57: #{tpu_custom_call.1} parent=55 // pred_check
          %p369 = pneg %p56
        $region58: #{tpu_custom_call.1} parent=55 // pred_check_branch
          %371 = sbr.rel (%p369) target = $region60
        $region59: #{tpu_custom_call.1} parent=55 // pred_region
          %s372 = sand.u32 %s46, 1
          %s373 = scalar_lea.sflag [#allocation3], %s372
          %s374 = sand.u32 %s46, 1
          %s375 = smul.addr %s374, 256
          %s376 = scalar_lea.vmem [#allocation2], %s375
          %s378 = ssub.s32 4096, 4096
          %379 = vsyncadd %s373, %s378
          %s380 = smul.addr %s31, 32
          %s381 = smul.addr %s380, 128
          %s382 = scalar_lea.hbm %s0, %s381
          %s383 = sshll.u32 %s376, 4
          %s384 = int_to_ptr.vmem [resolvable:$true] %s383
          %389 = dma.hbm_to_vmem [thread:$0]  %s382, 4096, %s384, %s373, 128, 128, 8
        $region60: #{tpu_custom_call.1} parent=55 // pred_fallthru
          _
      $region56: #{tpu_custom_call.1} parent=5 // pred_fallthru
        _
      %p390 = scmp.le.s32.totalorder 1, %s24
      %p391 = scmp.lt.s32.totalorder %s24, 5
      %p392 = pnand %p390, %p391
      %p393 = pneg %p392
      // Predicated region
      $region61: #{tpu_custom_call.1} parent=5 // pred_check
        _
      $region62: #{tpu_custom_call.1} parent=5 // pred_check_branch
        %395 = sbr.rel (%p392) target = $region64
      $region63: #{tpu_custom_call.1} parent=5 // pred_region
        %s396 = ssub.s32 %s24, 1
        %s397 = sand.u32 %s49, 1
        %s398 = scalar_lea.sflag [#allocation3], %s397
        %s399 = sand.u32 %s49, 1
        %s400 = smul.addr %s399, 256
        %s401 = scalar_lea.vmem [#allocation2], %s400
        // Predicated region
        $region65: #{tpu_custom_call.1} parent=63 // pred_check
          %p402 = pneg %p62
        $region66: #{tpu_custom_call.1} parent=63 // pred_check_branch
          %404 = sbr.rel (%p402) target = $region68
        $region67: #{tpu_custom_call.1} parent=63 // pred_region
          %405 = dma.done %s398, 4096
        $region68: #{tpu_custom_call.1} parent=63 // pred_fallthru
          _
        // Predicated region
        $region69: #{tpu_custom_call.1} parent=63 // pred_check
          %p406 = pneg %p104
        $region70: #{tpu_custom_call.1} parent=63 // pred_check_branch
          %408 = sbr.rel (%p406) target = $region72
        $region71: #{tpu_custom_call.1} parent=63 // pred_region
          %409 = dma.done [#allocation6], 9216
        $region72: #{tpu_custom_call.1} parent=63 // pred_fallthru
          _
        // Predicated region
        $region73: #{tpu_custom_call.1} parent=63 // pred_check
          %p410 = pneg %p209
        $region74: #{tpu_custom_call.1} parent=63 // pred_check_branch
          %412 = sbr.rel (%p410) target = $region76
        $region75: #{tpu_custom_call.1} parent=63 // pred_region
          %413 = dma.done [#allocation6], 1024
        $region76: #{tpu_custom_call.1} parent=63 // pred_fallthru
          _
        %s414 = sand.u32 %s49, 1
        %s415 = scalar_lea.sflag [#allocation3], %s414
        %s416 = sand.u32 %s49, 1
        %s417 = smul.addr %s416, 256
        %s418 = scalar_lea.vmem [#allocation2], %s417
        %p419 = pneg %p62
        %p420 = pneg %p59
        %p421 = pneg %p83
        %p422 = pneg %p80
        %p423 = pneg %p104
        %p424 = pneg %p101
        %p425 = pneg %p125
        %p426 = pneg %p122
        %p427 = pneg %p146
        %p428 = pneg %p143
        %p429 = pneg %p167
        %p430 = pneg %p164
        %p431 = pneg %p188
        %p432 = pneg %p185
        %p433 = pneg %p209
        %p434 = pneg %p206
        %p435 = pneg %p230
        %p436 = pneg %p227
        %p437 = pneg %p251
        %p438 = pneg %p248
        %p439 = pneg %p272
        %p440 = pneg %p269
        %p441 = pneg %p300
        %p442 = pneg %p297
        %s443 = sand.u32 %s287, 1
        %s444 = scalar_lea.sflag [#allocation4], %s443
        %s445 = sand.u32 %s287, 1
        %s446 = smul.addr %s445, 128
        %s447 = scalar_lea.vmem [#allocation8], %s446
        %s448 = smul.u32 8, %s34
        %s450 = smul.u32 %s34, 8
        %s451 = smul.u32 %s450, 16
        %s452 = scalar_lea.vmem %s401, %s451 [#allocation2]
        %v453 = vld [vmem:[%s452] sm:$0xff]
        %v454 = vld [vmem:[%s452 + $0x8] sm:$0xff]
        %v455 = vld [vmem:[%s452 + $0x10] sm:$0xff]
        %v456 = vld [vmem:[%s452 + $0x18] sm:$0xff]
        %v457 = vld [vmem:[%s452 + $0x20] sm:$0xff]
        %v458 = vld [vmem:[%s452 + $0x28] sm:$0xff]
        %v459 = vld [vmem:[%s452 + $0x30] sm:$0xff]
        %v460 = vld [vmem:[%s452 + $0x38] sm:$0xff]
        %v461 = vld [vmem:[%s452 + $0x40] sm:$0xff]
        %v462 = vld [vmem:[%s452 + $0x48] sm:$0xff]
        %v463 = vld [vmem:[%s452 + $0x50] sm:$0xff]
        %v464 = vld [vmem:[%s452 + $0x58] sm:$0xff]
        %v465 = vld [vmem:[%s452 + $0x60] sm:$0xff]
        %v466 = vld [vmem:[%s452 + $0x68] sm:$0xff]
        %v467 = vld [vmem:[%s452 + $0x70] sm:$0xff]
        %v468 = vld [vmem:[%s452 + $0x78] sm:$0xff]
        %v469 = vld [vmem:[%s1] sm:$0x1]
        %v471 = vlaneseq
        %v472 = vshrl.u32 %v471, 7
        %v473 = vsub.s32 0, %v472
        %v474 = vrot.slane %v469, %v473
        %v476 = vadd.f32 %v453, %v474
        %v477 = vadd.f32 %v454, %v474
        %v478 = vadd.f32 %v455, %v474
        %v479 = vadd.f32 %v456, %v474
        %v480 = vadd.f32 %v457, %v474
        %v481 = vadd.f32 %v458, %v474
        %v482 = vadd.f32 %v459, %v474
        %v483 = vadd.f32 %v460, %v474
        %v484 = vadd.f32 %v461, %v474
        %v485 = vadd.f32 %v462, %v474
        %v486 = vadd.f32 %v463, %v474
        %v487 = vadd.f32 %v464, %v474
        %v488 = vadd.f32 %v465, %v474
        %v489 = vadd.f32 %v466, %v474
        %v490 = vadd.f32 %v467, %v474
        %v491 = vadd.f32 %v468, %v474
        %vm492 = vcmp.gt.f32.partialorder %v476, 0.0
        %vm493 = vcmp.gt.f32.partialorder %v477, 0.0
        %vm494 = vcmp.gt.f32.partialorder %v478, 0.0
        %vm495 = vcmp.gt.f32.partialorder %v479, 0.0
        %vm496 = vcmp.gt.f32.partialorder %v480, 0.0
        %vm497 = vcmp.gt.f32.partialorder %v481, 0.0
        %vm498 = vcmp.gt.f32.partialorder %v482, 0.0
        %vm499 = vcmp.gt.f32.partialorder %v483, 0.0
        %vm500 = vcmp.gt.f32.partialorder %v484, 0.0
        %vm501 = vcmp.gt.f32.partialorder %v485, 0.0
        %vm502 = vcmp.gt.f32.partialorder %v486, 0.0
        %vm503 = vcmp.gt.f32.partialorder %v487, 0.0
        %vm504 = vcmp.gt.f32.partialorder %v488, 0.0
        %vm505 = vcmp.gt.f32.partialorder %v489, 0.0
        %vm506 = vcmp.gt.f32.partialorder %v490, 0.0
        %vm507 = vcmp.gt.f32.partialorder %v491, 0.0
        %v508 = vsel %vm492, 1, 0
        %v509 = vsel %vm493, 1, 0
        %v510 = vsel %vm494, 1, 0
        %v511 = vsel %vm495, 1, 0
        %v512 = vsel %vm496, 1, 0
        %v513 = vsel %vm497, 1, 0
        %v514 = vsel %vm498, 1, 0
        %v515 = vsel %vm499, 1, 0
        %v516 = vsel %vm500, 1, 0
        %v517 = vsel %vm501, 1, 0
        %v518 = vsel %vm502, 1, 0
        %v519 = vsel %vm503, 1, 0
        %v520 = vsel %vm504, 1, 0
        %v521 = vsel %vm505, 1, 0
        %v522 = vsel %vm506, 1, 0
        %v523 = vsel %vm507, 1, 0
        %v524 = vcvt.s32.f32 %v508
        %v525 = vcvt.s32.f32 %v509
        %v526 = vcvt.s32.f32 %v510
        %v527 = vcvt.s32.f32 %v511
        %v528 = vcvt.s32.f32 %v512
        %v529 = vcvt.s32.f32 %v513
        %v530 = vcvt.s32.f32 %v514
        %v531 = vcvt.s32.f32 %v515
        %v532 = vcvt.s32.f32 %v516
        %v533 = vcvt.s32.f32 %v517
        %v534 = vcvt.s32.f32 %v518
        %v535 = vcvt.s32.f32 %v519
        %v536 = vcvt.s32.f32 %v520
        %v537 = vcvt.s32.f32 %v521
        %v538 = vcvt.s32.f32 %v522
        %v539 = vcvt.s32.f32 %v523
        %v540 = vpack.c.bf16 %v525, %v524
        %v541 = vpack.c.bf16 %v527, %v526
        %v542 = vpack.c.bf16 %v529, %v528
        %v543 = vpack.c.bf16 %v531, %v530
        %v544 = vpack.c.bf16 %v533, %v532
        %v545 = vpack.c.bf16 %v535, %v534
        %v546 = vpack.c.bf16 %v537, %v536
        %v547 = vpack.c.bf16 %v539, %v538
        %vm548 = vcmp.lt.f32.partialorder %v476, 0.0
        %vm549 = vcmp.lt.f32.partialorder %v477, 0.0
        %vm550 = vcmp.lt.f32.partialorder %v478, 0.0
        %vm551 = vcmp.lt.f32.partialorder %v479, 0.0
        %vm552 = vcmp.lt.f32.partialorder %v480, 0.0
        %vm553 = vcmp.lt.f32.partialorder %v481, 0.0
        %vm554 = vcmp.lt.f32.partialorder %v482, 0.0
        %vm555 = vcmp.lt.f32.partialorder %v483, 0.0
        %vm556 = vcmp.lt.f32.partialorder %v484, 0.0
        %vm557 = vcmp.lt.f32.partialorder %v485, 0.0
        %vm558 = vcmp.lt.f32.partialorder %v486, 0.0
        %vm559 = vcmp.lt.f32.partialorder %v487, 0.0
        %vm560 = vcmp.lt.f32.partialorder %v488, 0.0
        %vm561 = vcmp.lt.f32.partialorder %v489, 0.0
        %vm562 = vcmp.lt.f32.partialorder %v490, 0.0
        %vm563 = vcmp.lt.f32.partialorder %v491, 0.0
        %v564 = vsel %vm548, 1, 0
        %v565 = vsel %vm549, 1, 0
        %v566 = vsel %vm550, 1, 0
        %v567 = vsel %vm551, 1, 0
        %v568 = vsel %vm552, 1, 0
        %v569 = vsel %vm553, 1, 0
        %v570 = vsel %vm554, 1, 0
        %v571 = vsel %vm555, 1, 0
        %v572 = vsel %vm556, 1, 0
        %v573 = vsel %vm557, 1, 0
        %v574 = vsel %vm558, 1, 0
        %v575 = vsel %vm559, 1, 0
        %v576 = vsel %vm560, 1, 0
        %v577 = vsel %vm561, 1, 0
        %v578 = vsel %vm562, 1, 0
        %v579 = vsel %vm563, 1, 0
        %v580 = vcvt.s32.f32 %v564
        %v581 = vcvt.s32.f32 %v565
        %v582 = vcvt.s32.f32 %v566
        %v583 = vcvt.s32.f32 %v567
        %v584 = vcvt.s32.f32 %v568
        %v585 = vcvt.s32.f32 %v569
        %v586 = vcvt.s32.f32 %v570
        %v587 = vcvt.s32.f32 %v571
        %v588 = vcvt.s32.f32 %v572
        %v589 = vcvt.s32.f32 %v573
        %v590 = vcvt.s32.f32 %v574
        %v591 = vcvt.s32.f32 %v575
        %v592 = vcvt.s32.f32 %v576
        %v593 = vcvt.s32.f32 %v577
        %v594 = vcvt.s32.f32 %v578
        %v595 = vcvt.s32.f32 %v579
        %v596 = vpack.c.bf16 %v581, %v580
        %v597 = vpack.c.bf16 %v583, %v582
        %v598 = vpack.c.bf16 %v585, %v584
        %v599 = vpack.c.bf16 %v587, %v586
        %v600 = vpack.c.bf16 %v589, %v588
        %v601 = vpack.c.bf16 %v591, %v590
        %v602 = vpack.c.bf16 %v593, %v592
        %v603 = vpack.c.bf16 %v595, %v594
        %v604 = vsub.bf16 %v540, %v596
        %v605 = vsub.bf16 %v541, %v597
        %v606 = vsub.bf16 %v542, %v598
        %v607 = vsub.bf16 %v543, %v599
        %v608 = vsub.bf16 %v544, %v600
        %v609 = vsub.bf16 %v545, %v601
        %v610 = vsub.bf16 %v546, %v602
        %v611 = vsub.bf16 %v547, %v603
        %s612 = ssub.s32 %s450, 1
        %p613 = scmp.gt.s32.totalorder %s612, 0
        %s614 = scalar_select %p613, %s612, 0
        %s615 = smul.u32 %s614, 16
        %s616 = scalar_lea.vmem %s401, %s615 [#allocation2]
        %v617 = vld [vmem:[%s616] sm:$0xff]
        %v618 = vld [vmem:[%s616 + $0x8] sm:$0xff]
        %s619 = sadd.s32 %s450, 8
        %p620 = scmp.lt.s32.totalorder %s619, 15
        %s621 = scalar_select %p620, %s619, 15
        %s622 = smul.u32 %s621, 16
        %s623 = scalar_lea.vmem %s401, %s622 [#allocation2]
        %v624 = vld [vmem:[%s623] sm:$0xff]
        %v625 = vld [vmem:[%s623 + $0x8] sm:$0xff]
        %v626 = vadd.f32 %v617, %v474
        %v627 = vadd.f32 %v618, %v474
        %vm628 = vcmp.gt.f32.partialorder %v626, 0.0
        %vm629 = vcmp.gt.f32.partialorder %v627, 0.0
        %v630 = vsel %vm628, 1, 0
        %v631 = vsel %vm629, 1, 0
        %v632 = vcvt.s32.f32 %v630
        %v633 = vcvt.s32.f32 %v631
        %v634 = vpack.c.bf16 %v633, %v632
        %vm635 = vcmp.lt.f32.partialorder %v626, 0.0
        %vm636 = vcmp.lt.f32.partialorder %v627, 0.0
        %v637 = vsel %vm635, 1, 0
        %v638 = vsel %vm636, 1, 0
        %v639 = vcvt.s32.f32 %v637
        %v640 = vcvt.s32.f32 %v638
        %v641 = vpack.c.bf16 %v640, %v639
        %v642 = vsub.bf16 %v634, %v641
        %p643 = scmp.gt.s32.totalorder %s34, 0
        %s644 = scalar_select %p643, 1, 0
        %s645 = scvt.s32.f32 %s644
        %p647 = scmp.ne.f32.partialorder %s645, %s645
        %s648 = sshrl.u32 %s645, 16
        %s649 = sand.u32 %s648, 1
        %s650 = sadd.s32 32767, %s649
        %s651 = sadd.s32 %s645, %s650
        %s652 = sand.u32 %s651, 4294901760
        %s653 = scalar_select %p647, 2143289344, %s652
        %s655 = sshrl.u32 %s653, 16
        %s656 = sshll.u32 %s655, 16
        %s657 = sor.u32 %s655, %s656
        %v658 = vstv %s657
        %v660 = vmul.bf16 %v642, %v658
        %v661 = vadd.f32 %v624, %v474
        %v662 = vadd.f32 %v625, %v474
        %vm663 = vcmp.gt.f32.partialorder %v661, 0.0
        %vm664 = vcmp.gt.f32.partialorder %v662, 0.0
        %v665 = vsel %vm663, 1, 0
        %v666 = vsel %vm664, 1, 0
        %v667 = vcvt.s32.f32 %v665
        %v668 = vcvt.s32.f32 %v666
        %v669 = vpack.c.bf16 %v668, %v667
        %vm670 = vcmp.lt.f32.partialorder %v661, 0.0
        %vm671 = vcmp.lt.f32.partialorder %v662, 0.0
        %v672 = vsel %vm670, 1, 0
        %v673 = vsel %vm671, 1, 0
        %v674 = vcvt.s32.f32 %v672
        %v675 = vcvt.s32.f32 %v673
        %v676 = vpack.c.bf16 %v675, %v674
        %v677 = vsub.bf16 %v669, %v676
        %p678 = scmp.lt.s32.totalorder %s34, 1
        %s679 = scalar_select %p678, 1, 0
        %s680 = scvt.s32.f32 %s679
        %p682 = scmp.ne.f32.partialorder %s680, %s680
        %s683 = sshrl.u32 %s680, 16
        %s684 = sand.u32 %s683, 1
        %s685 = sadd.s32 32767, %s684
        %s686 = sadd.s32 %s680, %s685
        %s687 = sand.u32 %s686, 4294901760
        %s688 = scalar_select %p682, 2143289344, %s687
        %s690 = sshrl.u32 %s688, 16
        %s691 = sshll.u32 %s690, 16
        %s692 = sor.u32 %s690, %s691
        %v693 = vstv %s692
        %v695 = vmul.bf16 %v677, %v693
        %v697 = vshrl.u32 %v660, 16
        %v699 = vrot.slane %v697, 7
        %v700 = vshll.u32 %v660, 16
        %v702 = vor.u32 %v699, %v700
        %v704 = vshrl.u32 %v604, 16
        %v706 = vrot.slane %v704, 7
        %v707 = vshll.u32 %v604, 16
        %v709 = vor.u32 %v706, %v707
        %v711 = vshrl.u32 %v605, 16
        %v713 = vrot.slane %v711, 7
        %v714 = vshll.u32 %v605, 16
        %v716 = vor.u32 %v713, %v714
        %v718 = vshrl.u32 %v606, 16
        %v720 = vrot.slane %v718, 7
        %v721 = vshll.u32 %v606, 16
        %v723 = vor.u32 %v720, %v721
        %v725 = vshrl.u32 %v607, 16
        %v727 = vrot.slane %v725, 7
        %v728 = vshll.u32 %v607, 16
        %v730 = vor.u32 %v727, %v728
        %v732 = vshrl.u32 %v608, 16
        %v734 = vrot.slane %v732, 7
        %v735 = vshll.u32 %v608, 16
        %v737 = vor.u32 %v734, %v735
        %v739 = vshrl.u32 %v609, 16
        %v741 = vrot.slane %v739, 7
        %v742 = vshll.u32 %v609, 16
        %v744 = vor.u32 %v741, %v742
        %v746 = vshrl.u32 %v610, 16
        %v748 = vrot.slane %v746, 7
        %v749 = vshll.u32 %v610, 16
        %v751 = vor.u32 %v748, %v749
        %v753 = vshrl.u32 %v611, 16
        %v755 = vrot.slane %v753, 7
        %v756 = vshll.u32 %v611, 16
        %v758 = vor.u32 %v755, %v756
        %v760 = vshrl.u32 %v695, 16
        %v762 = vrot.slane %v760, 7
        %v763 = vshll.u32 %v695, 16
        %v765 = vor.u32 %v762, %v763
        %vm776 = vcmask 1040384
        %vm777 = vsmask.f32 256
        %vm778 = vmand %vm776, %vm777
        %v779 = vsel %vm778, 0, %v702
        %v780 = vsel %vm778, 0, %v709
        %v781 = vsel %vm778, 0, %v716
        %v782 = vsel %vm778, 0, %v723
        %v783 = vsel %vm778, 0, %v730
        %v784 = vsel %vm778, 0, %v737
        %v785 = vsel %vm778, 0, %v744
        %v786 = vsel %vm778, 0, %v751
        %v787 = vsel %vm778, 0, %v758
        %v788 = vsel %vm778, 0, %v765
        %v789 = vrot.slane %v700, 1
        %v790 = vor.u32 %v697, %v789
        %v791 = vrot.slane %v707, 1
        %v792 = vor.u32 %v704, %v791
        %v793 = vrot.slane %v714, 1
        %v794 = vor.u32 %v711, %v793
        %v795 = vrot.slane %v721, 1
        %v796 = vor.u32 %v718, %v795
        %v797 = vrot.slane %v728, 1
        %v798 = vor.u32 %v725, %v797
        %v799 = vrot.slane %v735, 1
        %v800 = vor.u32 %v732, %v799
        %v801 = vrot.slane %v742, 1
        %v802 = vor.u32 %v739, %v801
        %v803 = vrot.slane %v749, 1
        %v804 = vor.u32 %v746, %v803
        %v805 = vrot.slane %v756, 1
        %v806 = vor.u32 %v753, %v805
        %v807 = vrot.slane %v763, 1
        %v808 = vor.u32 %v760, %v807
        %vm819 = vcmask 1047552
        %vm820 = vsmask.f32 7424
        %vm821 = vmand %vm819, %vm820
        %v822 = vsel %vm821, %v790, 0
        %v823 = vsel %vm821, %v792, 0
        %v824 = vsel %vm821, %v794, 0
        %v825 = vsel %vm821, %v796, 0
        %v826 = vsel %vm821, %v798, 0
        %v827 = vsel %vm821, %v800, 0
        %v828 = vsel %vm821, %v802, 0
        %v829 = vsel %vm821, %v804, 0
        %v830 = vsel %vm821, %v806, 0
        %v831 = vsel %vm821, %v808, 0
        %s832 = scalar_lea.vmem [#allocation5], 192
        %v833 = vld [vmem:[%s832] sm:$0xf]
        %v834 = vld [vmem:[%s832 + $0x4] sm:$0xf]
        %v835 = vld [vmem:[%s832 + $0x8] sm:$0xf]
        %v836 = vld [vmem:[%s832 + $0xc] sm:$0xf]
        %v837 = vld [vmem:[%s832 + $0x10] sm:$0xf]
        %v838 = vld [vmem:[%s832 + $0x14] sm:$0xf]
        %v839 = vld [vmem:[%s832 + $0x18] sm:$0xf]
        %v840 = vld [vmem:[%s832 + $0x1c] sm:$0xf]
        %v841 = vld [vmem:[%s832 + $0x20] sm:$0xf]
        %v842 = vld [vmem:[%s832 + $0x24] sm:$0xf]
        %v843 = vld [vmem:[%s832 + $0x28] sm:$0xf]
        %v844 = vld [vmem:[%s832 + $0x2c] sm:$0xf]
        %v845 = vld [vmem:[%s832 + $0x30] sm:$0xf]
        %v846 = vld [vmem:[%s832 + $0x34] sm:$0xf]
        %v847 = vld [vmem:[%s832 + $0x38] sm:$0xf]
        %v848 = vld [vmem:[%s832 + $0x3c] sm:$0xf]
        %v849 = vld [vmem:[%s832 + $0x40] sm:$0xf]
        %v850 = vld [vmem:[%s832 + $0x44] sm:$0xf]
        %v851 = vld [vmem:[%s832 + $0x48] sm:$0xf]
        %v852 = vld [vmem:[%s832 + $0x4c] sm:$0xf]
        %v853 = vld [vmem:[%s832 + $0x50] sm:$0xf]
        %v854 = vld [vmem:[%s832 + $0x54] sm:$0xf]
        %v855 = vld [vmem:[%s832 + $0x58] sm:$0xf]
        %v856 = vld [vmem:[%s832 + $0x5c] sm:$0xf]
        %v857 = vld [vmem:[%s832 + $0x60] sm:$0xf]
        %v858 = vld [vmem:[%s832 + $0x64] sm:$0xf]
        %v859 = vld [vmem:[%s832 + $0x68] sm:$0xf]
        %v860 = vld [vmem:[%s832 + $0x6c] sm:$0xf]
        %v861 = vld [vmem:[%s832 + $0x70] sm:$0xf]
        %v862 = vld [vmem:[%s832 + $0x74] sm:$0xf]
        %v863 = vld [vmem:[%s832 + $0x78] sm:$0xf]
        %v864 = vld [vmem:[%s832 + $0x7c] sm:$0xf]
        %v865 = vld [vmem:[%s832 + $0x80] sm:$0xf]
        %v866 = vld [vmem:[%s832 + $0x84] sm:$0xf]
        %v867 = vld [vmem:[%s832 + $0x88] sm:$0xf]
        %v868 = vld [vmem:[%s832 + $0x8c] sm:$0xf]
        %v869 = vld [vmem:[%s832 + $0x90] sm:$0xf]
        %v870 = vld [vmem:[%s832 + $0x94] sm:$0xf]
        %v871 = vld [vmem:[%s832 + $0x98] sm:$0xf]
        %v872 = vld [vmem:[%s832 + $0x9c] sm:$0xf]
        %v873 = vld [vmem:[%s832 + $0xa0] sm:$0xf]
        %v874 = vld [vmem:[%s832 + $0xa4] sm:$0xf]
        %v875 = vld [vmem:[%s832 + $0xa8] sm:$0xf]
        %v876 = vld [vmem:[%s832 + $0xac] sm:$0xf]
        %v877 = vld [vmem:[%s832 + $0xb0] sm:$0xf]
        %v878 = vld [vmem:[%s832 + $0xb4] sm:$0xf]
        %v879 = vld [vmem:[%s832 + $0xb8] sm:$0xf]
        %v880 = vld [vmem:[%s832 + $0xbc] sm:$0xf]
        %v881 = vld [vmem:[#allocation5] sm:$0xf]
        %v882 = vld [vmem:[#allocation5 + $0x4] sm:$0xf]
        %v883 = vld [vmem:[#allocation5 + $0x8] sm:$0xf]
        %v884 = vld [vmem:[#allocation5 + $0xc] sm:$0xf]
        %v885 = vld [vmem:[#allocation5 + $0x10] sm:$0xf]
        %v886 = vld [vmem:[#allocation5 + $0x14] sm:$0xf]
        %v887 = vld [vmem:[#allocation5 + $0x18] sm:$0xf]
        %v888 = vld [vmem:[#allocation5 + $0x1c] sm:$0xf]
        %v889 = vld [vmem:[#allocation5 + $0x20] sm:$0xf]
        %v890 = vld [vmem:[#allocation5 + $0x24] sm:$0xf]
        %v891 = vld [vmem:[#allocation5 + $0x28] sm:$0xf]
        %v892 = vld [vmem:[#allocation5 + $0x2c] sm:$0xf]
        %v893 = vld [vmem:[#allocation5 + $0x30] sm:$0xf]
        %v894 = vld [vmem:[#allocation5 + $0x34] sm:$0xf]
        %v895 = vld [vmem:[#allocation5 + $0x38] sm:$0xf]
        %v896 = vld [vmem:[#allocation5 + $0x3c] sm:$0xf]
        %v897 = vld [vmem:[#allocation5 + $0x40] sm:$0xf]
        %v898 = vld [vmem:[#allocation5 + $0x44] sm:$0xf]
        %v899 = vld [vmem:[#allocation5 + $0x48] sm:$0xf]
        %v900 = vld [vmem:[#allocation5 + $0x4c] sm:$0xf]
        %v901 = vld [vmem:[#allocation5 + $0x50] sm:$0xf]
        %v902 = vld [vmem:[#allocation5 + $0x54] sm:$0xf]
        %v903 = vld [vmem:[#allocation5 + $0x58] sm:$0xf]
        %v904 = vld [vmem:[#allocation5 + $0x5c] sm:$0xf]
        %v905 = vld [vmem:[#allocation5 + $0x60] sm:$0xf]
        %v906 = vld [vmem:[#allocation5 + $0x64] sm:$0xf]
        %v907 = vld [vmem:[#allocation5 + $0x68] sm:$0xf]
        %v908 = vld [vmem:[#allocation5 + $0x6c] sm:$0xf]
        %v909 = vld [vmem:[#allocation5 + $0x70] sm:$0xf]
        %v910 = vld [vmem:[#allocation5 + $0x74] sm:$0xf]
        %v911 = vld [vmem:[#allocation5 + $0x78] sm:$0xf]
        %v912 = vld [vmem:[#allocation5 + $0x7c] sm:$0xf]
        %v913 = vld [vmem:[#allocation5 + $0x80] sm:$0xf]
        %v914 = vld [vmem:[#allocation5 + $0x84] sm:$0xf]
        %v915 = vld [vmem:[#allocation5 + $0x88] sm:$0xf]
        %v916 = vld [vmem:[#allocation5 + $0x8c] sm:$0xf]
        %v917 = vld [vmem:[#allocation5 + $0x90] sm:$0xf]
        %v918 = vld [vmem:[#allocation5 + $0x94] sm:$0xf]
        %v919 = vld [vmem:[#allocation5 + $0x98] sm:$0xf]
        %v920 = vld [vmem:[#allocation5 + $0x9c] sm:$0xf]
        %v921 = vld [vmem:[#allocation5 + $0xa0] sm:$0xf]
        %v922 = vld [vmem:[#allocation5 + $0xa4] sm:$0xf]
        %v923 = vld [vmem:[#allocation5 + $0xa8] sm:$0xf]
        %v924 = vld [vmem:[#allocation5 + $0xac] sm:$0xf]
        %v925 = vld [vmem:[#allocation5 + $0xb0] sm:$0xf]
        %v926 = vld [vmem:[#allocation5 + $0xb4] sm:$0xf]
        %v927 = vld [vmem:[#allocation5 + $0xb8] sm:$0xf]
        %v928 = vld [vmem:[#allocation5 + $0xbc] sm:$0xf]
        %v977 = vunpack.c.l.b16 %v881
        %v978 = vunpack.c.l.b16 %v882
        %v979 = vunpack.c.l.b16 %v883
        %v980 = vunpack.c.l.b16 %v884
        %v981 = vunpack.c.l.b16 %v885
        %v982 = vunpack.c.l.b16 %v886
        %v983 = vunpack.c.l.b16 %v887
        %v984 = vunpack.c.l.b16 %v888
        %v985 = vunpack.c.l.b16 %v889
        %v986 = vunpack.c.l.b16 %v890
        %v987 = vunpack.c.l.b16 %v891
        %v988 = vunpack.c.l.b16 %v892
        %v989 = vunpack.c.l.b16 %v893
        %v990 = vunpack.c.l.b16 %v894
        %v991 = vunpack.c.l.b16 %v895
        %v992 = vunpack.c.l.b16 %v896
        %v993 = vunpack.c.l.b16 %v897
        %v994 = vunpack.c.l.b16 %v898
        %v995 = vunpack.c.l.b16 %v899
        %v996 = vunpack.c.l.b16 %v900
        %v997 = vunpack.c.l.b16 %v901
        %v998 = vunpack.c.l.b16 %v902
        %v999 = vunpack.c.l.b16 %v903
        %v1000 = vunpack.c.l.b16 %v904
        %v1001 = vunpack.c.l.b16 %v905
        %v1002 = vunpack.c.l.b16 %v906
        %v1003 = vunpack.c.l.b16 %v907
        %v1004 = vunpack.c.l.b16 %v908
        %v1005 = vunpack.c.l.b16 %v909
        %v1006 = vunpack.c.l.b16 %v910
        %v1007 = vunpack.c.l.b16 %v911
        %v1008 = vunpack.c.l.b16 %v912
        %v1009 = vunpack.c.l.b16 %v913
        %v1010 = vunpack.c.l.b16 %v914
        %v1011 = vunpack.c.l.b16 %v915
        %v1012 = vunpack.c.l.b16 %v916
        %v1013 = vunpack.c.l.b16 %v917
        %v1014 = vunpack.c.l.b16 %v918
        %v1015 = vunpack.c.l.b16 %v919
        %v1016 = vunpack.c.l.b16 %v920
        %v1017 = vunpack.c.l.b16 %v921
        %v1018 = vunpack.c.l.b16 %v922
        %v1019 = vunpack.c.l.b16 %v923
        %v1020 = vunpack.c.l.b16 %v924
        %v1021 = vunpack.c.l.b16 %v925
        %v1022 = vunpack.c.l.b16 %v926
        %v1023 = vunpack.c.l.b16 %v927
        %v1024 = vunpack.c.l.b16 %v928
        %v1025 = vpack.c.b16 %v978, %v977
        %v1026 = vpack.c.b16 %v980, %v979
        %v1027 = vpack.c.b16 %v982, %v981
        %v1028 = vpack.c.b16 %v984, %v983
        %v1029 = vpack.c.b16 %v986, %v985
        %v1030 = vpack.c.b16 %v988, %v987
        %v1031 = vpack.c.b16 %v990, %v989
        %v1032 = vpack.c.b16 %v992, %v991
        %v1033 = vpack.c.b16 %v994, %v993
        %v1034 = vpack.c.b16 %v996, %v995
        %v1035 = vpack.c.b16 %v998, %v997
        %v1036 = vpack.c.b16 %v1000, %v999
        %v1037 = vpack.c.b16 %v1002, %v1001
        %v1038 = vpack.c.b16 %v1004, %v1003
        %v1039 = vpack.c.b16 %v1006, %v1005
        %v1040 = vpack.c.b16 %v1008, %v1007
        %v1041 = vpack.c.b16 %v1010, %v1009
        %v1042 = vpack.c.b16 %v1012, %v1011
        %v1043 = vpack.c.b16 %v1014, %v1013
        %v1044 = vpack.c.b16 %v1016, %v1015
        %v1045 = vpack.c.b16 %v1018, %v1017
        %v1046 = vpack.c.b16 %v1020, %v1019
        %v1047 = vpack.c.b16 %v1022, %v1021
        %v1048 = vpack.c.b16 %v1024, %v1023
        %1073 = vmatprep.subr.bf16.mxu0 0
        %1074 = vmatpush1.bf16.msra.mxu0 %v1025
        %1075 = vmatprep.subr.bf16.mxu0 0
        %1076 = vmatpush1.bf16.msra.mxu0 %v1026
        %1077 = vmatprep.subr.bf16.mxu0 0
        %1078 = vmatpush1.bf16.msra.mxu0 %v1027
        %1079 = vmatprep.subr.bf16.mxu0 0
        %1080 = vmatpush1.bf16.msra.mxu0 %v1028
        %1081 = vmatprep.subr.bf16.mxu0 0
        %1082 = vmatpush1.bf16.msra.mxu0 %v1029
        %1083 = vmatprep.subr.bf16.mxu0 0
        %1084 = vmatpush1.bf16.msra.mxu0 %v1030
        %1085 = vmatprep.subr.bf16.mxu0 0
        %1086 = vmatpush1.bf16.msra.mxu0 %v1031
        %1087 = vmatprep.subr.bf16.mxu0 0
        %1088 = vmatpush1.bf16.msra.mxu0 %v1032
        %1089 = vmatprep.subr.bf16.mxu0 0
        %1090 = vmatpush1.bf16.msra.mxu0 %v1033
        %1091 = vmatprep.subr.bf16.mxu0 0
        %1092 = vmatpush1.bf16.msra.mxu0 %v1034
        %1093 = vmatprep.subr.bf16.mxu0 0
        %1094 = vmatpush1.bf16.msra.mxu0 %v1035
        %1095 = vmatprep.subr.bf16.mxu0 0
        %1096 = vmatpush1.bf16.msra.mxu0 %v1036
        %1097 = vmatprep.subr.bf16.mxu0 0
        %1098 = vmatpush1.bf16.msra.mxu0 %v1037
        %1099 = vmatprep.subr.bf16.mxu0 0
        %1100 = vmatpush1.bf16.msra.mxu0 %v1038
        %1101 = vmatprep.subr.bf16.mxu0 0
        %1102 = vmatpush1.bf16.msra.mxu0 %v1039
        %1103 = vmatprep.subr.bf16.mxu0 0
        %1104 = vmatpush1.bf16.msra.mxu0 %v1040
        %1105 = vmatprep.mubr.bf16.mxu0 %v660
        %1106 = vmatmul.mubr.bf16.gmra.mrb[0].mxu0 %v779
        %v1107 = vpop.f32.mrb[0].mxu0
        %v1108 = vadd.f32 0.0, %v1107
        %v1109 = vpop.f32.mrb[0].mxu0
        %v1110 = vpop.f32.mrb[0].mxu0
        %v1111 = vadd.f32 0.0, %v1110
        %v1112 = vpop.f32.mrb[0].mxu0
        %1113 = vmatprep.mubr.bf16.mxu0 %v604
        %1114 = vmatmul.mubr.bf16.gmra.mrb[0].mxu0 %v780
        %v1115 = vpop.f32.mrb[0].mxu0
        %v1116 = vadd.f32 0.0, %v1115
        %v1117 = vpop.f32.mrb[0].mxu0
        %v1118 = vpop.f32.mrb[0].mxu0
        %v1119 = vadd.f32 0.0, %v1118
        %v1120 = vpop.f32.mrb[0].mxu0
        %1121 = vmatprep.mubr.bf16.mxu0 %v605
        %1122 = vmatmul.mubr.bf16.gmra.mrb[0].mxu0 %v781
        %v1123 = vpop.f32.mrb[0].mxu0
        %v1124 = vadd.f32 0.0, %v1123
        %v1125 = vpop.f32.mrb[0].mxu0
        %v1126 = vpop.f32.mrb[0].mxu0
        %v1127 = vadd.f32 0.0, %v1126
        %v1128 = vpop.f32.mrb[0].mxu0
        %1129 = vmatprep.mubr.bf16.mxu0 %v606
        %1130 = vmatmul.mubr.bf16.gmra.mrb[0].mxu0 %v782
        %v1131 = vpop.f32.mrb[0].mxu0
        %v1132 = vadd.f32 0.0, %v1131
        %v1133 = vpop.f32.mrb[0].mxu0
        %v1134 = vpop.f32.mrb[0].mxu0
        %v1135 = vadd.f32 0.0, %v1134
        %v1136 = vpop.f32.mrb[0].mxu0
        %1137 = vmatprep.mubr.bf16.mxu0 %v607
        %1138 = vmatmul.mubr.bf16.gmra.mrb[0].mxu0 %v783
        %v1139 = vpop.f32.mrb[0].mxu0
        %v1140 = vadd.f32 0.0, %v1139
        %v1141 = vpop.f32.mrb[0].mxu0
        %v1142 = vpop.f32.mrb[0].mxu0
        %v1143 = vadd.f32 0.0, %v1142
        %v1144 = vpop.f32.mrb[0].mxu0
        %1145 = vmatprep.mubr.bf16.mxu0 %v608
        %1146 = vmatmul.mubr.bf16.gmra.mrb[0].mxu0 %v784
        %v1147 = vpop.f32.mrb[0].mxu0
        %v1148 = vadd.f32 0.0, %v1147
        %v1149 = vpop.f32.mrb[0].mxu0
        %v1150 = vpop.f32.mrb[0].mxu0
        %v1151 = vadd.f32 0.0, %v1150
        %v1152 = vpop.f32.mrb[0].mxu0
        %1153 = vmatprep.mubr.bf16.mxu0 %v609
        %1154 = vmatmul.mubr.bf16.gmra.mrb[0].mxu0 %v785
        %v1155 = vpop.f32.mrb[0].mxu0
        %v1156 = vadd.f32 0.0, %v1155
        %v1157 = vpop.f32.mrb[0].mxu0
        %v1158 = vpop.f32.mrb[0].mxu0
        %v1159 = vadd.f32 0.0, %v1158
        %v1160 = vpop.f32.mrb[0].mxu0
        %1161 = vmatprep.mubr.bf16.mxu0 %v610
        %1162 = vmatmul.mubr.bf16.gmra.mrb[0].mxu0 %v786
        %v1163 = vpop.f32.mrb[0].mxu0
        %v1164 = vadd.f32 0.0, %v1163
        %v1165 = vpop.f32.mrb[0].mxu0
        %v1166 = vpop.f32.mrb[0].mxu0
        %v1167 = vadd.f32 0.0, %v1166
        %v1168 = vpop.f32.mrb[0].mxu0
        %1169 = vdwg.mxu0
        %1170 = vmatprep.subr.bf16.mxu0 0
        %1171 = vmatpush1.bf16.msra.mxu0 %v1041
        %1172 = vmatprep.subr.bf16.mxu0 0
        %1173 = vmatpush1.bf16.msra.mxu0 %v1042
        %1174 = vmatprep.subr.bf16.mxu0 0
        %1175 = vmatpush1.bf16.msra.mxu0 %v1043
        %1176 = vmatprep.subr.bf16.mxu0 0
        %1177 = vmatpush1.bf16.msra.mxu0 %v1044
        %1178 = vmatprep.subr.bf16.mxu0 0
        %1179 = vmatpush1.bf16.msra.mxu0 %v1045
        %1180 = vmatprep.subr.bf16.mxu0 0
        %1181 = vmatpush1.bf16.msra.mxu0 %v1046
        %1182 = vmatprep.subr.bf16.mxu0 0
        %1183 = vmatpush1.bf16.msra.mxu0 %v1047
        %1184 = vmatprep.subr.bf16.mxu0 0
        %1185 = vmatpush1.bf16.msra.mxu0 %v1048
        %1186 = vmatprep.subr.bf16.mxu0 0
        %1187 = vmatpush1.bf16.msra.mxu0 0
        %1188 = vmatprep.subr.bf16.mxu0 0
        %1189 = vmatpush1.bf16.msra.mxu0 0
        %1190 = vmatprep.subr.bf16.mxu0 0
        %1191 = vmatpush1.bf16.msra.mxu0 0
        %1192 = vmatprep.subr.bf16.mxu0 0
        %1193 = vmatpush1.bf16.msra.mxu0 0
        %1194 = vmatprep.subr.bf16.mxu0 0
        %1195 = vmatpush1.bf16.msra.mxu0 0
        %1196 = vmatprep.subr.bf16.mxu0 0
        %1197 = vmatpush1.bf16.msra.mxu0 0
        %1198 = vmatprep.subr.bf16.mxu0 0
        %1199 = vmatpush1.bf16.msra.mxu0 0
        %1200 = vmatprep.subr.bf16.mxu0 0
        %1201 = vmatpush1.bf16.msra.mxu0 0
        %1202 = vmatprep.mubr.bf16.mxu0 0
        %1203 = vmatmul.mubr.bf16.gmra.mrb[0].mxu0 %v822
        %v1204 = vpop.f32.mrb[0].mxu0
        %v1205 = vadd.f32 %v1108, %v1204
        %v1206 = vpop.f32.mrb[0].mxu0
        %v1207 = vpop.f32.mrb[0].mxu0
        %v1208 = vadd.f32 %v1111, %v1207
        %v1209 = vpop.f32.mrb[0].mxu0
        %1210 = vmatprep.mubr.bf16.mxu0 0
        %1211 = vmatmul.mubr.bf16.gmra.mrb[0].mxu0 %v823
        %v1212 = vpop.f32.mrb[0].mxu0
        %v1213 = vadd.f32 %v1116, %v1212
        %v1214 = vpop.f32.mrb[0].mxu0
        %v1215 = vpop.f32.mrb[0].mxu0
        %v1216 = vadd.f32 %v1119, %v1215
        %v1217 = vpop.f32.mrb[0].mxu0
        %1218 = vmatprep.mubr.bf16.mxu0 0
        %1219 = vmatmul.mubr.bf16.gmra.mrb[0].mxu0 %v824
        %v1220 = vpop.f32.mrb[0].mxu0
        %v1221 = vadd.f32 %v1124, %v1220
        %v1222 = vpop.f32.mrb[0].mxu0
        %v1223 = vpop.f32.mrb[0].mxu0
        %v1224 = vadd.f32 %v1127, %v1223
        %v1225 = vpop.f32.mrb[0].mxu0
        %1226 = vmatprep.mubr.bf16.mxu0 0
        %1227 = vmatmul.mubr.bf16.gmra.mrb[0].mxu0 %v825
        %v1228 = vpop.f32.mrb[0].mxu0
        %v1229 = vadd.f32 %v1132, %v1228
        %v1230 = vpop.f32.mrb[0].mxu0
        %v1231 = vpop.f32.mrb[0].mxu0
        %v1232 = vadd.f32 %v1135, %v1231
        %v1233 = vpop.f32.mrb[0].mxu0
        %1234 = vmatprep.mubr.bf16.mxu0 0
        %1235 = vmatmul.mubr.bf16.gmra.mrb[0].mxu0 %v826
        %v1236 = vpop.f32.mrb[0].mxu0
        %v1237 = vadd.f32 %v1140, %v1236
        %v1238 = vpop.f32.mrb[0].mxu0
        %v1239 = vpop.f32.mrb[0].mxu0
        %v1240 = vadd.f32 %v1143, %v1239
        %v1241 = vpop.f32.mrb[0].mxu0
        %1242 = vmatprep.mubr.bf16.mxu0 0
        %1243 = vmatmul.mubr.bf16.gmra.mrb[0].mxu0 %v827
        %v1244 = vpop.f32.mrb[0].mxu0
        %v1245 = vadd.f32 %v1148, %v1244
        %v1246 = vpop.f32.mrb[0].mxu0
        %v1247 = vpop.f32.mrb[0].mxu0
        %v1248 = vadd.f32 %v1151, %v1247
        %v1249 = vpop.f32.mrb[0].mxu0
        %1250 = vmatprep.mubr.bf16.mxu0 0
        %1251 = vmatmul.mubr.bf16.gmra.mrb[0].mxu0 %v828
        %v1252 = vpop.f32.mrb[0].mxu0
        %v1253 = vadd.f32 %v1156, %v1252
        %v1254 = vpop.f32.mrb[0].mxu0
        %v1255 = vpop.f32.mrb[0].mxu0
        %v1256 = vadd.f32 %v1159, %v1255
        %v1257 = vpop.f32.mrb[0].mxu0
        %1258 = vmatprep.mubr.bf16.mxu0 0
        %1259 = vmatmul.mubr.bf16.gmra.mrb[0].mxu0 %v829
        %v1260 = vpop.f32.mrb[0].mxu0
        %v1261 = vadd.f32 %v1164, %v1260
        %v1262 = vpop.f32.mrb[0].mxu0
        %v1263 = vpop.f32.mrb[0].mxu0
        %v1264 = vadd.f32 %v1167, %v1263
        %v1265 = vpop.f32.mrb[0].mxu0
        %1266 = vdwg.mxu0
        %v1315 = vunpack.c.l.b16 %v833
        %v1316 = vunpack.c.l.b16 %v834
        %v1317 = vunpack.c.l.b16 %v835
        %v1318 = vunpack.c.l.b16 %v836
        %v1319 = vunpack.c.l.b16 %v837
        %v1320 = vunpack.c.l.b16 %v838
        %v1321 = vunpack.c.l.b16 %v839
        %v1322 = vunpack.c.l.b16 %v840
        %v1323 = vunpack.c.l.b16 %v841
        %v1324 = vunpack.c.l.b16 %v842
        %v1325 = vunpack.c.l.b16 %v843
        %v1326 = vunpack.c.l.b16 %v844
        %v1327 = vunpack.c.l.b16 %v845
        %v1328 = vunpack.c.l.b16 %v846
        %v1329 = vunpack.c.l.b16 %v847
        %v1330 = vunpack.c.l.b16 %v848
        %v1331 = vunpack.c.l.b16 %v849
        %v1332 = vunpack.c.l.b16 %v850
        %v1333 = vunpack.c.l.b16 %v851
        %v1334 = vunpack.c.l.b16 %v852
        %v1335 = vunpack.c.l.b16 %v853
        %v1336 = vunpack.c.l.b16 %v854
        %v1337 = vunpack.c.l.b16 %v855
        %v1338 = vunpack.c.l.b16 %v856
        %v1339 = vunpack.c.l.b16 %v857
        %v1340 = vunpack.c.l.b16 %v858
        %v1341 = vunpack.c.l.b16 %v859
        %v1342 = vunpack.c.l.b16 %v860
        %v1343 = vunpack.c.l.b16 %v861
        %v1344 = vunpack.c.l.b16 %v862
        %v1345 = vunpack.c.l.b16 %v863
        %v1346 = vunpack.c.l.b16 %v864
        %v1347 = vunpack.c.l.b16 %v865
        %v1348 = vunpack.c.l.b16 %v866
        %v1349 = vunpack.c.l.b16 %v867
        %v1350 = vunpack.c.l.b16 %v868
        %v1351 = vunpack.c.l.b16 %v869
        %v1352 = vunpack.c.l.b16 %v870
        %v1353 = vunpack.c.l.b16 %v871
        %v1354 = vunpack.c.l.b16 %v872
        %v1355 = vunpack.c.l.b16 %v873
        %v1356 = vunpack.c.l.b16 %v874
        %v1357 = vunpack.c.l.b16 %v875
        %v1358 = vunpack.c.l.b16 %v876
        %v1359 = vunpack.c.l.b16 %v877
        %v1360 = vunpack.c.l.b16 %v878
        %v1361 = vunpack.c.l.b16 %v879
        %v1362 = vunpack.c.l.b16 %v880
        %v1363 = vpack.c.b16 %v1316, %v1315
        %v1364 = vpack.c.b16 %v1318, %v1317
        %v1365 = vpack.c.b16 %v1320, %v1319
        %v1366 = vpack.c.b16 %v1322, %v1321
        %v1367 = vpack.c.b16 %v1324, %v1323
        %v1368 = vpack.c.b16 %v1326, %v1325
        %v1369 = vpack.c.b16 %v1328, %v1327
        %v1370 = vpack.c.b16 %v1330, %v1329
        %v1371 = vpack.c.b16 %v1332, %v1331
        %v1372 = vpack.c.b16 %v1334, %v1333
        %v1373 = vpack.c.b16 %v1336, %v1335
        %v1374 = vpack.c.b16 %v1338, %v1337
        %v1375 = vpack.c.b16 %v1340, %v1339
        %v1376 = vpack.c.b16 %v1342, %v1341
        %v1377 = vpack.c.b16 %v1344, %v1343
        %v1378 = vpack.c.b16 %v1346, %v1345
        %v1379 = vpack.c.b16 %v1348, %v1347
        %v1380 = vpack.c.b16 %v1350, %v1349
        %v1381 = vpack.c.b16 %v1352, %v1351
        %v1382 = vpack.c.b16 %v1354, %v1353
        %v1383 = vpack.c.b16 %v1356, %v1355
        %v1384 = vpack.c.b16 %v1358, %v1357
        %v1385 = vpack.c.b16 %v1360, %v1359
        %v1386 = vpack.c.b16 %v1362, %v1361
        %1411 = vmatprep.subr.bf16.mxu0 0
        %1412 = vmatpush1.bf16.msra.mxu0 %v1363
        %1413 = vmatprep.subr.bf16.mxu0 0
        %1414 = vmatpush1.bf16.msra.mxu0 %v1364
        %1415 = vmatprep.subr.bf16.mxu0 0
        %1416 = vmatpush1.bf16.msra.mxu0 %v1365
        %1417 = vmatprep.subr.bf16.mxu0 0
        %1418 = vmatpush1.bf16.msra.mxu0 %v1366
        %1419 = vmatprep.subr.bf16.mxu0 0
        %1420 = vmatpush1.bf16.msra.mxu0 %v1367
        %1421 = vmatprep.subr.bf16.mxu0 0
        %1422 = vmatpush1.bf16.msra.mxu0 %v1368
        %1423 = vmatprep.subr.bf16.mxu0 0
        %1424 = vmatpush1.bf16.msra.mxu0 %v1369
        %1425 = vmatprep.subr.bf16.mxu0 0
        %1426 = vmatpush1.bf16.msra.mxu0 %v1370
        %1427 = vmatprep.subr.bf16.mxu0 0
        %1428 = vmatpush1.bf16.msra.mxu0 %v1371
        %1429 = vmatprep.subr.bf16.mxu0 0
        %1430 = vmatpush1.bf16.msra.mxu0 %v1372
        %1431 = vmatprep.subr.bf16.mxu0 0
        %1432 = vmatpush1.bf16.msra.mxu0 %v1373
        %1433 = vmatprep.subr.bf16.mxu0 0
        %1434 = vmatpush1.bf16.msra.mxu0 %v1374
        %1435 = vmatprep.subr.bf16.mxu0 0
        %1436 = vmatpush1.bf16.msra.mxu0 %v1375
        %1437 = vmatprep.subr.bf16.mxu0 0
        %1438 = vmatpush1.bf16.msra.mxu0 %v1376
        %1439 = vmatprep.subr.bf16.mxu0 0
        %1440 = vmatpush1.bf16.msra.mxu0 %v1377
        %1441 = vmatprep.subr.bf16.mxu0 0
        %1442 = vmatpush1.bf16.msra.mxu0 %v1378
        %1443 = vmatprep.mubr.bf16.mxu0 %v604
        %1444 = vmatmul.mubr.bf16.gmra.mrb[0].mxu0 %v780
        %v1445 = vpop.f32.mrb[0].mxu0
        %v1446 = vadd.f32 %v1205, %v1445
        %v1447 = vpop.f32.mrb[0].mxu0
        %v1448 = vpop.f32.mrb[0].mxu0
        %v1449 = vadd.f32 %v1208, %v1448
        %v1450 = vpop.f32.mrb[0].mxu0
        %1451 = vmatprep.mubr.bf16.mxu0 %v605
        %1452 = vmatmul.mubr.bf16.gmra.mrb[0].mxu0 %v781
        %v1453 = vpop.f32.mrb[0].mxu0
        %v1454 = vadd.f32 %v1213, %v1453
        %v1455 = vpop.f32.mrb[0].mxu0
        %v1456 = vpop.f32.mrb[0].mxu0
        %v1457 = vadd.f32 %v1216, %v1456
        %v1458 = vpop.f32.mrb[0].mxu0
        %1459 = vmatprep.mubr.bf16.mxu0 %v606
        %1460 = vmatmul.mubr.bf16.gmra.mrb[0].mxu0 %v782
        %v1461 = vpop.f32.mrb[0].mxu0
        %v1462 = vadd.f32 %v1221, %v1461
        %v1463 = vpop.f32.mrb[0].mxu0
        %v1464 = vpop.f32.mrb[0].mxu0
        %v1465 = vadd.f32 %v1224, %v1464
        %v1466 = vpop.f32.mrb[0].mxu0
        %1467 = vmatprep.mubr.bf16.mxu0 %v607
        %1468 = vmatmul.mubr.bf16.gmra.mrb[0].mxu0 %v783
        %v1469 = vpop.f32.mrb[0].mxu0
        %v1470 = vadd.f32 %v1229, %v1469
        %v1471 = vpop.f32.mrb[0].mxu0
        %v1472 = vpop.f32.mrb[0].mxu0
        %v1473 = vadd.f32 %v1232, %v1472
        %v1474 = vpop.f32.mrb[0].mxu0
        %1475 = vmatprep.mubr.bf16.mxu0 %v608
        %1476 = vmatmul.mubr.bf16.gmra.mrb[0].mxu0 %v784
        %v1477 = vpop.f32.mrb[0].mxu0
        %v1478 = vadd.f32 %v1237, %v1477
        %v1479 = vpop.f32.mrb[0].mxu0
        %v1480 = vpop.f32.mrb[0].mxu0
        %v1481 = vadd.f32 %v1240, %v1480
        %v1482 = vpop.f32.mrb[0].mxu0
        %1483 = vmatprep.mubr.bf16.mxu0 %v609
        %1484 = vmatmul.mubr.bf16.gmra.mrb[0].mxu0 %v785
        %v1485 = vpop.f32.mrb[0].mxu0
        %v1486 = vadd.f32 %v1245, %v1485
        %v1487 = vpop.f32.mrb[0].mxu0
        %v1488 = vpop.f32.mrb[0].mxu0
        %v1489 = vadd.f32 %v1248, %v1488
        %v1490 = vpop.f32.mrb[0].mxu0
        %1491 = vmatprep.mubr.bf16.mxu0 %v610
        %1492 = vmatmul.mubr.bf16.gmra.mrb[0].mxu0 %v786
        %v1493 = vpop.f32.mrb[0].mxu0
        %v1494 = vadd.f32 %v1253, %v1493
        %v1495 = vpop.f32.mrb[0].mxu0
        %v1496 = vpop.f32.mrb[0].mxu0
        %v1497 = vadd.f32 %v1256, %v1496
        %v1498 = vpop.f32.mrb[0].mxu0
        %1499 = vmatprep.mubr.bf16.mxu0 %v611
        %1500 = vmatmul.mubr.bf16.gmra.mrb[0].mxu0 %v787
        %v1501 = vpop.f32.mrb[0].mxu0
        %v1502 = vadd.f32 %v1261, %v1501
        %v1503 = vpop.f32.mrb[0].mxu0
        %v1504 = vpop.f32.mrb[0].mxu0
        %v1505 = vadd.f32 %v1264, %v1504
        %v1506 = vpop.f32.mrb[0].mxu0
        %1507 = vdwg.mxu0
        %1508 = vmatprep.subr.bf16.mxu0 0
        %1509 = vmatpush1.bf16.msra.mxu0 %v1379
        %1510 = vmatprep.subr.bf16.mxu0 0
        %1511 = vmatpush1.bf16.msra.mxu0 %v1380
        %1512 = vmatprep.subr.bf16.mxu0 0
        %1513 = vmatpush1.bf16.msra.mxu0 %v1381
        %1514 = vmatprep.subr.bf16.mxu0 0
        %1515 = vmatpush1.bf16.msra.mxu0 %v1382
        %1516 = vmatprep.subr.bf16.mxu0 0
        %1517 = vmatpush1.bf16.msra.mxu0 %v1383
        %1518 = vmatprep.subr.bf16.mxu0 0
        %1519 = vmatpush1.bf16.msra.mxu0 %v1384
        %1520 = vmatprep.subr.bf16.mxu0 0
        %1521 = vmatpush1.bf16.msra.mxu0 %v1385
        %1522 = vmatprep.subr.bf16.mxu0 0
        %1523 = vmatpush1.bf16.msra.mxu0 %v1386
        %1524 = vmatprep.subr.bf16.mxu0 0
        %1525 = vmatpush1.bf16.msra.mxu0 0
        %1526 = vmatprep.subr.bf16.mxu0 0
        %1527 = vmatpush1.bf16.msra.mxu0 0
        %1528 = vmatprep.subr.bf16.mxu0 0
        %1529 = vmatpush1.bf16.msra.mxu0 0
        %1530 = vmatprep.subr.bf16.mxu0 0
        %1531 = vmatpush1.bf16.msra.mxu0 0
        %1532 = vmatprep.subr.bf16.mxu0 0
        %1533 = vmatpush1.bf16.msra.mxu0 0
        %1534 = vmatprep.subr.bf16.mxu0 0
        %1535 = vmatpush1.bf16.msra.mxu0 0
        %1536 = vmatprep.subr.bf16.mxu0 0
        %1537 = vmatpush1.bf16.msra.mxu0 0
        %1538 = vmatprep.subr.bf16.mxu0 0
        %1539 = vmatpush1.bf16.msra.mxu0 0
        %1540 = vmatprep.mubr.bf16.mxu0 0
        %1541 = vmatmul.mubr.bf16.gmra.mrb[0].mxu0 %v823
        %v1542 = vpop.f32.mrb[0].mxu0
        %v1543 = vadd.f32 %v1446, %v1542
        %v1544 = vpop.f32.mrb[0].mxu0
        %v1545 = vpop.f32.mrb[0].mxu0
        %v1546 = vadd.f32 %v1449, %v1545
        %v1547 = vpop.f32.mrb[0].mxu0
        %1548 = vmatprep.mubr.bf16.mxu0 0
        %1549 = vmatmul.mubr.bf16.gmra.mrb[0].mxu0 %v824
        %v1550 = vpop.f32.mrb[0].mxu0
        %v1551 = vadd.f32 %v1454, %v1550
        %v1552 = vpop.f32.mrb[0].mxu0
        %v1553 = vpop.f32.mrb[0].mxu0
        %v1554 = vadd.f32 %v1457, %v1553
        %v1555 = vpop.f32.mrb[0].mxu0
        %1556 = vmatprep.mubr.bf16.mxu0 0
        %1557 = vmatmul.mubr.bf16.gmra.mrb[0].mxu0 %v825
        %v1558 = vpop.f32.mrb[0].mxu0
        %v1559 = vadd.f32 %v1462, %v1558
        %v1560 = vpop.f32.mrb[0].mxu0
        %v1561 = vpop.f32.mrb[0].mxu0
        %v1562 = vadd.f32 %v1465, %v1561
        %v1563 = vpop.f32.mrb[0].mxu0
        %1564 = vmatprep.mubr.bf16.mxu0 0
        %1565 = vmatmul.mubr.bf16.gmra.mrb[0].mxu0 %v826
        %v1566 = vpop.f32.mrb[0].mxu0
        %v1567 = vadd.f32 %v1470, %v1566
        %v1568 = vpop.f32.mrb[0].mxu0
        %v1569 = vpop.f32.mrb[0].mxu0
        %v1570 = vadd.f32 %v1473, %v1569
        %v1571 = vpop.f32.mrb[0].mxu0
        %1572 = vmatprep.mubr.bf16.mxu0 0
        %1573 = vmatmul.mubr.bf16.gmra.mrb[0].mxu0 %v827
        %v1574 = vpop.f32.mrb[0].mxu0
        %v1575 = vadd.f32 %v1478, %v1574
        %v1576 = vpop.f32.mrb[0].mxu0
        %v1577 = vpop.f32.mrb[0].mxu0
        %v1578 = vadd.f32 %v1481, %v1577
        %v1579 = vpop.f32.mrb[0].mxu0
        %1580 = vmatprep.mubr.bf16.mxu0 0
        %1581 = vmatmul.mubr.bf16.gmra.mrb[0].mxu0 %v828
        %v1582 = vpop.f32.mrb[0].mxu0
        %v1583 = vadd.f32 %v1486, %v1582
        %v1584 = vpop.f32.mrb[0].mxu0
        %v1585 = vpop.f32.mrb[0].mxu0
        %v1586 = vadd.f32 %v1489, %v1585
        %v1587 = vpop.f32.mrb[0].mxu0
        %1588 = vmatprep.mubr.bf16.mxu0 0
        %1589 = vmatmul.mubr.bf16.gmra.mrb[0].mxu0 %v829
        %v1590 = vpop.f32.mrb[0].mxu0
        %v1591 = vadd.f32 %v1494, %v1590
        %v1592 = vpop.f32.mrb[0].mxu0
        %v1593 = vpop.f32.mrb[0].mxu0
        %v1594 = vadd.f32 %v1497, %v1593
        %v1595 = vpop.f32.mrb[0].mxu0
        %1596 = vmatprep.mubr.bf16.mxu0 0
        %1597 = vmatmul.mubr.bf16.gmra.mrb[0].mxu0 %v830
        %v1598 = vpop.f32.mrb[0].mxu0
        %v1599 = vadd.f32 %v1502, %v1598
        %v1600 = vpop.f32.mrb[0].mxu0
        %v1601 = vpop.f32.mrb[0].mxu0
        %v1602 = vadd.f32 %v1505, %v1601
        %v1603 = vpop.f32.mrb[0].mxu0
        %1604 = vdwg.mxu0
        %s1605 = scalar_lea.vmem [#allocation5], 384
        %v1606 = vld [vmem:[%s1605] sm:$0xf]
        %v1607 = vld [vmem:[%s1605 + $0x4] sm:$0xf]
        %v1608 = vld [vmem:[%s1605 + $0x8] sm:$0xf]
        %v1609 = vld [vmem:[%s1605 + $0xc] sm:$0xf]
        %v1610 = vld [vmem:[%s1605 + $0x10] sm:$0xf]
        %v1611 = vld [vmem:[%s1605 + $0x14] sm:$0xf]
        %v1612 = vld [vmem:[%s1605 + $0x18] sm:$0xf]
        %v1613 = vld [vmem:[%s1605 + $0x1c] sm:$0xf]
        %v1614 = vld [vmem:[%s1605 + $0x20] sm:$0xf]
        %v1615 = vld [vmem:[%s1605 + $0x24] sm:$0xf]
        %v1616 = vld [vmem:[%s1605 + $0x28] sm:$0xf]
        %v1617 = vld [vmem:[%s1605 + $0x2c] sm:$0xf]
        %v1618 = vld [vmem:[%s1605 + $0x30] sm:$0xf]
        %v1619 = vld [vmem:[%s1605 + $0x34] sm:$0xf]
        %v1620 = vld [vmem:[%s1605 + $0x38] sm:$0xf]
        %v1621 = vld [vmem:[%s1605 + $0x3c] sm:$0xf]
        %v1622 = vld [vmem:[%s1605 + $0x40] sm:$0xf]
        %v1623 = vld [vmem:[%s1605 + $0x44] sm:$0xf]
        %v1624 = vld [vmem:[%s1605 + $0x48] sm:$0xf]
        %v1625 = vld [vmem:[%s1605 + $0x4c] sm:$0xf]
        %v1626 = vld [vmem:[%s1605 + $0x50] sm:$0xf]
        %v1627 = vld [vmem:[%s1605 + $0x54] sm:$0xf]
        %v1628 = vld [vmem:[%s1605 + $0x58] sm:$0xf]
        %v1629 = vld [vmem:[%s1605 + $0x5c] sm:$0xf]
        %v1630 = vld [vmem:[%s1605 + $0x60] sm:$0xf]
        %v1631 = vld [vmem:[%s1605 + $0x64] sm:$0xf]
        %v1632 = vld [vmem:[%s1605 + $0x68] sm:$0xf]
        %v1633 = vld [vmem:[%s1605 + $0x6c] sm:$0xf]
        %v1634 = vld [vmem:[%s1605 + $0x70] sm:$0xf]
        %v1635 = vld [vmem:[%s1605 + $0x74] sm:$0xf]
        %v1636 = vld [vmem:[%s1605 + $0x78] sm:$0xf]
        %v1637 = vld [vmem:[%s1605 + $0x7c] sm:$0xf]
        %v1638 = vld [vmem:[%s1605 + $0x80] sm:$0xf]
        %v1639 = vld [vmem:[%s1605 + $0x84] sm:$0xf]
        %v1640 = vld [vmem:[%s1605 + $0x88] sm:$0xf]
        %v1641 = vld [vmem:[%s1605 + $0x8c] sm:$0xf]
        %v1642 = vld [vmem:[%s1605 + $0x90] sm:$0xf]
        %v1643 = vld [vmem:[%s1605 + $0x94] sm:$0xf]
        %v1644 = vld [vmem:[%s1605 + $0x98] sm:$0xf]
        %v1645 = vld [vmem:[%s1605 + $0x9c] sm:$0xf]
        %v1646 = vld [vmem:[%s1605 + $0xa0] sm:$0xf]
        %v1647 = vld [vmem:[%s1605 + $0xa4] sm:$0xf]
        %v1648 = vld [vmem:[%s1605 + $0xa8] sm:$0xf]
        %v1649 = vld [vmem:[%s1605 + $0xac] sm:$0xf]
        %v1650 = vld [vmem:[%s1605 + $0xb0] sm:$0xf]
        %v1651 = vld [vmem:[%s1605 + $0xb4] sm:$0xf]
        %v1652 = vld [vmem:[%s1605 + $0xb8] sm:$0xf]
        %v1653 = vld [vmem:[%s1605 + $0xbc] sm:$0xf]
        %v1702 = vunpack.c.l.b16 %v1606
        %v1703 = vunpack.c.l.b16 %v1607
        %v1704 = vunpack.c.l.b16 %v1608
        %v1705 = vunpack.c.l.b16 %v1609
        %v1706 = vunpack.c.l.b16 %v1610
        %v1707 = vunpack.c.l.b16 %v1611
        %v1708 = vunpack.c.l.b16 %v1612
        %v1709 = vunpack.c.l.b16 %v1613
        %v1710 = vunpack.c.l.b16 %v1614
        %v1711 = vunpack.c.l.b16 %v1615
        %v1712 = vunpack.c.l.b16 %v1616
        %v1713 = vunpack.c.l.b16 %v1617
        %v1714 = vunpack.c.l.b16 %v1618
        %v1715 = vunpack.c.l.b16 %v1619
        %v1716 = vunpack.c.l.b16 %v1620
        %v1717 = vunpack.c.l.b16 %v1621
        %v1718 = vunpack.c.l.b16 %v1622
        %v1719 = vunpack.c.l.b16 %v1623
        %v1720 = vunpack.c.l.b16 %v1624
        %v1721 = vunpack.c.l.b16 %v1625
        %v1722 = vunpack.c.l.b16 %v1626
        %v1723 = vunpack.c.l.b16 %v1627
        %v1724 = vunpack.c.l.b16 %v1628
        %v1725 = vunpack.c.l.b16 %v1629
        %v1726 = vunpack.c.l.b16 %v1630
        %v1727 = vunpack.c.l.b16 %v1631
        %v1728 = vunpack.c.l.b16 %v1632
        %v1729 = vunpack.c.l.b16 %v1633
        %v1730 = vunpack.c.l.b16 %v1634
        %v1731 = vunpack.c.l.b16 %v1635
        %v1732 = vunpack.c.l.b16 %v1636
        %v1733 = vunpack.c.l.b16 %v1637
        %v1734 = vunpack.c.l.b16 %v1638
        %v1735 = vunpack.c.l.b16 %v1639
        %v1736 = vunpack.c.l.b16 %v1640
        %v1737 = vunpack.c.l.b16 %v1641
        %v1738 = vunpack.c.l.b16 %v1642
        %v1739 = vunpack.c.l.b16 %v1643
        %v1740 = vunpack.c.l.b16 %v1644
        %v1741 = vunpack.c.l.b16 %v1645
        %v1742 = vunpack.c.l.b16 %v1646
        %v1743 = vunpack.c.l.b16 %v1647
        %v1744 = vunpack.c.l.b16 %v1648
        %v1745 = vunpack.c.l.b16 %v1649
        %v1746 = vunpack.c.l.b16 %v1650
        %v1747 = vunpack.c.l.b16 %v1651
        %v1748 = vunpack.c.l.b16 %v1652
        %v1749 = vunpack.c.l.b16 %v1653
        %v1750 = vpack.c.b16 %v1703, %v1702
        %v1751 = vpack.c.b16 %v1705, %v1704
        %v1752 = vpack.c.b16 %v1707, %v1706
        %v1753 = vpack.c.b16 %v1709, %v1708
        %v1754 = vpack.c.b16 %v1711, %v1710
        %v1755 = vpack.c.b16 %v1713, %v1712
        %v1756 = vpack.c.b16 %v1715, %v1714
        %v1757 = vpack.c.b16 %v1717, %v1716
        %v1758 = vpack.c.b16 %v1719, %v1718
        %v1759 = vpack.c.b16 %v1721, %v1720
        %v1760 = vpack.c.b16 %v1723, %v1722
        %v1761 = vpack.c.b16 %v1725, %v1724
        %v1762 = vpack.c.b16 %v1727, %v1726
        %v1763 = vpack.c.b16 %v1729, %v1728
        %v1764 = vpack.c.b16 %v1731, %v1730
        %v1765 = vpack.c.b16 %v1733, %v1732
        %v1766 = vpack.c.b16 %v1735, %v1734
        %v1767 = vpack.c.b16 %v1737, %v1736
        %v1768 = vpack.c.b16 %v1739, %v1738
        %v1769 = vpack.c.b16 %v1741, %v1740
        %v1770 = vpack.c.b16 %v1743, %v1742
        %v1771 = vpack.c.b16 %v1745, %v1744
        %v1772 = vpack.c.b16 %v1747, %v1746
        %v1773 = vpack.c.b16 %v1749, %v1748
        %1798 = vmatprep.subr.bf16.mxu0 0
        %1799 = vmatpush1.bf16.msra.mxu0 %v1750
        %1800 = vmatprep.subr.bf16.mxu0 0
        %1801 = vmatpush1.bf16.msra.mxu0 %v1751
        %1802 = vmatprep.subr.bf16.mxu0 0
        %1803 = vmatpush1.bf16.msra.mxu0 %v1752
        %1804 = vmatprep.subr.bf16.mxu0 0
        %1805 = vmatpush1.bf16.msra.mxu0 %v1753
        %1806 = vmatprep.subr.bf16.mxu0 0
        %1807 = vmatpush1.bf16.msra.mxu0 %v1754
        %1808 = vmatprep.subr.bf16.mxu0 0
        %1809 = vmatpush1.bf16.msra.mxu0 %v1755
        %1810 = vmatprep.subr.bf16.mxu0 0
        %1811 = vmatpush1.bf16.msra.mxu0 %v1756
        %1812 = vmatprep.subr.bf16.mxu0 0
        %1813 = vmatpush1.bf16.msra.mxu0 %v1757
        %1814 = vmatprep.subr.bf16.mxu0 0
        %1815 = vmatpush1.bf16.msra.mxu0 %v1758
        %1816 = vmatprep.subr.bf16.mxu0 0
        %1817 = vmatpush1.bf16.msra.mxu0 %v1759
        %1818 = vmatprep.subr.bf16.mxu0 0
        %1819 = vmatpush1.bf16.msra.mxu0 %v1760
        %1820 = vmatprep.subr.bf16.mxu0 0
        %1821 = vmatpush1.bf16.msra.mxu0 %v1761
        %1822 = vmatprep.subr.bf16.mxu0 0
        %1823 = vmatpush1.bf16.msra.mxu0 %v1762
        %1824 = vmatprep.subr.bf16.mxu0 0
        %1825 = vmatpush1.bf16.msra.mxu0 %v1763
        %1826 = vmatprep.subr.bf16.mxu0 0
        %1827 = vmatpush1.bf16.msra.mxu0 %v1764
        %1828 = vmatprep.subr.bf16.mxu0 0
        %1829 = vmatpush1.bf16.msra.mxu0 %v1765
        %1830 = vmatprep.mubr.bf16.mxu0 %v605
        %1831 = vmatmul.mubr.bf16.gmra.mrb[0].mxu0 %v781
        %v1832 = vpop.f32.mrb[0].mxu0
        %v1833 = vadd.f32 0.0, %v1832
        %v1834 = vpop.f32.mrb[0].mxu0
        %v1835 = vpop.f32.mrb[0].mxu0
        %v1836 = vadd.f32 0.0, %v1835
        %v1837 = vpop.f32.mrb[0].mxu0
        %1838 = vmatprep.mubr.bf16.mxu0 %v606
        %1839 = vmatmul.mubr.bf16.gmra.mrb[0].mxu0 %v782
        %v1840 = vpop.f32.mrb[0].mxu0
        %v1841 = vadd.f32 0.0, %v1840
        %v1842 = vpop.f32.mrb[0].mxu0
        %v1843 = vpop.f32.mrb[0].mxu0
        %v1844 = vadd.f32 0.0, %v1843
        %v1845 = vpop.f32.mrb[0].mxu0
        %1846 = vmatprep.mubr.bf16.mxu0 %v607
        %1847 = vmatmul.mubr.bf16.gmra.mrb[0].mxu0 %v783
        %v1848 = vpop.f32.mrb[0].mxu0
        %v1849 = vadd.f32 0.0, %v1848
        %v1850 = vpop.f32.mrb[0].mxu0
        %v1851 = vpop.f32.mrb[0].mxu0
        %v1852 = vadd.f32 0.0, %v1851
        %v1853 = vpop.f32.mrb[0].mxu0
        %1854 = vmatprep.mubr.bf16.mxu0 %v608
        %1855 = vmatmul.mubr.bf16.gmra.mrb[0].mxu0 %v784
        %v1856 = vpop.f32.mrb[0].mxu0
        %v1857 = vadd.f32 0.0, %v1856
        %v1858 = vpop.f32.mrb[0].mxu0
        %v1859 = vpop.f32.mrb[0].mxu0
        %v1860 = vadd.f32 0.0, %v1859
        %v1861 = vpop.f32.mrb[0].mxu0
        %1862 = vmatprep.mubr.bf16.mxu0 %v609
        %1863 = vmatmul.mubr.bf16.gmra.mrb[0].mxu0 %v785
        %v1864 = vpop.f32.mrb[0].mxu0
        %v1865 = vadd.f32 0.0, %v1864
        %v1866 = vpop.f32.mrb[0].mxu0
        %v1867 = vpop.f32.mrb[0].mxu0
        %v1868 = vadd.f32 0.0, %v1867
        %v1869 = vpop.f32.mrb[0].mxu0
        %1870 = vmatprep.mubr.bf16.mxu0 %v610
        %1871 = vmatmul.mubr.bf16.gmra.mrb[0].mxu0 %v786
        %v1872 = vpop.f32.mrb[0].mxu0
        %v1873 = vadd.f32 0.0, %v1872
        %v1874 = vpop.f32.mrb[0].mxu0
        %v1875 = vpop.f32.mrb[0].mxu0
        %v1876 = vadd.f32 0.0, %v1875
        %v1877 = vpop.f32.mrb[0].mxu0
        %1878 = vmatprep.mubr.bf16.mxu0 %v611
        %1879 = vmatmul.mubr.bf16.gmra.mrb[0].mxu0 %v787
        %v1880 = vpop.f32.mrb[0].mxu0
        %v1881 = vadd.f32 0.0, %v1880
        %v1882 = vpop.f32.mrb[0].mxu0
        %v1883 = vpop.f32.mrb[0].mxu0
        %v1884 = vadd.f32 0.0, %v1883
        %v1885 = vpop.f32.mrb[0].mxu0
        %1886 = vmatprep.mubr.bf16.mxu0 %v695
        %1887 = vmatmul.mubr.bf16.gmra.mrb[0].mxu0 %v788
        %v1888 = vpop.f32.mrb[0].mxu0
        %v1889 = vadd.f32 0.0, %v1888
        %v1890 = vpop.f32.mrb[0].mxu0
        %v1891 = vpop.f32.mrb[0].mxu0
        %v1892 = vadd.f32 0.0, %v1891
        %v1893 = vpop.f32.mrb[0].mxu0
        %1894 = vdwg.mxu0
        %1895 = vmatprep.subr.bf16.mxu0 0
        %1896 = vmatpush1.bf16.msra.mxu0 %v1766
        %1897 = vmatprep.subr.bf16.mxu0 0
        %1898 = vmatpush1.bf16.msra.mxu0 %v1767
        %1899 = vmatprep.subr.bf16.mxu0 0
        %1900 = vmatpush1.bf16.msra.mxu0 %v1768
        %1901 = vmatprep.subr.bf16.mxu0 0
        %1902 = vmatpush1.bf16.msra.mxu0 %v1769
        %1903 = vmatprep.subr.bf16.mxu0 0
        %1904 = vmatpush1.bf16.msra.mxu0 %v1770
        %1905 = vmatprep.subr.bf16.mxu0 0
        %1906 = vmatpush1.bf16.msra.mxu0 %v1771
        %1907 = vmatprep.subr.bf16.mxu0 0
        %1908 = vmatpush1.bf16.msra.mxu0 %v1772
        %1909 = vmatprep.subr.bf16.mxu0 0
        %1910 = vmatpush1.bf16.msra.mxu0 %v1773
        %1911 = vmatprep.subr.bf16.mxu0 0
        %1912 = vmatpush1.bf16.msra.mxu0 0
        %1913 = vmatprep.subr.bf16.mxu0 0
        %1914 = vmatpush1.bf16.msra.mxu0 0
        %1915 = vmatprep.subr.bf16.mxu0 0
        %1916 = vmatpush1.bf16.msra.mxu0 0
        %1917 = vmatprep.subr.bf16.mxu0 0
        %1918 = vmatpush1.bf16.msra.mxu0 0
        %1919 = vmatprep.subr.bf16.mxu0 0
        %1920 = vmatpush1.bf16.msra.mxu0 0
        %1921 = vmatprep.subr.bf16.mxu0 0
        %1922 = vmatpush1.bf16.msra.mxu0 0
        %1923 = vmatprep.subr.bf16.mxu0 0
        %1924 = vmatpush1.bf16.msra.mxu0 0
        %1925 = vmatprep.subr.bf16.mxu0 0
        %1926 = vmatpush1.bf16.msra.mxu0 0
        %1927 = vmatprep.mubr.bf16.mxu0 0
        %1928 = vmatmul.mubr.bf16.gmra.mrb[0].mxu0 %v824
        %v1929 = vpop.f32.mrb[0].mxu0
        %v1930 = vadd.f32 %v1833, %v1929
        %v1931 = vpop.f32.mrb[0].mxu0
        %v1932 = vpop.f32.mrb[0].mxu0
        %v1933 = vadd.f32 %v1836, %v1932
        %v1934 = vpop.f32.mrb[0].mxu0
        %1935 = vmatprep.mubr.bf16.mxu0 0
        %1936 = vmatmul.mubr.bf16.gmra.mrb[0].mxu0 %v825
        %v1937 = vpop.f32.mrb[0].mxu0
        %v1938 = vadd.f32 %v1841, %v1937
        %v1939 = vpop.f32.mrb[0].mxu0
        %v1940 = vpop.f32.mrb[0].mxu0
        %v1941 = vadd.f32 %v1844, %v1940
        %v1942 = vpop.f32.mrb[0].mxu0
        %1943 = vmatprep.mubr.bf16.mxu0 0
        %1944 = vmatmul.mubr.bf16.gmra.mrb[0].mxu0 %v826
        %v1945 = vpop.f32.mrb[0].mxu0
        %v1946 = vadd.f32 %v1849, %v1945
        %v1947 = vpop.f32.mrb[0].mxu0
        %v1948 = vpop.f32.mrb[0].mxu0
        %v1949 = vadd.f32 %v1852, %v1948
        %v1950 = vpop.f32.mrb[0].mxu0
        %1951 = vmatprep.mubr.bf16.mxu0 0
        %1952 = vmatmul.mubr.bf16.gmra.mrb[0].mxu0 %v827
        %v1953 = vpop.f32.mrb[0].mxu0
        %v1954 = vadd.f32 %v1857, %v1953
        %v1955 = vpop.f32.mrb[0].mxu0
        %v1956 = vpop.f32.mrb[0].mxu0
        %v1957 = vadd.f32 %v1860, %v1956
        %v1958 = vpop.f32.mrb[0].mxu0
        %1959 = vmatprep.mubr.bf16.mxu0 0
        %1960 = vmatmul.mubr.bf16.gmra.mrb[0].mxu0 %v828
        %v1961 = vpop.f32.mrb[0].mxu0
        %v1962 = vadd.f32 %v1865, %v1961
        %v1963 = vpop.f32.mrb[0].mxu0
        %v1964 = vpop.f32.mrb[0].mxu0
        %v1965 = vadd.f32 %v1868, %v1964
        %v1966 = vpop.f32.mrb[0].mxu0
        %1967 = vmatprep.mubr.bf16.mxu0 0
        %1968 = vmatmul.mubr.bf16.gmra.mrb[0].mxu0 %v829
        %v1969 = vpop.f32.mrb[0].mxu0
        %v1970 = vadd.f32 %v1873, %v1969
        %v1971 = vpop.f32.mrb[0].mxu0
        %v1972 = vpop.f32.mrb[0].mxu0
        %v1973 = vadd.f32 %v1876, %v1972
        %v1974 = vpop.f32.mrb[0].mxu0
        %1975 = vmatprep.mubr.bf16.mxu0 0
        %1976 = vmatmul.mubr.bf16.gmra.mrb[0].mxu0 %v830
        %v1977 = vpop.f32.mrb[0].mxu0
        %v1978 = vadd.f32 %v1881, %v1977
        %v1979 = vpop.f32.mrb[0].mxu0
        %v1980 = vpop.f32.mrb[0].mxu0
        %v1981 = vadd.f32 %v1884, %v1980
        %v1982 = vpop.f32.mrb[0].mxu0
        %1983 = vmatprep.mubr.bf16.mxu0 0
        %1984 = vmatmul.mubr.bf16.gmra.mrb[0].mxu0 %v831
        %v1985 = vpop.f32.mrb[0].mxu0
        %v1986 = vadd.f32 %v1889, %v1985
        %v1987 = vpop.f32.mrb[0].mxu0
        %v1988 = vpop.f32.mrb[0].mxu0
        %v1989 = vadd.f32 %v1892, %v1988
        %v1990 = vpop.f32.mrb[0].mxu0
        %1991 = vdwg.mxu0
        %v1992 = vadd.f32 %v1543, %v1930
        %v1993 = vadd.f32 %v1546, %v1933
        %v1994 = vadd.f32 %v1551, %v1938
        %v1995 = vadd.f32 %v1554, %v1941
        %v1996 = vadd.f32 %v1559, %v1946
        %v1997 = vadd.f32 %v1562, %v1949
        %v1998 = vadd.f32 %v1567, %v1954
        %v1999 = vadd.f32 %v1570, %v1957
        %v2000 = vadd.f32 %v1575, %v1962
        %v2001 = vadd.f32 %v1578, %v1965
        %v2002 = vadd.f32 %v1583, %v1970
        %v2003 = vadd.f32 %v1586, %v1973
        %v2004 = vadd.f32 %v1591, %v1978
        %v2005 = vadd.f32 %v1594, %v1981
        %v2006 = vadd.f32 %v1599, %v1986
        %v2007 = vadd.f32 %v1602, %v1989
        %v2008 = vadd.f32 %v453, %v1992
        %v2009 = vadd.f32 %v454, %v1993
        %v2010 = vadd.f32 %v455, %v1994
        %v2011 = vadd.f32 %v456, %v1995
        %v2012 = vadd.f32 %v457, %v1996
        %v2013 = vadd.f32 %v458, %v1997
        %v2014 = vadd.f32 %v459, %v1998
        %v2015 = vadd.f32 %v460, %v1999
        %v2016 = vadd.f32 %v461, %v2000
        %v2017 = vadd.f32 %v462, %v2001
        %v2018 = vadd.f32 %v463, %v2002
        %v2019 = vadd.f32 %v464, %v2003
        %v2020 = vadd.f32 %v465, %v2004
        %v2021 = vadd.f32 %v466, %v2005
        %v2022 = vadd.f32 %v467, %v2006
        %v2023 = vadd.f32 %v468, %v2007
        %v2024 = vld [vmem:[%s3] sm:$0x1]
        %v2026 = vlaneseq
        %v2027 = vshrl.u32 %v2026, 7
        %v2028 = vsub.s32 0, %v2027
        %v2029 = vrot.slane %v2024, %v2028
        %v2031 = vadd.f32 %v2008, %v2029
        %v2032 = vadd.f32 %v2009, %v2029
        %v2033 = vadd.f32 %v2010, %v2029
        %v2034 = vadd.f32 %v2011, %v2029
        %v2035 = vadd.f32 %v2012, %v2029
        %v2036 = vadd.f32 %v2013, %v2029
        %v2037 = vadd.f32 %v2014, %v2029
        %v2038 = vadd.f32 %v2015, %v2029
        %v2039 = vadd.f32 %v2016, %v2029
        %v2040 = vadd.f32 %v2017, %v2029
        %v2041 = vadd.f32 %v2018, %v2029
        %v2042 = vadd.f32 %v2019, %v2029
        %v2043 = vadd.f32 %v2020, %v2029
        %v2044 = vadd.f32 %v2021, %v2029
        %v2045 = vadd.f32 %v2022, %v2029
        %v2046 = vadd.f32 %v2023, %v2029
        %vm2047 = vcmp.ge.f32.partialorder %v2031, 0.0
        %vm2048 = vcmp.ge.f32.partialorder %v2032, 0.0
        %vm2049 = vcmp.ge.f32.partialorder %v2033, 0.0
        %vm2050 = vcmp.ge.f32.partialorder %v2034, 0.0
        %vm2051 = vcmp.ge.f32.partialorder %v2035, 0.0
        %vm2052 = vcmp.ge.f32.partialorder %v2036, 0.0
        %vm2053 = vcmp.ge.f32.partialorder %v2037, 0.0
        %vm2054 = vcmp.ge.f32.partialorder %v2038, 0.0
        %vm2055 = vcmp.ge.f32.partialorder %v2039, 0.0
        %vm2056 = vcmp.ge.f32.partialorder %v2040, 0.0
        %vm2057 = vcmp.ge.f32.partialorder %v2041, 0.0
        %vm2058 = vcmp.ge.f32.partialorder %v2042, 0.0
        %vm2059 = vcmp.ge.f32.partialorder %v2043, 0.0
        %vm2060 = vcmp.ge.f32.partialorder %v2044, 0.0
        %vm2061 = vcmp.ge.f32.partialorder %v2045, 0.0
        %vm2062 = vcmp.ge.f32.partialorder %v2046, 0.0
        %v2063 = vld [vmem:[%s4] sm:$0x1]
        %v2065 = vlaneseq
        %v2066 = vshrl.u32 %v2065, 7
        %v2067 = vsub.s32 0, %v2066
        %v2068 = vrot.slane %v2063, %v2067
        %v2070 = vmul.f32 %v2068, %v2031
        %v2071 = vmul.f32 %v2068, %v2032
        %v2072 = vmul.f32 %v2068, %v2033
        %v2073 = vmul.f32 %v2068, %v2034
        %v2074 = vmul.f32 %v2068, %v2035
        %v2075 = vmul.f32 %v2068, %v2036
        %v2076 = vmul.f32 %v2068, %v2037
        %v2077 = vmul.f32 %v2068, %v2038
        %v2078 = vmul.f32 %v2068, %v2039
        %v2079 = vmul.f32 %v2068, %v2040
        %v2080 = vmul.f32 %v2068, %v2041
        %v2081 = vmul.f32 %v2068, %v2042
        %v2082 = vmul.f32 %v2068, %v2043
        %v2083 = vmul.f32 %v2068, %v2044
        %v2084 = vmul.f32 %v2068, %v2045
        %v2085 = vmul.f32 %v2068, %v2046
        %v2086 = vsel %vm2047, %v2031, %v2070
        %v2087 = vsel %vm2048, %v2032, %v2071
        %v2088 = vsel %vm2049, %v2033, %v2072
        %v2089 = vsel %vm2050, %v2034, %v2073
        %v2090 = vsel %vm2051, %v2035, %v2074
        %v2091 = vsel %vm2052, %v2036, %v2075
        %v2092 = vsel %vm2053, %v2037, %v2076
        %v2093 = vsel %vm2054, %v2038, %v2077
        %v2094 = vsel %vm2055, %v2039, %v2078
        %v2095 = vsel %vm2056, %v2040, %v2079
        %v2096 = vsel %vm2057, %v2041, %v2080
        %v2097 = vsel %vm2058, %v2042, %v2081
        %v2098 = vsel %vm2059, %v2043, %v2082
        %v2099 = vsel %vm2060, %v2044, %v2083
        %v2100 = vsel %vm2061, %v2045, %v2084
        %v2101 = vsel %vm2062, %v2046, %v2085
        %v2102 = vld [vmem:[%s5] sm:$0x1]
        %v2104 = vlaneseq
        %v2105 = vshrl.u32 %v2104, 7
        %v2106 = vsub.s32 0, %v2105
        %v2107 = vrot.slane %v2102, %v2106
        %v2109 = vadd.f32 %v2086, %v2107
        %v2110 = vadd.f32 %v2087, %v2107
        %v2111 = vadd.f32 %v2088, %v2107
        %v2112 = vadd.f32 %v2089, %v2107
        %v2113 = vadd.f32 %v2090, %v2107
        %v2114 = vadd.f32 %v2091, %v2107
        %v2115 = vadd.f32 %v2092, %v2107
        %v2116 = vadd.f32 %v2093, %v2107
        %v2117 = vadd.f32 %v2094, %v2107
        %v2118 = vadd.f32 %v2095, %v2107
        %v2119 = vadd.f32 %v2096, %v2107
        %v2120 = vadd.f32 %v2097, %v2107
        %v2121 = vadd.f32 %v2098, %v2107
        %v2122 = vadd.f32 %v2099, %v2107
        %v2123 = vadd.f32 %v2100, %v2107
        %v2124 = vadd.f32 %v2101, %v2107
        %v2125 = vld [vmem:[%s6] sm:$0x1]
        %v2127 = vlaneseq
        %v2128 = vshrl.u32 %v2127, 7
        %v2129 = vsub.s32 0, %v2128
        %v2130 = vrot.slane %v2125, %v2129
        %v2132 = vadd.f32 %v2109, %v2130
        %v2133 = vadd.f32 %v2110, %v2130
        %v2134 = vadd.f32 %v2111, %v2130
        %v2135 = vadd.f32 %v2112, %v2130
        %v2136 = vadd.f32 %v2113, %v2130
        %v2137 = vadd.f32 %v2114, %v2130
        %v2138 = vadd.f32 %v2115, %v2130
        %v2139 = vadd.f32 %v2116, %v2130
        %v2140 = vadd.f32 %v2117, %v2130
        %v2141 = vadd.f32 %v2118, %v2130
        %v2142 = vadd.f32 %v2119, %v2130
        %v2143 = vadd.f32 %v2120, %v2130
        %v2144 = vadd.f32 %v2121, %v2130
        %v2145 = vadd.f32 %v2122, %v2130
        %v2146 = vadd.f32 %v2123, %v2130
        %v2147 = vadd.f32 %v2124, %v2130
        %vm2148 = vcmp.gt.f32.partialorder %v2132, 0.0
        %vm2149 = vcmp.gt.f32.partialorder %v2133, 0.0
        %vm2150 = vcmp.gt.f32.partialorder %v2134, 0.0
        %vm2151 = vcmp.gt.f32.partialorder %v2135, 0.0
        %vm2152 = vcmp.gt.f32.partialorder %v2136, 0.0
        %vm2153 = vcmp.gt.f32.partialorder %v2137, 0.0
        %vm2154 = vcmp.gt.f32.partialorder %v2138, 0.0
        %vm2155 = vcmp.gt.f32.partialorder %v2139, 0.0
        %vm2156 = vcmp.gt.f32.partialorder %v2140, 0.0
        %vm2157 = vcmp.gt.f32.partialorder %v2141, 0.0
        %vm2158 = vcmp.gt.f32.partialorder %v2142, 0.0
        %vm2159 = vcmp.gt.f32.partialorder %v2143, 0.0
        %vm2160 = vcmp.gt.f32.partialorder %v2144, 0.0
        %vm2161 = vcmp.gt.f32.partialorder %v2145, 0.0
        %vm2162 = vcmp.gt.f32.partialorder %v2146, 0.0
        %vm2163 = vcmp.gt.f32.partialorder %v2147, 0.0
        %v2164 = vsel %vm2148, 1, 0
        %v2165 = vsel %vm2149, 1, 0
        %v2166 = vsel %vm2150, 1, 0
        %v2167 = vsel %vm2151, 1, 0
        %v2168 = vsel %vm2152, 1, 0
        %v2169 = vsel %vm2153, 1, 0
        %v2170 = vsel %vm2154, 1, 0
        %v2171 = vsel %vm2155, 1, 0
        %v2172 = vsel %vm2156, 1, 0
        %v2173 = vsel %vm2157, 1, 0
        %v2174 = vsel %vm2158, 1, 0
        %v2175 = vsel %vm2159, 1, 0
        %v2176 = vsel %vm2160, 1, 0
        %v2177 = vsel %vm2161, 1, 0
        %v2178 = vsel %vm2162, 1, 0
        %v2179 = vsel %vm2163, 1, 0
        %v2180 = vcvt.s32.f32 %v2164
        %v2181 = vcvt.s32.f32 %v2165
        %v2182 = vcvt.s32.f32 %v2166
        %v2183 = vcvt.s32.f32 %v2167
        %v2184 = vcvt.s32.f32 %v2168
        %v2185 = vcvt.s32.f32 %v2169
        %v2186 = vcvt.s32.f32 %v2170
        %v2187 = vcvt.s32.f32 %v2171
        %v2188 = vcvt.s32.f32 %v2172
        %v2189 = vcvt.s32.f32 %v2173
        %v2190 = vcvt.s32.f32 %v2174
        %v2191 = vcvt.s32.f32 %v2175
        %v2192 = vcvt.s32.f32 %v2176
        %v2193 = vcvt.s32.f32 %v2177
        %v2194 = vcvt.s32.f32 %v2178
        %v2195 = vcvt.s32.f32 %v2179
        %v2196 = vpack.c.bf16 %v2181, %v2180
        %v2197 = vpack.c.bf16 %v2183, %v2182
        %v2198 = vpack.c.bf16 %v2185, %v2184
        %v2199 = vpack.c.bf16 %v2187, %v2186
        %v2200 = vpack.c.bf16 %v2189, %v2188
        %v2201 = vpack.c.bf16 %v2191, %v2190
        %v2202 = vpack.c.bf16 %v2193, %v2192
        %v2203 = vpack.c.bf16 %v2195, %v2194
        %vm2204 = vcmp.lt.f32.partialorder %v2132, 0.0
        %vm2205 = vcmp.lt.f32.partialorder %v2133, 0.0
        %vm2206 = vcmp.lt.f32.partialorder %v2134, 0.0
        %vm2207 = vcmp.lt.f32.partialorder %v2135, 0.0
        %vm2208 = vcmp.lt.f32.partialorder %v2136, 0.0
        %vm2209 = vcmp.lt.f32.partialorder %v2137, 0.0
        %vm2210 = vcmp.lt.f32.partialorder %v2138, 0.0
        %vm2211 = vcmp.lt.f32.partialorder %v2139, 0.0
        %vm2212 = vcmp.lt.f32.partialorder %v2140, 0.0
        %vm2213 = vcmp.lt.f32.partialorder %v2141, 0.0
        %vm2214 = vcmp.lt.f32.partialorder %v2142, 0.0
        %vm2215 = vcmp.lt.f32.partialorder %v2143, 0.0
        %vm2216 = vcmp.lt.f32.partialorder %v2144, 0.0
        %vm2217 = vcmp.lt.f32.partialorder %v2145, 0.0
        %vm2218 = vcmp.lt.f32.partialorder %v2146, 0.0
        %vm2219 = vcmp.lt.f32.partialorder %v2147, 0.0
        %v2220 = vsel %vm2204, 1, 0
        %v2221 = vsel %vm2205, 1, 0
        %v2222 = vsel %vm2206, 1, 0
        %v2223 = vsel %vm2207, 1, 0
        %v2224 = vsel %vm2208, 1, 0
        %v2225 = vsel %vm2209, 1, 0
        %v2226 = vsel %vm2210, 1, 0
        %v2227 = vsel %vm2211, 1, 0
        %v2228 = vsel %vm2212, 1, 0
        %v2229 = vsel %vm2213, 1, 0
        %v2230 = vsel %vm2214, 1, 0
        %v2231 = vsel %vm2215, 1, 0
        %v2232 = vsel %vm2216, 1, 0
        %v2233 = vsel %vm2217, 1, 0
        %v2234 = vsel %vm2218, 1, 0
        %v2235 = vsel %vm2219, 1, 0
        %v2236 = vcvt.s32.f32 %v2220
        %v2237 = vcvt.s32.f32 %v2221
        %v2238 = vcvt.s32.f32 %v2222
        %v2239 = vcvt.s32.f32 %v2223
        %v2240 = vcvt.s32.f32 %v2224
        %v2241 = vcvt.s32.f32 %v2225
        %v2242 = vcvt.s32.f32 %v2226
        %v2243 = vcvt.s32.f32 %v2227
        %v2244 = vcvt.s32.f32 %v2228
        %v2245 = vcvt.s32.f32 %v2229
        %v2246 = vcvt.s32.f32 %v2230
        %v2247 = vcvt.s32.f32 %v2231
        %v2248 = vcvt.s32.f32 %v2232
        %v2249 = vcvt.s32.f32 %v2233
        %v2250 = vcvt.s32.f32 %v2234
        %v2251 = vcvt.s32.f32 %v2235
        %v2252 = vpack.c.bf16 %v2237, %v2236
        %v2253 = vpack.c.bf16 %v2239, %v2238
        %v2254 = vpack.c.bf16 %v2241, %v2240
        %v2255 = vpack.c.bf16 %v2243, %v2242
        %v2256 = vpack.c.bf16 %v2245, %v2244
        %v2257 = vpack.c.bf16 %v2247, %v2246
        %v2258 = vpack.c.bf16 %v2249, %v2248
        %v2259 = vpack.c.bf16 %v2251, %v2250
        %v2260 = vsub.bf16 %v2196, %v2252
        %v2261 = vsub.bf16 %v2197, %v2253
        %v2262 = vsub.bf16 %v2198, %v2254
        %v2263 = vsub.bf16 %v2199, %v2255
        %v2264 = vsub.bf16 %v2200, %v2256
        %v2265 = vsub.bf16 %v2201, %v2257
        %v2266 = vsub.bf16 %v2202, %v2258
        %v2267 = vsub.bf16 %v2203, %v2259
        %v2268 = vld [vmem:[#allocation7] sm:$0xf]
        %v2269 = vld [vmem:[#allocation7 + $0x4] sm:$0xf]
        %v2270 = vld [vmem:[#allocation7 + $0x8] sm:$0xf]
        %v2271 = vld [vmem:[#allocation7 + $0xc] sm:$0xf]
        %v2272 = vld [vmem:[#allocation7 + $0x10] sm:$0xf]
        %v2273 = vld [vmem:[#allocation7 + $0x14] sm:$0xf]
        %v2274 = vld [vmem:[#allocation7 + $0x18] sm:$0xf]
        %v2275 = vld [vmem:[#allocation7 + $0x1c] sm:$0xf]
        %v2276 = vld [vmem:[#allocation7 + $0x20] sm:$0xf]
        %v2277 = vld [vmem:[#allocation7 + $0x24] sm:$0xf]
        %v2278 = vld [vmem:[#allocation7 + $0x28] sm:$0xf]
        %v2279 = vld [vmem:[#allocation7 + $0x2c] sm:$0xf]
        %v2280 = vld [vmem:[#allocation7 + $0x30] sm:$0xf]
        %v2281 = vld [vmem:[#allocation7 + $0x34] sm:$0xf]
        %v2282 = vld [vmem:[#allocation7 + $0x38] sm:$0xf]
        %v2283 = vld [vmem:[#allocation7 + $0x3c] sm:$0xf]
        %v2300 = vunpack.c.l.b16 %v2268
        %v2301 = vunpack.c.l.b16 %v2269
        %v2302 = vunpack.c.l.b16 %v2270
        %v2303 = vunpack.c.l.b16 %v2271
        %v2304 = vunpack.c.l.b16 %v2272
        %v2305 = vunpack.c.l.b16 %v2273
        %v2306 = vunpack.c.l.b16 %v2274
        %v2307 = vunpack.c.l.b16 %v2275
        %v2308 = vunpack.c.l.b16 %v2276
        %v2309 = vunpack.c.l.b16 %v2277
        %v2310 = vunpack.c.l.b16 %v2278
        %v2311 = vunpack.c.l.b16 %v2279
        %v2312 = vunpack.c.l.b16 %v2280
        %v2313 = vunpack.c.l.b16 %v2281
        %v2314 = vunpack.c.l.b16 %v2282
        %v2315 = vunpack.c.l.b16 %v2283
        %v2316 = vpack.c.b16 %v2301, %v2300
        %v2317 = vpack.c.b16 %v2303, %v2302
        %v2318 = vpack.c.b16 %v2305, %v2304
        %v2319 = vpack.c.b16 %v2307, %v2306
        %v2320 = vpack.c.b16 %v2309, %v2308
        %v2321 = vpack.c.b16 %v2311, %v2310
        %v2322 = vpack.c.b16 %v2313, %v2312
        %v2323 = vpack.c.b16 %v2315, %v2314
        %2332 = vmatprep.subr.bf16.mxu0 0
        %2333 = vmatpush1.bf16.msra.mxu0 %v2316
        %2334 = vmatprep.subr.bf16.mxu0 0
        %2335 = vmatpush1.bf16.msra.mxu0 %v2317
        %2336 = vmatprep.subr.bf16.mxu0 0
        %2337 = vmatpush1.bf16.msra.mxu0 %v2318
        %2338 = vmatprep.subr.bf16.mxu0 0
        %2339 = vmatpush1.bf16.msra.mxu0 %v2319
        %2340 = vmatprep.subr.bf16.mxu0 0
        %2341 = vmatpush1.bf16.msra.mxu0 %v2320
        %2342 = vmatprep.subr.bf16.mxu0 0
        %2343 = vmatpush1.bf16.msra.mxu0 %v2321
        %2344 = vmatprep.subr.bf16.mxu0 0
        %2345 = vmatpush1.bf16.msra.mxu0 %v2322
        %2346 = vmatprep.subr.bf16.mxu0 0
        %2347 = vmatpush1.bf16.msra.mxu0 %v2323
        %2348 = vmatprep.subr.bf16.mxu0 0
        %2349 = vmatpush1.bf16.msra.mxu0 0
        %2350 = vmatprep.subr.bf16.mxu0 0
        %2351 = vmatpush1.bf16.msra.mxu0 0
        %2352 = vmatprep.subr.bf16.mxu0 0
        %2353 = vmatpush1.bf16.msra.mxu0 0
        %2354 = vmatprep.subr.bf16.mxu0 0
        %2355 = vmatpush1.bf16.msra.mxu0 0
        %2356 = vmatprep.subr.bf16.mxu0 0
        %2357 = vmatpush1.bf16.msra.mxu0 0
        %2358 = vmatprep.subr.bf16.mxu0 0
        %2359 = vmatpush1.bf16.msra.mxu0 0
        %2360 = vmatprep.subr.bf16.mxu0 0
        %2361 = vmatpush1.bf16.msra.mxu0 0
        %2362 = vmatprep.subr.bf16.mxu0 0
        %2363 = vmatpush1.bf16.msra.mxu0 0
        %2364 = vmatprep.mubr.bf16.mxu0 0
        %2365 = vmatmul.mubr.bf16.gmra.mrb[0].mxu0 %v2260
        %v2366 = vpop.f32.mrb[0].mxu0
        %v2367 = vadd.f32 %v2109, %v2366
        %v2368 = vpop.f32.mrb[0].mxu0
        %v2369 = vpop.f32.mrb[0].mxu0
        %v2370 = vadd.f32 %v2110, %v2369
        %v2371 = vpop.f32.mrb[0].mxu0
        %2372 = vmatprep.mubr.bf16.mxu0 0
        %2373 = vmatmul.mubr.bf16.gmra.mrb[0].mxu0 %v2261
        %v2374 = vpop.f32.mrb[0].mxu0
        %v2375 = vadd.f32 %v2111, %v2374
        %v2376 = vpop.f32.mrb[0].mxu0
        %v2377 = vpop.f32.mrb[0].mxu0
        %v2378 = vadd.f32 %v2112, %v2377
        %v2379 = vpop.f32.mrb[0].mxu0
        %2380 = vmatprep.mubr.bf16.mxu0 0
        %2381 = vmatmul.mubr.bf16.gmra.mrb[0].mxu0 %v2262
        %v2382 = vpop.f32.mrb[0].mxu0
        %v2383 = vadd.f32 %v2113, %v2382
        %v2384 = vpop.f32.mrb[0].mxu0
        %v2385 = vpop.f32.mrb[0].mxu0
        %v2386 = vadd.f32 %v2114, %v2385
        %v2387 = vpop.f32.mrb[0].mxu0
        %2388 = vmatprep.mubr.bf16.mxu0 0
        %2389 = vmatmul.mubr.bf16.gmra.mrb[0].mxu0 %v2263
        %v2390 = vpop.f32.mrb[0].mxu0
        %v2391 = vadd.f32 %v2115, %v2390
        %v2392 = vpop.f32.mrb[0].mxu0
        %v2393 = vpop.f32.mrb[0].mxu0
        %v2394 = vadd.f32 %v2116, %v2393
        %v2395 = vpop.f32.mrb[0].mxu0
        %2396 = vmatprep.mubr.bf16.mxu0 0
        %2397 = vmatmul.mubr.bf16.gmra.mrb[0].mxu0 %v2264
        %v2398 = vpop.f32.mrb[0].mxu0
        %v2399 = vadd.f32 %v2117, %v2398
        %v2400 = vpop.f32.mrb[0].mxu0
        %v2401 = vpop.f32.mrb[0].mxu0
        %v2402 = vadd.f32 %v2118, %v2401
        %v2403 = vpop.f32.mrb[0].mxu0
        %2404 = vmatprep.mubr.bf16.mxu0 0
        %2405 = vmatmul.mubr.bf16.gmra.mrb[0].mxu0 %v2265
        %v2406 = vpop.f32.mrb[0].mxu0
        %v2407 = vadd.f32 %v2119, %v2406
        %v2408 = vpop.f32.mrb[0].mxu0
        %v2409 = vpop.f32.mrb[0].mxu0
        %v2410 = vadd.f32 %v2120, %v2409
        %v2411 = vpop.f32.mrb[0].mxu0
        %2412 = vmatprep.mubr.bf16.mxu0 0
        %2413 = vmatmul.mubr.bf16.gmra.mrb[0].mxu0 %v2266
        %v2414 = vpop.f32.mrb[0].mxu0
        %v2415 = vadd.f32 %v2121, %v2414
        %v2416 = vpop.f32.mrb[0].mxu0
        %v2417 = vpop.f32.mrb[0].mxu0
        %v2418 = vadd.f32 %v2122, %v2417
        %v2419 = vpop.f32.mrb[0].mxu0
        %2420 = vmatprep.mubr.bf16.mxu0 0
        %2421 = vmatmul.mubr.bf16.gmra.mrb[0].mxu0 %v2267
        %v2422 = vpop.f32.mrb[0].mxu0
        %v2423 = vadd.f32 %v2123, %v2422
        %v2424 = vpop.f32.mrb[0].mxu0
        %v2425 = vpop.f32.mrb[0].mxu0
        %v2426 = vadd.f32 %v2124, %v2425
        %v2427 = vpop.f32.mrb[0].mxu0
        %2428 = vdwg.mxu0
        %v2429 = vld [vmem:[%s8] sm:$0x1]
        %v2431 = vlaneseq
        %v2432 = vshrl.u32 %v2431, 7
        %v2433 = vsub.s32 0, %v2432
        %v2434 = vrot.slane %v2429, %v2433
        %v2436 = vadd.f32 %v2367, %v2434
        %v2437 = vadd.f32 %v2370, %v2434
        %v2438 = vadd.f32 %v2375, %v2434
        %v2439 = vadd.f32 %v2378, %v2434
        %v2440 = vadd.f32 %v2383, %v2434
        %v2441 = vadd.f32 %v2386, %v2434
        %v2442 = vadd.f32 %v2391, %v2434
        %v2443 = vadd.f32 %v2394, %v2434
        %v2444 = vadd.f32 %v2399, %v2434
        %v2445 = vadd.f32 %v2402, %v2434
        %v2446 = vadd.f32 %v2407, %v2434
        %v2447 = vadd.f32 %v2410, %v2434
        %v2448 = vadd.f32 %v2415, %v2434
        %v2449 = vadd.f32 %v2418, %v2434
        %v2450 = vadd.f32 %v2423, %v2434
        %v2451 = vadd.f32 %v2426, %v2434
        %vm2452 = vcmp.ge.f32.partialorder %v2436, 0.0
        %vm2453 = vcmp.ge.f32.partialorder %v2437, 0.0
        %vm2454 = vcmp.ge.f32.partialorder %v2438, 0.0
        %vm2455 = vcmp.ge.f32.partialorder %v2439, 0.0
        %vm2456 = vcmp.ge.f32.partialorder %v2440, 0.0
        %vm2457 = vcmp.ge.f32.partialorder %v2441, 0.0
        %vm2458 = vcmp.ge.f32.partialorder %v2442, 0.0
        %vm2459 = vcmp.ge.f32.partialorder %v2443, 0.0
        %vm2460 = vcmp.ge.f32.partialorder %v2444, 0.0
        %vm2461 = vcmp.ge.f32.partialorder %v2445, 0.0
        %vm2462 = vcmp.ge.f32.partialorder %v2446, 0.0
        %vm2463 = vcmp.ge.f32.partialorder %v2447, 0.0
        %vm2464 = vcmp.ge.f32.partialorder %v2448, 0.0
        %vm2465 = vcmp.ge.f32.partialorder %v2449, 0.0
        %vm2466 = vcmp.ge.f32.partialorder %v2450, 0.0
        %vm2467 = vcmp.ge.f32.partialorder %v2451, 0.0
        %v2468 = vld [vmem:[%s9] sm:$0x1]
        %v2470 = vlaneseq
        %v2471 = vshrl.u32 %v2470, 7
        %v2472 = vsub.s32 0, %v2471
        %v2473 = vrot.slane %v2468, %v2472
        %v2475 = vmul.f32 %v2473, %v2436
        %v2476 = vmul.f32 %v2473, %v2437
        %v2477 = vmul.f32 %v2473, %v2438
        %v2478 = vmul.f32 %v2473, %v2439
        %v2479 = vmul.f32 %v2473, %v2440
        %v2480 = vmul.f32 %v2473, %v2441
        %v2481 = vmul.f32 %v2473, %v2442
        %v2482 = vmul.f32 %v2473, %v2443
        %v2483 = vmul.f32 %v2473, %v2444
        %v2484 = vmul.f32 %v2473, %v2445
        %v2485 = vmul.f32 %v2473, %v2446
        %v2486 = vmul.f32 %v2473, %v2447
        %v2487 = vmul.f32 %v2473, %v2448
        %v2488 = vmul.f32 %v2473, %v2449
        %v2489 = vmul.f32 %v2473, %v2450
        %v2490 = vmul.f32 %v2473, %v2451
        %v2491 = vsel %vm2452, %v2436, %v2475
        %v2492 = vsel %vm2453, %v2437, %v2476
        %v2493 = vsel %vm2454, %v2438, %v2477
        %v2494 = vsel %vm2455, %v2439, %v2478
        %v2495 = vsel %vm2456, %v2440, %v2479
        %v2496 = vsel %vm2457, %v2441, %v2480
        %v2497 = vsel %vm2458, %v2442, %v2481
        %v2498 = vsel %vm2459, %v2443, %v2482
        %v2499 = vsel %vm2460, %v2444, %v2483
        %v2500 = vsel %vm2461, %v2445, %v2484
        %v2501 = vsel %vm2462, %v2446, %v2485
        %v2502 = vsel %vm2463, %v2447, %v2486
        %v2503 = vsel %vm2464, %v2448, %v2487
        %v2504 = vsel %vm2465, %v2449, %v2488
        %v2505 = vsel %vm2466, %v2450, %v2489
        %v2506 = vsel %vm2467, %v2451, %v2490
        %v2507 = vld [vmem:[%s10] sm:$0x1]
        %v2509 = vlaneseq
        %v2510 = vshrl.u32 %v2509, 7
        %v2511 = vsub.s32 0, %v2510
        %v2512 = vrot.slane %v2507, %v2511
        %v2514 = vadd.f32 %v2491, %v2512
        %v2515 = vadd.f32 %v2492, %v2512
        %v2516 = vadd.f32 %v2493, %v2512
        %v2517 = vadd.f32 %v2494, %v2512
        %v2518 = vadd.f32 %v2495, %v2512
        %v2519 = vadd.f32 %v2496, %v2512
        %v2520 = vadd.f32 %v2497, %v2512
        %v2521 = vadd.f32 %v2498, %v2512
        %v2522 = vadd.f32 %v2499, %v2512
        %v2523 = vadd.f32 %v2500, %v2512
        %v2524 = vadd.f32 %v2501, %v2512
        %v2525 = vadd.f32 %v2502, %v2512
        %v2526 = vadd.f32 %v2503, %v2512
        %v2527 = vadd.f32 %v2504, %v2512
        %v2528 = vadd.f32 %v2505, %v2512
        %v2529 = vadd.f32 %v2506, %v2512
        %2530 = vst [vmem:[%s447] sm:$0xff] %v2514
        %2531 = vst [vmem:[%s447 + $0x8] sm:$0xff] %v2515
        %2532 = vst [vmem:[%s447 + $0x10] sm:$0xff] %v2516
        %2533 = vst [vmem:[%s447 + $0x18] sm:$0xff] %v2517
        %2534 = vst [vmem:[%s447 + $0x20] sm:$0xff] %v2518
        %2535 = vst [vmem:[%s447 + $0x28] sm:$0xff] %v2519
        %2536 = vst [vmem:[%s447 + $0x30] sm:$0xff] %v2520
        %2537 = vst [vmem:[%s447 + $0x38] sm:$0xff] %v2521
        %2538 = vst [vmem:[%s447 + $0x40] sm:$0xff] %v2522
        %2539 = vst [vmem:[%s447 + $0x48] sm:$0xff] %v2523
        %2540 = vst [vmem:[%s447 + $0x50] sm:$0xff] %v2524
        %2541 = vst [vmem:[%s447 + $0x58] sm:$0xff] %v2525
        %2542 = vst [vmem:[%s447 + $0x60] sm:$0xff] %v2526
        %2543 = vst [vmem:[%s447 + $0x68] sm:$0xff] %v2527
        %2544 = vst [vmem:[%s447 + $0x70] sm:$0xff] %v2528
        %2545 = vst [vmem:[%s447 + $0x78] sm:$0xff] %v2529
        %s2546 = sand.u32 %s287, 1
        %s2547 = scalar_lea.sflag [#allocation4], %s2546
        %s2548 = sand.u32 %s287, 1
        %s2549 = smul.addr %s2548, 128
        %s2550 = scalar_lea.vmem [#allocation8], %s2549
        // Predicated region
        $region77: #{tpu_custom_call.1} parent=63 // pred_check
          %p2551 = pneg %p297
        $region78: #{tpu_custom_call.1} parent=63 // pred_check_branch
          %2553 = sbr.rel (%p2551) target = $region80
        $region79: #{tpu_custom_call.1} parent=63 // pred_region
          %s2554 = smul.u32 8, %s34
          %s2556 = ssub.s32 2048, 2048
          %2557 = vsyncadd %s2547, %s2556
          %s2558 = smul.addr %s2554, 2
          %s2559 = smul.addr %s33, 32
          %s2560 = sadd.s32 %s2558, %s2559
          %s2561 = smul.addr %s2560, 128
          %s2562 = scalar_lea.hbm %s11, %s2561
          %s2563 = sshll.u32 %s2550, 4
          %s2564 = int_to_ptr.vmem [resolvable:$true] %s2563
          %2569 = dma.vmem_to_hbm [thread:$0]  %s2564, 2048, %s2562, %s2547, 128, 128, 8
        $region80: #{tpu_custom_call.1} parent=63 // pred_fallthru
          _
      $region64: #{tpu_custom_call.1} parent=5 // pred_fallthru
        _
      %p2570 = scmp.le.s32.totalorder 2, %s24
      // Predicated region
      $region81: #{tpu_custom_call.1} parent=5 // pred_check
        %p2571 = pneg %p2570
      $region82: #{tpu_custom_call.1} parent=5 // pred_check_branch
        %2573 = sbr.rel (%p2571) target = $region84
      $region83: #{tpu_custom_call.1} parent=5 // pred_region
        %s2574 = ssub.s32 %s24, 2
        // Predicated region
        $region85: #{tpu_custom_call.1} parent=83 // pred_check
          %p2575 = pneg %p303
        $region86: #{tpu_custom_call.1} parent=83 // pred_check_branch
          %2577 = sbr.rel (%p2575) target = $region88
        $region87: #{tpu_custom_call.1} parent=83 // pred_region
          %s2578 = sand.u32 %s288, 1
          %s2579 = scalar_lea.sflag [#allocation4], %s2578
          %s2580 = sand.u32 %s288, 1
          %s2581 = smul.addr %s2580, 128
          %s2582 = scalar_lea.vmem [#allocation8], %s2581
          %2583 = dma.done %s2579, 2048
        $region88: #{tpu_custom_call.1} parent=83 // pred_fallthru
          _
      $region84: #{tpu_custom_call.1} parent=5 // pred_fallthru
        _
    $region6: #{tpu_custom_call.1} parent=1 // loop_footer
      %s28 = sadd.s32 1, %s24
    $region7: #{tpu_custom_call.1} parent=1 // loop_footer_branch
      %23 = sbr.rel target = $region3
    $region8: #{tpu_custom_call.1} parent=1 // loop_exit
      _
    %2584 = vsyncpa [#allocation3], 1
    %s2585 = scalar_lea.sflag [#allocation3], 1
    %2586 = vsyncpa %s2585, 1
    %2587 = vsyncpa [#allocation6], 1
    %2588 = vsyncpa [#allocation4], 1
    %s2589 = scalar_lea.sflag [#allocation4], 1
    %2590 = vsyncpa %s2589, 1

// kernel: tpu_custom_call.1
$region0: #{tpu_custom_call.1}
  #allocation0 [shape = 'u32[]', space=smem, size = 0x4, offset = 0x4, fixed_abs, tag = 'smem constant byte address 0x4 - core index']
  #allocation1 [shape = 'u32[144,128]{1,0:T(1,128)}', space=vmem, size = 0x12000, scoped, tag = 'internal scratch']
  %s0 = inlined_call_operand.hbm [shape: f32[2,16,16,128], index: 0, kind: input, shape index: {}]
  %s1 = inlined_call_operand.vmem [shape: f32[1,128], index: 1, kind: input, shape index: {}]
  %s2 = inlined_call_operand.hbm [shape: bf16[3,384,128], index: 2, kind: input, shape index: {}]
  %s3 = inlined_call_operand.vmem [shape: f32[1,128], index: 3, kind: input, shape index: {}]
  %s4 = inlined_call_operand.vmem [shape: f32[1,128], index: 4, kind: input, shape index: {}]
  %s5 = inlined_call_operand.vmem [shape: f32[1,128], index: 5, kind: input, shape index: {}]
  %s6 = inlined_call_operand.vmem [shape: f32[1,128], index: 6, kind: input, shape index: {}]
  %s7 = inlined_call_operand.hbm [shape: bf16[128,128], index: 7, kind: input, shape index: {}]
  %s8 = inlined_call_operand.vmem [shape: f32[1,128], index: 8, kind: input, shape index: {}]
  %s9 = inlined_call_operand.vmem [shape: f32[1,128], index: 9, kind: input, shape index: {}]
  %s10 = inlined_call_operand.vmem [shape: f32[1,128], index: 10, kind: input, shape index: {}]
  %s11 = inlined_call_operand.hbm [shape: f32[2,16,16,128], index: 11, kind: output, shape index: {}]
  %s12 = sld [smem:[#allocation0]]
  $region89: #{tpu_custom_call.1} parent=0
    _
  %s14 = ssub.s32 1, %s12
  %s15 = scalar_select 0, %s14, %s12
  $region1: #{tpu_custom_call.1} parent=0
    #allocation2 [shape = 'u8[262144]{0}', space=vmem, size = 0x40000, scoped, tag = 'input window, operand 0']
    #allocation3 [shape = 's32[2]{0}', space=sflag, size = 0x8, scoped, tag = 'scoped memory for tpu_custom_call.1']
    #allocation4 [shape = 's32[2]{0}', space=sflag, size = 0x8, scoped, tag = 'scoped memory for tpu_custom_call.1']
    #allocation5 [shape = 'u8[294912]{0}', space=vmem, size = 0x48000, scoped, tag = 'input window, operand 2, single buffered']
    #allocation6 [shape = 's32[1]{0}', space=sflag, size = 0x4, scoped, tag = 'scoped memory for tpu_custom_call.1']
    #allocation7 [shape = 'u8[32768]{0}', space=vmem, size = 0x8000, scoped, tag = 'input window, operand 7, single buffered']
    #allocation8 [shape = 'u8[131072]{0}', space=vmem, size = 0x20000, scoped, tag = 'output window, operand 0']
    %16 = vsyncpa [#allocation3], 0
    %s17 = scalar_lea.sflag [#allocation3], 1
    %18 = vsyncpa %s17, 0
    %19 = vsyncpa [#allocation6], 0
    %20 = vsyncpa [#allocation4], 0
    %s21 = scalar_lea.sflag [#allocation4], 1
    %22 = vsyncpa %s21, 0
    loop: start=0, step=1, limit=6
    $region2: #{tpu_custom_call.1} parent=1 // loop_pre_header
      _
    $region3: #{tpu_custom_call.1} parent=1 // loop_header
      %s24 = sphi 0, %s28
      %p25 = scmp.ge.s32.totalorder %s24, 6
      %s31 = sphi 0, %s43
      %s32 = sphi 0, %s39
      %s33 = sphi 0, %s31
      %s34 = sphi 0, %s32
      %s35 = sphi 0, %s33
      %s36 = sphi 0, %s34
      %s46 = sphi 0, %s48
      %s49 = sphi 0, %s46
      %s50 = sphi 0, %s49
      %s66 = sphi 0, %s50
      %s70 = sphi 0, %s70
      %s72 = sphi 0, %s70
      %s73 = sphi 0, %s72
      %s87 = sphi 0, %s73
      %s91 = sphi 0, %s91
      %s93 = sphi 0, %s91
      %s94 = sphi 0, %s93
      %s108 = sphi 0, %s94
      %s112 = sphi 0, %s112
      %s114 = sphi 0, %s112
      %s115 = sphi 0, %s114
      %s129 = sphi 0, %s115
      %s133 = sphi 0, %s133
      %s135 = sphi 0, %s133
      %s136 = sphi 0, %s135
      %s150 = sphi 0, %s136
      %s154 = sphi 0, %s154
      %s156 = sphi 0, %s154
      %s157 = sphi 0, %s156
      %s171 = sphi 0, %s157
      %s175 = sphi 0, %s175
      %s177 = sphi 0, %s175
      %s178 = sphi 0, %s177
      %s192 = sphi 0, %s178
      %s196 = sphi 0, %s196
      %s198 = sphi 0, %s196
      %s199 = sphi 0, %s198
      %s213 = sphi 0, %s199
      %s217 = sphi 0, %s217
      %s219 = sphi 0, %s217
      %s220 = sphi 0, %s219
      %s234 = sphi 0, %s220
      %s238 = sphi 0, %s238
      %s240 = sphi 0, %s238
      %s241 = sphi 0, %s240
      %s255 = sphi 0, %s241
      %s259 = sphi 0, %s259
      %s261 = sphi 0, %s259
      %s262 = sphi 0, %s261
      %s276 = sphi 0, %s262
      %s284 = sphi 0, %s286
      %s287 = sphi 0, %s284
      %s288 = sphi 0, %s287
      %s304 = sphi 0, %s288
    $region4: #{tpu_custom_call.1} parent=1 // loop_header_branch
      %27 = sbr.rel (%p25) target = $region8
    $region5: #{tpu_custom_call.1} parent=1 // loop_body
      %s29 = ssub.s32 %s24, 1
      %s30 = ssub.s32 %s24, 2
      %s37 = sadd.s32 1, %s32
      %p38 = scmp.ge.s32.totalorder %s37, 2
      %s39 = scalar_select %p38, 0, %s37
      %s40 = sadd.s32 1, %s31
      %s41 = scalar_select %p38, %s40, %s31
      %p42 = scmp.ge.s32.totalorder %s41, 2
      %s43 = scalar_select %p42, 0, %s41
      %s44 = ssub.s32 %s31, %s43
      %p45 = scmp.eq.s32.totalorder %s44, 0
      %s47 = sadd.s32 %s46, 1
      %s48 = scalar_select %p45, %s46, %s47
      %p51 = pneg %p45
      %p52 = scmp.eq.s32.totalorder %s24, 3
      %p53 = por %p51, %p52
      %p54 = scmp.ne.s32.totalorder %s46, %s49
      %p55 = scmp.eq.s32.totalorder %s24, 0
      %p56 = por %p54, %p55
      %p57 = scmp.ne.s32.totalorder %s46, %s49
      %p58 = scmp.eq.s32.totalorder %s29, 3
      %p59 = por %p57, %p58
      %p60 = scmp.ne.s32.totalorder %s49, %s50
      %p61 = scmp.eq.s32.totalorder %s29, 0
      %p62 = por %p60, %p61
      %p63 = scmp.ne.s32.totalorder %s49, %s50
      %p64 = scmp.eq.s32.totalorder %s30, 3
      %p65 = por %p63, %p64
      %p67 = scmp.ne.s32.totalorder %s50, %s66
      %p68 = scmp.eq.s32.totalorder %s30, 0
      %p69 = por %p67, %p68
      %s71 = sadd.s32 %s70, 1
      %p74 = scmp.eq.s32.totalorder %s24, 3
      %p75 = scmp.ne.s32.totalorder %s70, %s72
      %p76 = scmp.eq.s32.totalorder %s24, 0
      %p77 = por %p75, %p76
      %p78 = scmp.ne.s32.totalorder %s70, %s72
      %p79 = scmp.eq.s32.totalorder %s29, 3
      %p80 = por %p78, %p79
      %p81 = scmp.ne.s32.totalorder %s72, %s73
      %p82 = scmp.eq.s32.totalorder %s29, 0
      %p83 = por %p81, %p82
      %p84 = scmp.ne.s32.totalorder %s72, %s73
      %p85 = scmp.eq.s32.totalorder %s30, 3
      %p86 = por %p84, %p85
      %p88 = scmp.ne.s32.totalorder %s73, %s87
      %p89 = scmp.eq.s32.totalorder %s30, 0
      %p90 = por %p88, %p89
      %s92 = sadd.s32 %s91, 1
      %p95 = scmp.eq.s32.totalorder %s24, 3
      %p96 = scmp.ne.s32.totalorder %s91, %s93
      %p97 = scmp.eq.s32.totalorder %s24, 0
      %p98 = por %p96, %p97
      %p99 = scmp.ne.s32.totalorder %s91, %s93
      %p100 = scmp.eq.s32.totalorder %s29, 3
      %p101 = por %p99, %p100
      %p102 = scmp.ne.s32.totalorder %s93, %s94
      %p103 = scmp.eq.s32.totalorder %s29, 0
      %p104 = por %p102, %p103
      %p105 = scmp.ne.s32.totalorder %s93, %s94
      %p106 = scmp.eq.s32.totalorder %s30, 3
      %p107 = por %p105, %p106
      %p109 = scmp.ne.s32.totalorder %s94, %s108
      %p110 = scmp.eq.s32.totalorder %s30, 0
      %p111 = por %p109, %p110
      %s113 = sadd.s32 %s112, 1
      %p116 = scmp.eq.s32.totalorder %s24, 3
      %p117 = scmp.ne.s32.totalorder %s112, %s114
      %p118 = scmp.eq.s32.totalorder %s24, 0
      %p119 = por %p117, %p118
      %p120 = scmp.ne.s32.totalorder %s112, %s114
      %p121 = scmp.eq.s32.totalorder %s29, 3
      %p122 = por %p120, %p121
      %p123 = scmp.ne.s32.totalorder %s114, %s115
      %p124 = scmp.eq.s32.totalorder %s29, 0
      %p125 = por %p123, %p124
      %p126 = scmp.ne.s32.totalorder %s114, %s115
      %p127 = scmp.eq.s32.totalorder %s30, 3
      %p128 = por %p126, %p127
      %p130 = scmp.ne.s32.totalorder %s115, %s129
      %p131 = scmp.eq.s32.totalorder %s30, 0
      %p132 = por %p130, %p131
      %s134 = sadd.s32 %s133, 1
      %p137 = scmp.eq.s32.totalorder %s24, 3
      %p138 = scmp.ne.s32.totalorder %s133, %s135
      %p139 = scmp.eq.s32.totalorder %s24, 0
      %p140 = por %p138, %p139
      %p141 = scmp.ne.s32.totalorder %s133, %s135
      %p142 = scmp.eq.s32.totalorder %s29, 3
      %p143 = por %p141, %p142
      %p144 = scmp.ne.s32.totalorder %s135, %s136
      %p145 = scmp.eq.s32.totalorder %s29, 0
      %p146 = por %p144, %p145
      %p147 = scmp.ne.s32.totalorder %s135, %s136
      %p148 = scmp.eq.s32.totalorder %s30, 3
      %p149 = por %p147, %p148
      %p151 = scmp.ne.s32.totalorder %s136, %s150
      %p152 = scmp.eq.s32.totalorder %s30, 0
      %p153 = por %p151, %p152
      %s155 = sadd.s32 %s154, 1
      %p158 = scmp.eq.s32.totalorder %s24, 3
      %p159 = scmp.ne.s32.totalorder %s154, %s156
      %p160 = scmp.eq.s32.totalorder %s24, 0
      %p161 = por %p159, %p160
      %p162 = scmp.ne.s32.totalorder %s154, %s156
      %p163 = scmp.eq.s32.totalorder %s29, 3
      %p164 = por %p162, %p163
      %p165 = scmp.ne.s32.totalorder %s156, %s157
      %p166 = scmp.eq.s32.totalorder %s29, 0
      %p167 = por %p165, %p166
      %p168 = scmp.ne.s32.totalorder %s156, %s157
      %p169 = scmp.eq.s32.totalorder %s30, 3
      %p170 = por %p168, %p169
      %p172 = scmp.ne.s32.totalorder %s157, %s171
      %p173 = scmp.eq.s32.totalorder %s30, 0
      %p174 = por %p172, %p173
      %s176 = sadd.s32 %s175, 1
      %p179 = scmp.eq.s32.totalorder %s24, 3
      %p180 = scmp.ne.s32.totalorder %s175, %s177
      %p181 = scmp.eq.s32.totalorder %s24, 0
      %p182 = por %p180, %p181
      %p183 = scmp.ne.s32.totalorder %s175, %s177
      %p184 = scmp.eq.s32.totalorder %s29, 3
      %p185 = por %p183, %p184
      %p186 = scmp.ne.s32.totalorder %s177, %s178
      %p187 = scmp.eq.s32.totalorder %s29, 0
      %p188 = por %p186, %p187
      %p189 = scmp.ne.s32.totalorder %s177, %s178
      %p190 = scmp.eq.s32.totalorder %s30, 3
      %p191 = por %p189, %p190
      %p193 = scmp.ne.s32.totalorder %s178, %s192
      %p194 = scmp.eq.s32.totalorder %s30, 0
      %p195 = por %p193, %p194
      %s197 = sadd.s32 %s196, 1
      %p200 = scmp.eq.s32.totalorder %s24, 3
      %p201 = scmp.ne.s32.totalorder %s196, %s198
      %p202 = scmp.eq.s32.totalorder %s24, 0
      %p203 = por %p201, %p202
      %p204 = scmp.ne.s32.totalorder %s196, %s198
      %p205 = scmp.eq.s32.totalorder %s29, 3
      %p206 = por %p204, %p205
      %p207 = scmp.ne.s32.totalorder %s198, %s199
      %p208 = scmp.eq.s32.totalorder %s29, 0
      %p209 = por %p207, %p208
      %p210 = scmp.ne.s32.totalorder %s198, %s199
      %p211 = scmp.eq.s32.totalorder %s30, 3
      %p212 = por %p210, %p211
      %p214 = scmp.ne.s32.totalorder %s199, %s213
      %p215 = scmp.eq.s32.totalorder %s30, 0
      %p216 = por %p214, %p215
      %s218 = sadd.s32 %s217, 1
      %p221 = scmp.eq.s32.totalorder %s24, 3
      %p222 = scmp.ne.s32.totalorder %s217, %s219
      %p223 = scmp.eq.s32.totalorder %s24, 0
      %p224 = por %p222, %p223
      %p225 = scmp.ne.s32.totalorder %s217, %s219
      %p226 = scmp.eq.s32.totalorder %s29, 3
      %p227 = por %p225, %p226
      %p228 = scmp.ne.s32.totalorder %s219, %s220
      %p229 = scmp.eq.s32.totalorder %s29, 0
      %p230 = por %p228, %p229
      %p231 = scmp.ne.s32.totalorder %s219, %s220
      %p232 = scmp.eq.s32.totalorder %s30, 3
      %p233 = por %p231, %p232
      %p235 = scmp.ne.s32.totalorder %s220, %s234
      %p236 = scmp.eq.s32.totalorder %s30, 0
      %p237 = por %p235, %p236
      %s239 = sadd.s32 %s238, 1
      %p242 = scmp.eq.s32.totalorder %s24, 3
      %p243 = scmp.ne.s32.totalorder %s238, %s240
      %p244 = scmp.eq.s32.totalorder %s24, 0
      %p245 = por %p243, %p244
      %p246 = scmp.ne.s32.totalorder %s238, %s240
      %p247 = scmp.eq.s32.totalorder %s29, 3
      %p248 = por %p246, %p247
      %p249 = scmp.ne.s32.totalorder %s240, %s241
      %p250 = scmp.eq.s32.totalorder %s29, 0
      %p251 = por %p249, %p250
      %p252 = scmp.ne.s32.totalorder %s240, %s241
      %p253 = scmp.eq.s32.totalorder %s30, 3
      %p254 = por %p252, %p253
      %p256 = scmp.ne.s32.totalorder %s241, %s255
      %p257 = scmp.eq.s32.totalorder %s30, 0
      %p258 = por %p256, %p257
      %s260 = sadd.s32 %s259, 1
      %p263 = scmp.eq.s32.totalorder %s24, 3
      %p264 = scmp.ne.s32.totalorder %s259, %s261
      %p265 = scmp.eq.s32.totalorder %s24, 0
      %p266 = por %p264, %p265
      %p267 = scmp.ne.s32.totalorder %s259, %s261
      %p268 = scmp.eq.s32.totalorder %s29, 3
      %p269 = por %p267, %p268
      %p270 = scmp.ne.s32.totalorder %s261, %s262
      %p271 = scmp.eq.s32.totalorder %s29, 0
      %p272 = por %p270, %p271
      %p273 = scmp.ne.s32.totalorder %s261, %s262
      %p274 = scmp.eq.s32.totalorder %s30, 3
      %p275 = por %p273, %p274
      %p277 = scmp.ne.s32.totalorder %s262, %s276
      %p278 = scmp.eq.s32.totalorder %s30, 0
      %p279 = por %p277, %p278
      %s280 = ssub.s32 %s31, %s43
      %s281 = ssub.s32 %s32, %s39
      %s282 = sor.u32 %s280, %s281
      %p283 = scmp.eq.s32.totalorder %s282, 0
      %s285 = sadd.s32 %s284, 1
      %s286 = scalar_select %p283, %s284, %s285
      %p289 = pneg %p283
      %p290 = scmp.eq.s32.totalorder %s24, 3
      %p291 = por %p289, %p290
      %p292 = scmp.ne.s32.totalorder %s284, %s287
      %p293 = scmp.eq.s32.totalorder %s24, 0
      %p294 = por %p292, %p293
      %p295 = scmp.ne.s32.totalorder %s284, %s287
      %p296 = scmp.eq.s32.totalorder %s29, 3
      %p297 = por %p295, %p296
      %p298 = scmp.ne.s32.totalorder %s287, %s288
      %p299 = scmp.eq.s32.totalorder %s29, 0
      %p300 = por %p298, %p299
      %p301 = scmp.ne.s32.totalorder %s287, %s288
      %p302 = scmp.eq.s32.totalorder %s30, 3
      %p303 = por %p301, %p302
      %p305 = scmp.ne.s32.totalorder %s288, %s304
      %p306 = scmp.eq.s32.totalorder %s30, 0
      %p307 = por %p305, %p306
      %p308 = scmp.le.s32.totalorder 1, %s24
      %p309 = scmp.lt.s32.totalorder %s24, 5
      %p310 = pnand %p308, %p309
      %p311 = pneg %p310
      // Predicated region
      $region9: #{tpu_custom_call.1} parent=5 // pred_check
        _
      $region10: #{tpu_custom_call.1} parent=5 // pred_check_branch
        %313 = sbr.rel (%p310) target = $region12
      $region11: #{tpu_custom_call.1} parent=5 // pred_region
        %s314 = ssub.s32 %s24, 1
        // Predicated region
        $region13: #{tpu_custom_call.1} parent=11 // pred_check
          %p315 = pneg %p83
        $region14: #{tpu_custom_call.1} parent=11 // pred_check_branch
          %317 = sbr.rel (%p315) target = $region16
        $region15: #{tpu_custom_call.1} parent=11 // pred_region
          _
        $region16: #{tpu_custom_call.1} parent=11 // pred_fallthru
          _
        // Predicated region
        $region17: #{tpu_custom_call.1} parent=11 // pred_check
          %p318 = pneg %p104
        $region18: #{tpu_custom_call.1} parent=11 // pred_check_branch
          %320 = sbr.rel (%p318) target = $region20
        $region19: #{tpu_custom_call.1} parent=11 // pred_region
          %s322 = ssub.s32 9216, 9216
          %323 = vsyncadd [#allocation6], %s322
          %s324 = sshll.u32 [#allocation5], 4
          %s325 = int_to_ptr.vmem [resolvable:$true] %s324
          %330 = dma.hbm_to_vmem [thread:$0]  %s2, 9216, %s325, [#allocation6], 64, 64, 4
        $region20: #{tpu_custom_call.1} parent=11 // pred_fallthru
          _
        // Predicated region
        $region21: #{tpu_custom_call.1} parent=11 // pred_check
          %p331 = pneg %p125
        $region22: #{tpu_custom_call.1} parent=11 // pred_check_branch
          %333 = sbr.rel (%p331) target = $region24
        $region23: #{tpu_custom_call.1} parent=11 // pred_region
          _
        $region24: #{tpu_custom_call.1} parent=11 // pred_fallthru
          _
        // Predicated region
        $region25: #{tpu_custom_call.1} parent=11 // pred_check
          %p334 = pneg %p146
        $region26: #{tpu_custom_call.1} parent=11 // pred_check_branch
          %336 = sbr.rel (%p334) target = $region28
        $region27: #{tpu_custom_call.1} parent=11 // pred_region
          _
        $region28: #{tpu_custom_call.1} parent=11 // pred_fallthru
          _
        // Predicated region
        $region29: #{tpu_custom_call.1} parent=11 // pred_check
          %p337 = pneg %p167
        $region30: #{tpu_custom_call.1} parent=11 // pred_check_branch
          %339 = sbr.rel (%p337) target = $region32
        $region31: #{tpu_custom_call.1} parent=11 // pred_region
          _
        $region32: #{tpu_custom_call.1} parent=11 // pred_fallthru
          _
        // Predicated region
        $region33: #{tpu_custom_call.1} parent=11 // pred_check
          %p340 = pneg %p188
        $region34: #{tpu_custom_call.1} parent=11 // pred_check_branch
          %342 = sbr.rel (%p340) target = $region36
        $region35: #{tpu_custom_call.1} parent=11 // pred_region
          _
        $region36: #{tpu_custom_call.1} parent=11 // pred_fallthru
          _
        // Predicated region
        $region37: #{tpu_custom_call.1} parent=11 // pred_check
          %p343 = pneg %p209
        $region38: #{tpu_custom_call.1} parent=11 // pred_check_branch
          %345 = sbr.rel (%p343) target = $region40
        $region39: #{tpu_custom_call.1} parent=11 // pred_region
          %s347 = ssub.s32 1024, 1024
          %348 = vsyncadd [#allocation6], %s347
          %s349 = sshll.u32 [#allocation7], 4
          %s350 = int_to_ptr.vmem [resolvable:$true] %s349
          %355 = dma.hbm_to_vmem [thread:$0]  %s7, 1024, %s350, [#allocation6], 64, 64, 4
        $region40: #{tpu_custom_call.1} parent=11 // pred_fallthru
          _
        // Predicated region
        $region41: #{tpu_custom_call.1} parent=11 // pred_check
          %p356 = pneg %p230
        $region42: #{tpu_custom_call.1} parent=11 // pred_check_branch
          %358 = sbr.rel (%p356) target = $region44
        $region43: #{tpu_custom_call.1} parent=11 // pred_region
          _
        $region44: #{tpu_custom_call.1} parent=11 // pred_fallthru
          _
        // Predicated region
        $region45: #{tpu_custom_call.1} parent=11 // pred_check
          %p359 = pneg %p251
        $region46: #{tpu_custom_call.1} parent=11 // pred_check_branch
          %361 = sbr.rel (%p359) target = $region48
        $region47: #{tpu_custom_call.1} parent=11 // pred_region
          _
        $region48: #{tpu_custom_call.1} parent=11 // pred_fallthru
          _
        // Predicated region
        $region49: #{tpu_custom_call.1} parent=11 // pred_check
          %p362 = pneg %p272
        $region50: #{tpu_custom_call.1} parent=11 // pred_check_branch
          %364 = sbr.rel (%p362) target = $region52
        $region51: #{tpu_custom_call.1} parent=11 // pred_region
          _
        $region52: #{tpu_custom_call.1} parent=11 // pred_fallthru
          _
      $region12: #{tpu_custom_call.1} parent=5 // pred_fallthru
        _
      %p365 = scmp.lt.s32.totalorder %s24, 4
      // Predicated region
      $region53: #{tpu_custom_call.1} parent=5 // pred_check
        %p366 = pneg %p365
      $region54: #{tpu_custom_call.1} parent=5 // pred_check_branch
        %368 = sbr.rel (%p366) target = $region56
      $region55: #{tpu_custom_call.1} parent=5 // pred_region
        // Predicated region
        $region57: #{tpu_custom_call.1} parent=55 // pred_check
          %p369 = pneg %p56
        $region58: #{tpu_custom_call.1} parent=55 // pred_check_branch
          %371 = sbr.rel (%p369) target = $region60
        $region59: #{tpu_custom_call.1} parent=55 // pred_region
          %s372 = sand.u32 %s46, 1
          %s373 = scalar_lea.sflag [#allocation3], %s372
          %s374 = sand.u32 %s46, 1
          %s375 = smul.addr %s374, 256
          %s376 = scalar_lea.vmem [#allocation2], %s375
          %s378 = ssub.s32 4096, 4096
          %379 = vsyncadd %s373, %s378
          %s380 = smul.addr %s31, 32
          %s381 = smul.addr %s380, 128
          %s382 = scalar_lea.hbm %s0, %s381
          %s383 = sshll.u32 %s376, 4
          %s384 = int_to_ptr.vmem [resolvable:$true] %s383
          %389 = dma.hbm_to_vmem [thread:$0]  %s382, 4096, %s384, %s373, 128, 128, 8
        $region60: #{tpu_custom_call.1} parent=55 // pred_fallthru
          _
      $region56: #{tpu_custom_call.1} parent=5 // pred_fallthru
        _
      %p390 = scmp.le.s32.totalorder 1, %s24
      %p391 = scmp.lt.s32.totalorder %s24, 5
      %p392 = pnand %p390, %p391
      %p393 = pneg %p392
      // Predicated region
      $region61: #{tpu_custom_call.1} parent=5 // pred_check
        _
      $region62: #{tpu_custom_call.1} parent=5 // pred_check_branch
        %395 = sbr.rel (%p392) target = $region64
      $region63: #{tpu_custom_call.1} parent=5 // pred_region
        %s396 = ssub.s32 %s24, 1
        %s397 = sand.u32 %s49, 1
        %s398 = scalar_lea.sflag [#allocation3], %s397
        %s399 = sand.u32 %s49, 1
        %s400 = smul.addr %s399, 256
        %s401 = scalar_lea.vmem [#allocation2], %s400
        // Predicated region
        $region65: #{tpu_custom_call.1} parent=63 // pred_check
          %p402 = pneg %p62
        $region66: #{tpu_custom_call.1} parent=63 // pred_check_branch
          %404 = sbr.rel (%p402) target = $region68
        $region67: #{tpu_custom_call.1} parent=63 // pred_region
          %405 = dma.done %s398, 4096
        $region68: #{tpu_custom_call.1} parent=63 // pred_fallthru
          _
        // Predicated region
        $region69: #{tpu_custom_call.1} parent=63 // pred_check
          %p406 = pneg %p104
        $region70: #{tpu_custom_call.1} parent=63 // pred_check_branch
          %408 = sbr.rel (%p406) target = $region72
        $region71: #{tpu_custom_call.1} parent=63 // pred_region
          %409 = dma.done [#allocation6], 9216
        $region72: #{tpu_custom_call.1} parent=63 // pred_fallthru
          _
        // Predicated region
        $region73: #{tpu_custom_call.1} parent=63 // pred_check
          %p410 = pneg %p209
        $region74: #{tpu_custom_call.1} parent=63 // pred_check_branch
          %412 = sbr.rel (%p410) target = $region76
        $region75: #{tpu_custom_call.1} parent=63 // pred_region
          %413 = dma.done [#allocation6], 1024
        $region76: #{tpu_custom_call.1} parent=63 // pred_fallthru
          _
        %s414 = sand.u32 %s49, 1
        %s415 = scalar_lea.sflag [#allocation3], %s414
        %s416 = sand.u32 %s49, 1
        %s417 = smul.addr %s416, 256
        %s418 = scalar_lea.vmem [#allocation2], %s417
        %p419 = pneg %p62
        %p420 = pneg %p59
        %p421 = pneg %p83
        %p422 = pneg %p80
        %p423 = pneg %p104
        %p424 = pneg %p101
        %p425 = pneg %p125
        %p426 = pneg %p122
        %p427 = pneg %p146
        %p428 = pneg %p143
        %p429 = pneg %p167
        %p430 = pneg %p164
        %p431 = pneg %p188
        %p432 = pneg %p185
        %p433 = pneg %p209
        %p434 = pneg %p206
        %p435 = pneg %p230
        %p436 = pneg %p227
        %p437 = pneg %p251
        %p438 = pneg %p248
        %p439 = pneg %p272
        %p440 = pneg %p269
        %p441 = pneg %p300
        %p442 = pneg %p297
        %s443 = sand.u32 %s287, 1
        %s444 = scalar_lea.sflag [#allocation4], %s443
        %s445 = sand.u32 %s287, 1
        %s446 = smul.addr %s445, 128
        %s447 = scalar_lea.vmem [#allocation8], %s446
        %s448 = smul.u32 8, %s34
        %s450 = smul.u32 %s34, 8
        %s451 = smul.u32 %s450, 16
        %s452 = scalar_lea.vmem %s401, %s451 [#allocation2]
        %v453 = vld [vmem:[%s452] sm:$0xff]
        %v454 = vld [vmem:[%s452 + $0x8] sm:$0xff]
        %v455 = vld [vmem:[%s452 + $0x10] sm:$0xff]
        %v456 = vld [vmem:[%s452 + $0x18] sm:$0xff]
        %v457 = vld [vmem:[%s452 + $0x20] sm:$0xff]
        %v458 = vld [vmem:[%s452 + $0x28] sm:$0xff]
        %v459 = vld [vmem:[%s452 + $0x30] sm:$0xff]
        %v460 = vld [vmem:[%s452 + $0x38] sm:$0xff]
        %v461 = vld [vmem:[%s452 + $0x40] sm:$0xff]
        %v462 = vld [vmem:[%s452 + $0x48] sm:$0xff]
        %v463 = vld [vmem:[%s452 + $0x50] sm:$0xff]
        %v464 = vld [vmem:[%s452 + $0x58] sm:$0xff]
        %v465 = vld [vmem:[%s452 + $0x60] sm:$0xff]
        %v466 = vld [vmem:[%s452 + $0x68] sm:$0xff]
        %v467 = vld [vmem:[%s452 + $0x70] sm:$0xff]
        %v468 = vld [vmem:[%s452 + $0x78] sm:$0xff]
        %v469 = vld [vmem:[%s1] sm:$0x1]
        %v471 = vlaneseq
        %v472 = vshrl.u32 %v471, 7
        %v473 = vsub.s32 0, %v472
        %v474 = vrot.slane %v469, %v473
        %v476 = vadd.f32 %v453, %v474
        %v477 = vadd.f32 %v454, %v474
        %v478 = vadd.f32 %v455, %v474
        %v479 = vadd.f32 %v456, %v474
        %v480 = vadd.f32 %v457, %v474
        %v481 = vadd.f32 %v458, %v474
        %v482 = vadd.f32 %v459, %v474
        %v483 = vadd.f32 %v460, %v474
        %v484 = vadd.f32 %v461, %v474
        %v485 = vadd.f32 %v462, %v474
        %v486 = vadd.f32 %v463, %v474
        %v487 = vadd.f32 %v464, %v474
        %v488 = vadd.f32 %v465, %v474
        %v489 = vadd.f32 %v466, %v474
        %v490 = vadd.f32 %v467, %v474
        %v491 = vadd.f32 %v468, %v474
        %vm492 = vcmp.gt.f32.partialorder %v476, 0.0
        %vm493 = vcmp.gt.f32.partialorder %v477, 0.0
        %vm494 = vcmp.gt.f32.partialorder %v478, 0.0
        %vm495 = vcmp.gt.f32.partialorder %v479, 0.0
        %vm496 = vcmp.gt.f32.partialorder %v480, 0.0
        %vm497 = vcmp.gt.f32.partialorder %v481, 0.0
        %vm498 = vcmp.gt.f32.partialorder %v482, 0.0
        %vm499 = vcmp.gt.f32.partialorder %v483, 0.0
        %vm500 = vcmp.gt.f32.partialorder %v484, 0.0
        %vm501 = vcmp.gt.f32.partialorder %v485, 0.0
        %vm502 = vcmp.gt.f32.partialorder %v486, 0.0
        %vm503 = vcmp.gt.f32.partialorder %v487, 0.0
        %vm504 = vcmp.gt.f32.partialorder %v488, 0.0
        %vm505 = vcmp.gt.f32.partialorder %v489, 0.0
        %vm506 = vcmp.gt.f32.partialorder %v490, 0.0
        %vm507 = vcmp.gt.f32.partialorder %v491, 0.0
        %v508 = vsel %vm492, 1, 0
        %v509 = vsel %vm493, 1, 0
        %v510 = vsel %vm494, 1, 0
        %v511 = vsel %vm495, 1, 0
        %v512 = vsel %vm496, 1, 0
        %v513 = vsel %vm497, 1, 0
        %v514 = vsel %vm498, 1, 0
        %v515 = vsel %vm499, 1, 0
        %v516 = vsel %vm500, 1, 0
        %v517 = vsel %vm501, 1, 0
        %v518 = vsel %vm502, 1, 0
        %v519 = vsel %vm503, 1, 0
        %v520 = vsel %vm504, 1, 0
        %v521 = vsel %vm505, 1, 0
        %v522 = vsel %vm506, 1, 0
        %v523 = vsel %vm507, 1, 0
        %v524 = vcvt.s32.f32 %v508
        %v525 = vcvt.s32.f32 %v509
        %v526 = vcvt.s32.f32 %v510
        %v527 = vcvt.s32.f32 %v511
        %v528 = vcvt.s32.f32 %v512
        %v529 = vcvt.s32.f32 %v513
        %v530 = vcvt.s32.f32 %v514
        %v531 = vcvt.s32.f32 %v515
        %v532 = vcvt.s32.f32 %v516
        %v533 = vcvt.s32.f32 %v517
        %v534 = vcvt.s32.f32 %v518
        %v535 = vcvt.s32.f32 %v519
        %v536 = vcvt.s32.f32 %v520
        %v537 = vcvt.s32.f32 %v521
        %v538 = vcvt.s32.f32 %v522
        %v539 = vcvt.s32.f32 %v523
        %v540 = vpack.c.bf16 %v525, %v524
        %v541 = vpack.c.bf16 %v527, %v526
        %v542 = vpack.c.bf16 %v529, %v528
        %v543 = vpack.c.bf16 %v531, %v530
        %v544 = vpack.c.bf16 %v533, %v532
        %v545 = vpack.c.bf16 %v535, %v534
        %v546 = vpack.c.bf16 %v537, %v536
        %v547 = vpack.c.bf16 %v539, %v538
        %vm548 = vcmp.lt.f32.partialorder %v476, 0.0
        %vm549 = vcmp.lt.f32.partialorder %v477, 0.0
        %vm550 = vcmp.lt.f32.partialorder %v478, 0.0
        %vm551 = vcmp.lt.f32.partialorder %v479, 0.0
        %vm552 = vcmp.lt.f32.partialorder %v480, 0.0
        %vm553 = vcmp.lt.f32.partialorder %v481, 0.0
        %vm554 = vcmp.lt.f32.partialorder %v482, 0.0
        %vm555 = vcmp.lt.f32.partialorder %v483, 0.0
        %vm556 = vcmp.lt.f32.partialorder %v484, 0.0
        %vm557 = vcmp.lt.f32.partialorder %v485, 0.0
        %vm558 = vcmp.lt.f32.partialorder %v486, 0.0
        %vm559 = vcmp.lt.f32.partialorder %v487, 0.0
        %vm560 = vcmp.lt.f32.partialorder %v488, 0.0
        %vm561 = vcmp.lt.f32.partialorder %v489, 0.0
        %vm562 = vcmp.lt.f32.partialorder %v490, 0.0
        %vm563 = vcmp.lt.f32.partialorder %v491, 0.0
        %v564 = vsel %vm548, 1, 0
        %v565 = vsel %vm549, 1, 0
        %v566 = vsel %vm550, 1, 0
        %v567 = vsel %vm551, 1, 0
        %v568 = vsel %vm552, 1, 0
        %v569 = vsel %vm553, 1, 0
        %v570 = vsel %vm554, 1, 0
        %v571 = vsel %vm555, 1, 0
        %v572 = vsel %vm556, 1, 0
        %v573 = vsel %vm557, 1, 0
        %v574 = vsel %vm558, 1, 0
        %v575 = vsel %vm559, 1, 0
        %v576 = vsel %vm560, 1, 0
        %v577 = vsel %vm561, 1, 0
        %v578 = vsel %vm562, 1, 0
        %v579 = vsel %vm563, 1, 0
        %v580 = vcvt.s32.f32 %v564
        %v581 = vcvt.s32.f32 %v565
        %v582 = vcvt.s32.f32 %v566
        %v583 = vcvt.s32.f32 %v567
        %v584 = vcvt.s32.f32 %v568
        %v585 = vcvt.s32.f32 %v569
        %v586 = vcvt.s32.f32 %v570
        %v587 = vcvt.s32.f32 %v571
        %v588 = vcvt.s32.f32 %v572
        %v589 = vcvt.s32.f32 %v573
        %v590 = vcvt.s32.f32 %v574
        %v591 = vcvt.s32.f32 %v575
        %v592 = vcvt.s32.f32 %v576
        %v593 = vcvt.s32.f32 %v577
        %v594 = vcvt.s32.f32 %v578
        %v595 = vcvt.s32.f32 %v579
        %v596 = vpack.c.bf16 %v581, %v580
        %v597 = vpack.c.bf16 %v583, %v582
        %v598 = vpack.c.bf16 %v585, %v584
        %v599 = vpack.c.bf16 %v587, %v586
        %v600 = vpack.c.bf16 %v589, %v588
        %v601 = vpack.c.bf16 %v591, %v590
        %v602 = vpack.c.bf16 %v593, %v592
        %v603 = vpack.c.bf16 %v595, %v594
        %v604 = vsub.bf16 %v540, %v596
        %v605 = vsub.bf16 %v541, %v597
        %v606 = vsub.bf16 %v542, %v598
        %v607 = vsub.bf16 %v543, %v599
        %v608 = vsub.bf16 %v544, %v600
        %v609 = vsub.bf16 %v545, %v601
        %v610 = vsub.bf16 %v546, %v602
        %v611 = vsub.bf16 %v547, %v603
        %s612 = ssub.s32 %s450, 1
        %p613 = scmp.gt.s32.totalorder %s612, 0
        %s614 = scalar_select %p613, %s612, 0
        %s615 = smul.u32 %s614, 16
        %s616 = scalar_lea.vmem %s401, %s615 [#allocation2]
        %v617 = vld [vmem:[%s616] sm:$0xff]
        %v618 = vld [vmem:[%s616 + $0x8] sm:$0xff]
        %s619 = sadd.s32 %s450, 8
        %p620 = scmp.lt.s32.totalorder %s619, 15
        %s621 = scalar_select %p620, %s619, 15
        %s622 = smul.u32 %s621, 16
        %s623 = scalar_lea.vmem %s401, %s622 [#allocation2]
        %v624 = vld [vmem:[%s623] sm:$0xff]
        %v625 = vld [vmem:[%s623 + $0x8] sm:$0xff]
        %v626 = vadd.f32 %v617, %v474
        %v627 = vadd.f32 %v618, %v474
        %vm628 = vcmp.gt.f32.partialorder %v626, 0.0
        %vm629 = vcmp.gt.f32.partialorder %v627, 0.0
        %v630 = vsel %vm628, 1, 0
        %v631 = vsel %vm629, 1, 0
        %v632 = vcvt.s32.f32 %v630
        %v633 = vcvt.s32.f32 %v631
        %v634 = vpack.c.bf16 %v633, %v632
        %vm635 = vcmp.lt.f32.partialorder %v626, 0.0
        %vm636 = vcmp.lt.f32.partialorder %v627, 0.0
        %v637 = vsel %vm635, 1, 0
        %v638 = vsel %vm636, 1, 0
        %v639 = vcvt.s32.f32 %v637
        %v640 = vcvt.s32.f32 %v638
        %v641 = vpack.c.bf16 %v640, %v639
        %v642 = vsub.bf16 %v634, %v641
        %p643 = scmp.gt.s32.totalorder %s34, 0
        %s644 = scalar_select %p643, 1, 0
        %s645 = scvt.s32.f32 %s644
        %p647 = scmp.ne.f32.partialorder %s645, %s645
        %s648 = sshrl.u32 %s645, 16
        %s649 = sand.u32 %s648, 1
        %s650 = sadd.s32 32767, %s649
        %s651 = sadd.s32 %s645, %s650
        %s652 = sand.u32 %s651, 4294901760
        %s653 = scalar_select %p647, 2143289344, %s652
        %s655 = sshrl.u32 %s653, 16
        %s656 = sshll.u32 %s655, 16
        %s657 = sor.u32 %s655, %s656
        %v658 = vstv %s657
        %v660 = vmul.bf16 %v642, %v658
        %v661 = vadd.f32 %v624, %v474
        %v662 = vadd.f32 %v625, %v474
        %vm663 = vcmp.gt.f32.partialorder %v661, 0.0
        %vm664 = vcmp.gt.f32.partialorder %v662, 0.0
        %v665 = vsel %vm663, 1, 0
        %v666 = vsel %vm664, 1, 0
        %v667 = vcvt.s32.f32 %v665
        %v668 = vcvt.s32.f32 %v666
        %v669 = vpack.c.bf16 %v668, %v667
        %vm670 = vcmp.lt.f32.partialorder %v661, 0.0
        %vm671 = vcmp.lt.f32.partialorder %v662, 0.0
        %v672 = vsel %vm670, 1, 0
        %v673 = vsel %vm671, 1, 0
        %v674 = vcvt.s32.f32 %v672
        %v675 = vcvt.s32.f32 %v673
        %v676 = vpack.c.bf16 %v675, %v674
        %v677 = vsub.bf16 %v669, %v676
        %p678 = scmp.lt.s32.totalorder %s34, 1
        %s679 = scalar_select %p678, 1, 0
        %s680 = scvt.s32.f32 %s679
        %p682 = scmp.ne.f32.partialorder %s680, %s680
        %s683 = sshrl.u32 %s680, 16
        %s684 = sand.u32 %s683, 1
        %s685 = sadd.s32 32767, %s684
        %s686 = sadd.s32 %s680, %s685
        %s687 = sand.u32 %s686, 4294901760
        %s688 = scalar_select %p682, 2143289344, %s687
        %s690 = sshrl.u32 %s688, 16
        %s691 = sshll.u32 %s690, 16
        %s692 = sor.u32 %s690, %s691
        %v693 = vstv %s692
        %v695 = vmul.bf16 %v677, %v693
        %v697 = vshrl.u32 %v660, 16
        %v699 = vrot.slane %v697, 7
        %v700 = vshll.u32 %v660, 16
        %v702 = vor.u32 %v699, %v700
        %v704 = vshrl.u32 %v604, 16
        %v706 = vrot.slane %v704, 7
        %v707 = vshll.u32 %v604, 16
        %v709 = vor.u32 %v706, %v707
        %v711 = vshrl.u32 %v605, 16
        %v713 = vrot.slane %v711, 7
        %v714 = vshll.u32 %v605, 16
        %v716 = vor.u32 %v713, %v714
        %v718 = vshrl.u32 %v606, 16
        %v720 = vrot.slane %v718, 7
        %v721 = vshll.u32 %v606, 16
        %v723 = vor.u32 %v720, %v721
        %v725 = vshrl.u32 %v607, 16
        %v727 = vrot.slane %v725, 7
        %v728 = vshll.u32 %v607, 16
        %v730 = vor.u32 %v727, %v728
        %v732 = vshrl.u32 %v608, 16
        %v734 = vrot.slane %v732, 7
        %v735 = vshll.u32 %v608, 16
        %v737 = vor.u32 %v734, %v735
        %v739 = vshrl.u32 %v609, 16
        %v741 = vrot.slane %v739, 7
        %v742 = vshll.u32 %v609, 16
        %v744 = vor.u32 %v741, %v742
        %v746 = vshrl.u32 %v610, 16
        %v748 = vrot.slane %v746, 7
        %v749 = vshll.u32 %v610, 16
        %v751 = vor.u32 %v748, %v749
        %v753 = vshrl.u32 %v611, 16
        %v755 = vrot.slane %v753, 7
        %v756 = vshll.u32 %v611, 16
        %v758 = vor.u32 %v755, %v756
        %v760 = vshrl.u32 %v695, 16
        %v762 = vrot.slane %v760, 7
        %v763 = vshll.u32 %v695, 16
        %v765 = vor.u32 %v762, %v763
        %vm776 = vcmask 1040384
        %vm777 = vsmask.f32 256
        %vm778 = vmand %vm776, %vm777
        %v779 = vsel %vm778, 0, %v702
        %v780 = vsel %vm778, 0, %v709
        %v781 = vsel %vm778, 0, %v716
        %v782 = vsel %vm778, 0, %v723
        %v783 = vsel %vm778, 0, %v730
        %v784 = vsel %vm778, 0, %v737
        %v785 = vsel %vm778, 0, %v744
        %v786 = vsel %vm778, 0, %v751
        %v787 = vsel %vm778, 0, %v758
        %v788 = vsel %vm778, 0, %v765
        %v789 = vrot.slane %v700, 1
        %v790 = vor.u32 %v697, %v789
        %v791 = vrot.slane %v707, 1
        %v792 = vor.u32 %v704, %v791
        %v793 = vrot.slane %v714, 1
        %v794 = vor.u32 %v711, %v793
        %v795 = vrot.slane %v721, 1
        %v796 = vor.u32 %v718, %v795
        %v797 = vrot.slane %v728, 1
        %v798 = vor.u32 %v725, %v797
        %v799 = vrot.slane %v735, 1
        %v800 = vor.u32 %v732, %v799
        %v801 = vrot.slane %v742, 1
        %v802 = vor.u32 %v739, %v801
        %v803 = vrot.slane %v749, 1
        %v804 = vor.u32 %v746, %v803
        %v805 = vrot.slane %v756, 1
        %v806 = vor.u32 %v753, %v805
        %v807 = vrot.slane %v763, 1
        %v808 = vor.u32 %v760, %v807
        %vm819 = vcmask 1047552
        %vm820 = vsmask.f32 7424
        %vm821 = vmand %vm819, %vm820
        %v822 = vsel %vm821, %v790, 0
        %v823 = vsel %vm821, %v792, 0
        %v824 = vsel %vm821, %v794, 0
        %v825 = vsel %vm821, %v796, 0
        %v826 = vsel %vm821, %v798, 0
        %v827 = vsel %vm821, %v800, 0
        %v828 = vsel %vm821, %v802, 0
        %v829 = vsel %vm821, %v804, 0
        %v830 = vsel %vm821, %v806, 0
        %v831 = vsel %vm821, %v808, 0
        %s832 = scalar_lea.vmem [#allocation5], 192
        %v833 = vld [vmem:[%s832] sm:$0xf]
        %v834 = vld [vmem:[%s832 + $0x4] sm:$0xf]
        %v835 = vld [vmem:[%s832 + $0x8] sm:$0xf]
        %v836 = vld [vmem:[%s832 + $0xc] sm:$0xf]
        %v837 = vld [vmem:[%s832 + $0x10] sm:$0xf]
        %v838 = vld [vmem:[%s832 + $0x14] sm:$0xf]
        %v839 = vld [vmem:[%s832 + $0x18] sm:$0xf]
        %v840 = vld [vmem:[%s832 + $0x1c] sm:$0xf]
        %v841 = vld [vmem:[%s832 + $0x20] sm:$0xf]
        %v842 = vld [vmem:[%s832 + $0x24] sm:$0xf]
        %v843 = vld [vmem:[%s832 + $0x28] sm:$0xf]
        %v844 = vld [vmem:[%s832 + $0x2c] sm:$0xf]
        %v845 = vld [vmem:[%s832 + $0x30] sm:$0xf]
        %v846 = vld [vmem:[%s832 + $0x34] sm:$0xf]
        %v847 = vld [vmem:[%s832 + $0x38] sm:$0xf]
        %v848 = vld [vmem:[%s832 + $0x3c] sm:$0xf]
        %v849 = vld [vmem:[%s832 + $0x40] sm:$0xf]
        %v850 = vld [vmem:[%s832 + $0x44] sm:$0xf]
        %v851 = vld [vmem:[%s832 + $0x48] sm:$0xf]
        %v852 = vld [vmem:[%s832 + $0x4c] sm:$0xf]
        %v853 = vld [vmem:[%s832 + $0x50] sm:$0xf]
        %v854 = vld [vmem:[%s832 + $0x54] sm:$0xf]
        %v855 = vld [vmem:[%s832 + $0x58] sm:$0xf]
        %v856 = vld [vmem:[%s832 + $0x5c] sm:$0xf]
        %v857 = vld [vmem:[%s832 + $0x60] sm:$0xf]
        %v858 = vld [vmem:[%s832 + $0x64] sm:$0xf]
        %v859 = vld [vmem:[%s832 + $0x68] sm:$0xf]
        %v860 = vld [vmem:[%s832 + $0x6c] sm:$0xf]
        %v861 = vld [vmem:[%s832 + $0x70] sm:$0xf]
        %v862 = vld [vmem:[%s832 + $0x74] sm:$0xf]
        %v863 = vld [vmem:[%s832 + $0x78] sm:$0xf]
        %v864 = vld [vmem:[%s832 + $0x7c] sm:$0xf]
        %v865 = vld [vmem:[%s832 + $0x80] sm:$0xf]
        %v866 = vld [vmem:[%s832 + $0x84] sm:$0xf]
        %v867 = vld [vmem:[%s832 + $0x88] sm:$0xf]
        %v868 = vld [vmem:[%s832 + $0x8c] sm:$0xf]
        %v869 = vld [vmem:[%s832 + $0x90] sm:$0xf]
        %v870 = vld [vmem:[%s832 + $0x94] sm:$0xf]
        %v871 = vld [vmem:[%s832 + $0x98] sm:$0xf]
        %v872 = vld [vmem:[%s832 + $0x9c] sm:$0xf]
        %v873 = vld [vmem:[%s832 + $0xa0] sm:$0xf]
        %v874 = vld [vmem:[%s832 + $0xa4] sm:$0xf]
        %v875 = vld [vmem:[%s832 + $0xa8] sm:$0xf]
        %v876 = vld [vmem:[%s832 + $0xac] sm:$0xf]
        %v877 = vld [vmem:[%s832 + $0xb0] sm:$0xf]
        %v878 = vld [vmem:[%s832 + $0xb4] sm:$0xf]
        %v879 = vld [vmem:[%s832 + $0xb8] sm:$0xf]
        %v880 = vld [vmem:[%s832 + $0xbc] sm:$0xf]
        %v881 = vld [vmem:[#allocation5] sm:$0xf]
        %v882 = vld [vmem:[#allocation5 + $0x4] sm:$0xf]
        %v883 = vld [vmem:[#allocation5 + $0x8] sm:$0xf]
        %v884 = vld [vmem:[#allocation5 + $0xc] sm:$0xf]
        %v885 = vld [vmem:[#allocation5 + $0x10] sm:$0xf]
        %v886 = vld [vmem:[#allocation5 + $0x14] sm:$0xf]
        %v887 = vld [vmem:[#allocation5 + $0x18] sm:$0xf]
        %v888 = vld [vmem:[#allocation5 + $0x1c] sm:$0xf]
        %v889 = vld [vmem:[#allocation5 + $0x20] sm:$0xf]
        %v890 = vld [vmem:[#allocation5 + $0x24] sm:$0xf]
        %v891 = vld [vmem:[#allocation5 + $0x28] sm:$0xf]
        %v892 = vld [vmem:[#allocation5 + $0x2c] sm:$0xf]
        %v893 = vld [vmem:[#allocation5 + $0x30] sm:$0xf]
        %v894 = vld [vmem:[#allocation5 + $0x34] sm:$0xf]
        %v895 = vld [vmem:[#allocation5 + $0x38] sm:$0xf]
        %v896 = vld [vmem:[#allocation5 + $0x3c] sm:$0xf]
        %v897 = vld [vmem:[#allocation5 + $0x40] sm:$0xf]
        %v898 = vld [vmem:[#allocation5 + $0x44] sm:$0xf]
        %v899 = vld [vmem:[#allocation5 + $0x48] sm:$0xf]
        %v900 = vld [vmem:[#allocation5 + $0x4c] sm:$0xf]
        %v901 = vld [vmem:[#allocation5 + $0x50] sm:$0xf]
        %v902 = vld [vmem:[#allocation5 + $0x54] sm:$0xf]
        %v903 = vld [vmem:[#allocation5 + $0x58] sm:$0xf]
        %v904 = vld [vmem:[#allocation5 + $0x5c] sm:$0xf]
        %v905 = vld [vmem:[#allocation5 + $0x60] sm:$0xf]
        %v906 = vld [vmem:[#allocation5 + $0x64] sm:$0xf]
        %v907 = vld [vmem:[#allocation5 + $0x68] sm:$0xf]
        %v908 = vld [vmem:[#allocation5 + $0x6c] sm:$0xf]
        %v909 = vld [vmem:[#allocation5 + $0x70] sm:$0xf]
        %v910 = vld [vmem:[#allocation5 + $0x74] sm:$0xf]
        %v911 = vld [vmem:[#allocation5 + $0x78] sm:$0xf]
        %v912 = vld [vmem:[#allocation5 + $0x7c] sm:$0xf]
        %v913 = vld [vmem:[#allocation5 + $0x80] sm:$0xf]
        %v914 = vld [vmem:[#allocation5 + $0x84] sm:$0xf]
        %v915 = vld [vmem:[#allocation5 + $0x88] sm:$0xf]
        %v916 = vld [vmem:[#allocation5 + $0x8c] sm:$0xf]
        %v917 = vld [vmem:[#allocation5 + $0x90] sm:$0xf]
        %v918 = vld [vmem:[#allocation5 + $0x94] sm:$0xf]
        %v919 = vld [vmem:[#allocation5 + $0x98] sm:$0xf]
        %v920 = vld [vmem:[#allocation5 + $0x9c] sm:$0xf]
        %v921 = vld [vmem:[#allocation5 + $0xa0] sm:$0xf]
        %v922 = vld [vmem:[#allocation5 + $0xa4] sm:$0xf]
        %v923 = vld [vmem:[#allocation5 + $0xa8] sm:$0xf]
        %v924 = vld [vmem:[#allocation5 + $0xac] sm:$0xf]
        %v925 = vld [vmem:[#allocation5 + $0xb0] sm:$0xf]
        %v926 = vld [vmem:[#allocation5 + $0xb4] sm:$0xf]
        %v927 = vld [vmem:[#allocation5 + $0xb8] sm:$0xf]
        %v928 = vld [vmem:[#allocation5 + $0xbc] sm:$0xf]
        %v977 = vunpack.c.l.b16 %v881
        %v978 = vunpack.c.l.b16 %v882
        %v979 = vunpack.c.l.b16 %v883
        %v980 = vunpack.c.l.b16 %v884
        %v981 = vunpack.c.l.b16 %v885
        %v982 = vunpack.c.l.b16 %v886
        %v983 = vunpack.c.l.b16 %v887
        %v984 = vunpack.c.l.b16 %v888
        %v985 = vunpack.c.l.b16 %v889
        %v986 = vunpack.c.l.b16 %v890
        %v987 = vunpack.c.l.b16 %v891
        %v988 = vunpack.c.l.b16 %v892
        %v989 = vunpack.c.l.b16 %v893
        %v990 = vunpack.c.l.b16 %v894
        %v991 = vunpack.c.l.b16 %v895
        %v992 = vunpack.c.l.b16 %v896
        %v993 = vunpack.c.l.b16 %v897
        %v994 = vunpack.c.l.b16 %v898
        %v995 = vunpack.c.l.b16 %v899
        %v996 = vunpack.c.l.b16 %v900
        %v997 = vunpack.c.l.b16 %v901
        %v998 = vunpack.c.l.b16 %v902
        %v999 = vunpack.c.l.b16 %v903
        %v1000 = vunpack.c.l.b16 %v904
        %v1001 = vunpack.c.l.b16 %v905
        %v1002 = vunpack.c.l.b16 %v906
        %v1003 = vunpack.c.l.b16 %v907
        %v1004 = vunpack.c.l.b16 %v908
        %v1005 = vunpack.c.l.b16 %v909
        %v1006 = vunpack.c.l.b16 %v910
        %v1007 = vunpack.c.l.b16 %v911
        %v1008 = vunpack.c.l.b16 %v912
        %v1009 = vunpack.c.l.b16 %v913
        %v1010 = vunpack.c.l.b16 %v914
        %v1011 = vunpack.c.l.b16 %v915
        %v1012 = vunpack.c.l.b16 %v916
        %v1013 = vunpack.c.l.b16 %v917
        %v1014 = vunpack.c.l.b16 %v918
        %v1015 = vunpack.c.l.b16 %v919
        %v1016 = vunpack.c.l.b16 %v920
        %v1017 = vunpack.c.l.b16 %v921
        %v1018 = vunpack.c.l.b16 %v922
        %v1019 = vunpack.c.l.b16 %v923
        %v1020 = vunpack.c.l.b16 %v924
        %v1021 = vunpack.c.l.b16 %v925
        %v1022 = vunpack.c.l.b16 %v926
        %v1023 = vunpack.c.l.b16 %v927
        %v1024 = vunpack.c.l.b16 %v928
        %v1025 = vpack.c.b16 %v978, %v977
        %v1026 = vpack.c.b16 %v980, %v979
        %v1027 = vpack.c.b16 %v982, %v981
        %v1028 = vpack.c.b16 %v984, %v983
        %v1029 = vpack.c.b16 %v986, %v985
        %v1030 = vpack.c.b16 %v988, %v987
        %v1031 = vpack.c.b16 %v990, %v989
        %v1032 = vpack.c.b16 %v992, %v991
        %v1033 = vpack.c.b16 %v994, %v993
        %v1034 = vpack.c.b16 %v996, %v995
        %v1035 = vpack.c.b16 %v998, %v997
        %v1036 = vpack.c.b16 %v1000, %v999
        %v1037 = vpack.c.b16 %v1002, %v1001
        %v1038 = vpack.c.b16 %v1004, %v1003
        %v1039 = vpack.c.b16 %v1006, %v1005
        %v1040 = vpack.c.b16 %v1008, %v1007
        %v1041 = vpack.c.b16 %v1010, %v1009
        %v1042 = vpack.c.b16 %v1012, %v1011
        %v1043 = vpack.c.b16 %v1014, %v1013
        %v1044 = vpack.c.b16 %v1016, %v1015
        %v1045 = vpack.c.b16 %v1018, %v1017
        %v1046 = vpack.c.b16 %v1020, %v1019
        %v1047 = vpack.c.b16 %v1022, %v1021
        %v1048 = vpack.c.b16 %v1024, %v1023
        %1073 = vmatprep.subr.bf16.mxu0 0
        %1074 = vmatpush1.bf16.msra.mxu0 %v1025
        %1075 = vmatprep.subr.bf16.mxu0 0
        %1076 = vmatpush1.bf16.msra.mxu0 %v1026
        %1077 = vmatprep.subr.bf16.mxu0 0
        %1078 = vmatpush1.bf16.msra.mxu0 %v1027
        %1079 = vmatprep.subr.bf16.mxu0 0
        %1080 = vmatpush1.bf16.msra.mxu0 %v1028
        %1081 = vmatprep.subr.bf16.mxu0 0
        %1082 = vmatpush1.bf16.msra.mxu0 %v1029
        %1083 = vmatprep.subr.bf16.mxu0 0
        %1084 = vmatpush1.bf16.msra.mxu0 %v1030
        %1085 = vmatprep.subr.bf16.mxu0 0
        %1086 = vmatpush1.bf16.msra.mxu0 %v1031
        %1087 = vmatprep.subr.bf16.mxu0 0
        %1088 = vmatpush1.bf16.msra.mxu0 %v1032
        %1089 = vmatprep.subr.bf16.mxu0 0
        %1090 = vmatpush1.bf16.msra.mxu0 %v1033
        %1091 = vmatprep.subr.bf16.mxu0 0
        %1092 = vmatpush1.bf16.msra.mxu0 %v1034
        %1093 = vmatprep.subr.bf16.mxu0 0
        %1094 = vmatpush1.bf16.msra.mxu0 %v1035
        %1095 = vmatprep.subr.bf16.mxu0 0
        %1096 = vmatpush1.bf16.msra.mxu0 %v1036
        %1097 = vmatprep.subr.bf16.mxu0 0
        %1098 = vmatpush1.bf16.msra.mxu0 %v1037
        %1099 = vmatprep.subr.bf16.mxu0 0
        %1100 = vmatpush1.bf16.msra.mxu0 %v1038
        %1101 = vmatprep.subr.bf16.mxu0 0
        %1102 = vmatpush1.bf16.msra.mxu0 %v1039
        %1103 = vmatprep.subr.bf16.mxu0 0
        %1104 = vmatpush1.bf16.msra.mxu0 %v1040
        %1105 = vmatprep.mubr.bf16.mxu0 %v660
        %1106 = vmatmul.mubr.bf16.gmra.mrb[0].mxu0 %v779
        %v1107 = vpop.f32.mrb[0].mxu0
        %v1108 = vadd.f32 0.0, %v1107
        %v1109 = vpop.f32.mrb[0].mxu0
        %v1110 = vpop.f32.mrb[0].mxu0
        %v1111 = vadd.f32 0.0, %v1110
        %v1112 = vpop.f32.mrb[0].mxu0
        %1113 = vmatprep.mubr.bf16.mxu0 %v604
        %1114 = vmatmul.mubr.bf16.gmra.mrb[0].mxu0 %v780
        %v1115 = vpop.f32.mrb[0].mxu0
        %v1116 = vadd.f32 0.0, %v1115
        %v1117 = vpop.f32.mrb[0].mxu0
        %v1118 = vpop.f32.mrb[0].mxu0
        %v1119 = vadd.f32 0.0, %v1118
        %v1120 = vpop.f32.mrb[0].mxu0
        %1121 = vmatprep.mubr.bf16.mxu0 %v605
        %1122 = vmatmul.mubr.bf16.gmra.mrb[0].mxu0 %v781
        %v1123 = vpop.f32.mrb[0].mxu0
        %v1124 = vadd.f32 0.0, %v1123
        %v1125 = vpop.f32.mrb[0].mxu0
        %v1126 = vpop.f32.mrb[0].mxu0
        %v1127 = vadd.f32 0.0, %v1126
        %v1128 = vpop.f32.mrb[0].mxu0
        %1129 = vmatprep.mubr.bf16.mxu0 %v606
        %1130 = vmatmul.mubr.bf16.gmra.mrb[0].mxu0 %v782
        %v1131 = vpop.f32.mrb[0].mxu0
        %v1132 = vadd.f32 0.0, %v1131
        %v1133 = vpop.f32.mrb[0].mxu0
        %v1134 = vpop.f32.mrb[0].mxu0
        %v1135 = vadd.f32 0.0, %v1134
        %v1136 = vpop.f32.mrb[0].mxu0
        %1137 = vmatprep.mubr.bf16.mxu0 %v607
        %1138 = vmatmul.mubr.bf16.gmra.mrb[0].mxu0 %v783
        %v1139 = vpop.f32.mrb[0].mxu0
        %v1140 = vadd.f32 0.0, %v1139
        %v1141 = vpop.f32.mrb[0].mxu0
        %v1142 = vpop.f32.mrb[0].mxu0
        %v1143 = vadd.f32 0.0, %v1142
        %v1144 = vpop.f32.mrb[0].mxu0
        %1145 = vmatprep.mubr.bf16.mxu0 %v608
        %1146 = vmatmul.mubr.bf16.gmra.mrb[0].mxu0 %v784
        %v1147 = vpop.f32.mrb[0].mxu0
        %v1148 = vadd.f32 0.0, %v1147
        %v1149 = vpop.f32.mrb[0].mxu0
        %v1150 = vpop.f32.mrb[0].mxu0
        %v1151 = vadd.f32 0.0, %v1150
        %v1152 = vpop.f32.mrb[0].mxu0
        %1153 = vmatprep.mubr.bf16.mxu0 %v609
        %1154 = vmatmul.mubr.bf16.gmra.mrb[0].mxu0 %v785
        %v1155 = vpop.f32.mrb[0].mxu0
        %v1156 = vadd.f32 0.0, %v1155
        %v1157 = vpop.f32.mrb[0].mxu0
        %v1158 = vpop.f32.mrb[0].mxu0
        %v1159 = vadd.f32 0.0, %v1158
        %v1160 = vpop.f32.mrb[0].mxu0
        %1161 = vmatprep.mubr.bf16.mxu0 %v610
        %1162 = vmatmul.mubr.bf16.gmra.mrb[0].mxu0 %v786
        %v1163 = vpop.f32.mrb[0].mxu0
        %v1164 = vadd.f32 0.0, %v1163
        %v1165 = vpop.f32.mrb[0].mxu0
        %v1166 = vpop.f32.mrb[0].mxu0
        %v1167 = vadd.f32 0.0, %v1166
        %v1168 = vpop.f32.mrb[0].mxu0
        %1169 = vdwg.mxu0
        %1170 = vmatprep.subr.bf16.mxu0 0
        %1171 = vmatpush1.bf16.msra.mxu0 %v1041
        %1172 = vmatprep.subr.bf16.mxu0 0
        %1173 = vmatpush1.bf16.msra.mxu0 %v1042
        %1174 = vmatprep.subr.bf16.mxu0 0
        %1175 = vmatpush1.bf16.msra.mxu0 %v1043
        %1176 = vmatprep.subr.bf16.mxu0 0
        %1177 = vmatpush1.bf16.msra.mxu0 %v1044
        %1178 = vmatprep.subr.bf16.mxu0 0
        %1179 = vmatpush1.bf16.msra.mxu0 %v1045
        %1180 = vmatprep.subr.bf16.mxu0 0
        %1181 = vmatpush1.bf16.msra.mxu0 %v1046
        %1182 = vmatprep.subr.bf16.mxu0 0
        %1183 = vmatpush1.bf16.msra.mxu0 %v1047
        %1184 = vmatprep.subr.bf16.mxu0 0
        %1185 = vmatpush1.bf16.msra.mxu0 %v1048
        %1186 = vmatprep.subr.bf16.mxu0 0
        %1187 = vmatpush1.bf16.msra.mxu0 0
        %1188 = vmatprep.subr.bf16.mxu0 0
        %1189 = vmatpush1.bf16.msra.mxu0 0
        %1190 = vmatprep.subr.bf16.mxu0 0
        %1191 = vmatpush1.bf16.msra.mxu0 0
        %1192 = vmatprep.subr.bf16.mxu0 0
        %1193 = vmatpush1.bf16.msra.mxu0 0
        %1194 = vmatprep.subr.bf16.mxu0 0
        %1195 = vmatpush1.bf16.msra.mxu0 0
        %1196 = vmatprep.subr.bf16.mxu0 0
        %1197 = vmatpush1.bf16.msra.mxu0 0
        %1198 = vmatprep.subr.bf16.mxu0 0
        %1199 = vmatpush1.bf16.msra.mxu0 0
        %1200 = vmatprep.subr.bf16.mxu0 0
        %1201 = vmatpush1.bf16.msra.mxu0 0
        %1202 = vmatprep.mubr.bf16.mxu0 0
        %1203 = vmatmul.mubr.bf16.gmra.mrb[0].mxu0 %v822
        %v1204 = vpop.f32.mrb[0].mxu0
        %v1205 = vadd.f32 %v1108, %v1204
        %v1206 = vpop.f32.mrb[0].mxu0
        %v1207 = vpop.f32.mrb[0].mxu0
        %v1208 = vadd.f32 %v1111, %v1207
        %v1209 = vpop.f32.mrb[0].mxu0
        %1210 = vmatprep.mubr.bf16.mxu0 0
        %1211 = vmatmul.mubr.bf16.gmra.mrb[0].mxu0 %v823
        %v1212 = vpop.f32.mrb[0].mxu0
        %v1213 = vadd.f32 %v1116, %v1212
        %v1214 = vpop.f32.mrb[0].mxu0
        %v1215 = vpop.f32.mrb[0].mxu0
        %v1216 = vadd.f32 %v1119, %v1215
        %v1217 = vpop.f32.mrb[0].mxu0
        %1218 = vmatprep.mubr.bf16.mxu0 0
        %1219 = vmatmul.mubr.bf16.gmra.mrb[0].mxu0 %v824
        %v1220 = vpop.f32.mrb[0].mxu0
        %v1221 = vadd.f32 %v1124, %v1220
        %v1222 = vpop.f32.mrb[0].mxu0
        %v1223 = vpop.f32.mrb[0].mxu0
        %v1224 = vadd.f32 %v1127, %v1223
        %v1225 = vpop.f32.mrb[0].mxu0
        %1226 = vmatprep.mubr.bf16.mxu0 0
        %1227 = vmatmul.mubr.bf16.gmra.mrb[0].mxu0 %v825
        %v1228 = vpop.f32.mrb[0].mxu0
        %v1229 = vadd.f32 %v1132, %v1228
        %v1230 = vpop.f32.mrb[0].mxu0
        %v1231 = vpop.f32.mrb[0].mxu0
        %v1232 = vadd.f32 %v1135, %v1231
        %v1233 = vpop.f32.mrb[0].mxu0
        %1234 = vmatprep.mubr.bf16.mxu0 0
        %1235 = vmatmul.mubr.bf16.gmra.mrb[0].mxu0 %v826
        %v1236 = vpop.f32.mrb[0].mxu0
        %v1237 = vadd.f32 %v1140, %v1236
        %v1238 = vpop.f32.mrb[0].mxu0
        %v1239 = vpop.f32.mrb[0].mxu0
        %v1240 = vadd.f32 %v1143, %v1239
        %v1241 = vpop.f32.mrb[0].mxu0
        %1242 = vmatprep.mubr.bf16.mxu0 0
        %1243 = vmatmul.mubr.bf16.gmra.mrb[0].mxu0 %v827
        %v1244 = vpop.f32.mrb[0].mxu0
        %v1245 = vadd.f32 %v1148, %v1244
        %v1246 = vpop.f32.mrb[0].mxu0
        %v1247 = vpop.f32.mrb[0].mxu0
        %v1248 = vadd.f32 %v1151, %v1247
        %v1249 = vpop.f32.mrb[0].mxu0
        %1250 = vmatprep.mubr.bf16.mxu0 0
        %1251 = vmatmul.mubr.bf16.gmra.mrb[0].mxu0 %v828
        %v1252 = vpop.f32.mrb[0].mxu0
        %v1253 = vadd.f32 %v1156, %v1252
        %v1254 = vpop.f32.mrb[0].mxu0
        %v1255 = vpop.f32.mrb[0].mxu0
        %v1256 = vadd.f32 %v1159, %v1255
        %v1257 = vpop.f32.mrb[0].mxu0
        %1258 = vmatprep.mubr.bf16.mxu0 0
        %1259 = vmatmul.mubr.bf16.gmra.mrb[0].mxu0 %v829
        %v1260 = vpop.f32.mrb[0].mxu0
        %v1261 = vadd.f32 %v1164, %v1260
        %v1262 = vpop.f32.mrb[0].mxu0
        %v1263 = vpop.f32.mrb[0].mxu0
        %v1264 = vadd.f32 %v1167, %v1263
        %v1265 = vpop.f32.mrb[0].mxu0
        %1266 = vdwg.mxu0
        %v1315 = vunpack.c.l.b16 %v833
        %v1316 = vunpack.c.l.b16 %v834
        %v1317 = vunpack.c.l.b16 %v835
        %v1318 = vunpack.c.l.b16 %v836
        %v1319 = vunpack.c.l.b16 %v837
        %v1320 = vunpack.c.l.b16 %v838
        %v1321 = vunpack.c.l.b16 %v839
        %v1322 = vunpack.c.l.b16 %v840
        %v1323 = vunpack.c.l.b16 %v841
        %v1324 = vunpack.c.l.b16 %v842
        %v1325 = vunpack.c.l.b16 %v843
        %v1326 = vunpack.c.l.b16 %v844
        %v1327 = vunpack.c.l.b16 %v845
        %v1328 = vunpack.c.l.b16 %v846
        %v1329 = vunpack.c.l.b16 %v847
        %v1330 = vunpack.c.l.b16 %v848
        %v1331 = vunpack.c.l.b16 %v849
        %v1332 = vunpack.c.l.b16 %v850
        %v1333 = vunpack.c.l.b16 %v851
        %v1334 = vunpack.c.l.b16 %v852
        %v1335 = vunpack.c.l.b16 %v853
        %v1336 = vunpack.c.l.b16 %v854
        %v1337 = vunpack.c.l.b16 %v855
        %v1338 = vunpack.c.l.b16 %v856
        %v1339 = vunpack.c.l.b16 %v857
        %v1340 = vunpack.c.l.b16 %v858
        %v1341 = vunpack.c.l.b16 %v859
        %v1342 = vunpack.c.l.b16 %v860
        %v1343 = vunpack.c.l.b16 %v861
        %v1344 = vunpack.c.l.b16 %v862
        %v1345 = vunpack.c.l.b16 %v863
        %v1346 = vunpack.c.l.b16 %v864
        %v1347 = vunpack.c.l.b16 %v865
        %v1348 = vunpack.c.l.b16 %v866
        %v1349 = vunpack.c.l.b16 %v867
        %v1350 = vunpack.c.l.b16 %v868
        %v1351 = vunpack.c.l.b16 %v869
        %v1352 = vunpack.c.l.b16 %v870
        %v1353 = vunpack.c.l.b16 %v871
        %v1354 = vunpack.c.l.b16 %v872
        %v1355 = vunpack.c.l.b16 %v873
        %v1356 = vunpack.c.l.b16 %v874
        %v1357 = vunpack.c.l.b16 %v875
        %v1358 = vunpack.c.l.b16 %v876
        %v1359 = vunpack.c.l.b16 %v877
        %v1360 = vunpack.c.l.b16 %v878
        %v1361 = vunpack.c.l.b16 %v879
        %v1362 = vunpack.c.l.b16 %v880
        %v1363 = vpack.c.b16 %v1316, %v1315
        %v1364 = vpack.c.b16 %v1318, %v1317
        %v1365 = vpack.c.b16 %v1320, %v1319
        %v1366 = vpack.c.b16 %v1322, %v1321
        %v1367 = vpack.c.b16 %v1324, %v1323
        %v1368 = vpack.c.b16 %v1326, %v1325
        %v1369 = vpack.c.b16 %v1328, %v1327
        %v1370 = vpack.c.b16 %v1330, %v1329
        %v1371 = vpack.c.b16 %v1332, %v1331
        %v1372 = vpack.c.b16 %v1334, %v1333
        %v1373 = vpack.c.b16 %v1336, %v1335
        %v1374 = vpack.c.b16 %v1338, %v1337
        %v1375 = vpack.c.b16 %v1340, %v1339
        %v1376 = vpack.c.b16 %v1342, %v1341
        %v1377 = vpack.c.b16 %v1344, %v1343
        %v1378 = vpack.c.b16 %v1346, %v1345
        %v1379 = vpack.c.b16 %v1348, %v1347
        %v1380 = vpack.c.b16 %v1350, %v1349
        %v1381 = vpack.c.b16 %v1352, %v1351
        %v1382 = vpack.c.b16 %v1354, %v1353
        %v1383 = vpack.c.b16 %v1356, %v1355
        %v1384 = vpack.c.b16 %v1358, %v1357
        %v1385 = vpack.c.b16 %v1360, %v1359
        %v1386 = vpack.c.b16 %v1362, %v1361
        %1411 = vmatprep.subr.bf16.mxu0 0
        %1412 = vmatpush1.bf16.msra.mxu0 %v1363
        %1413 = vmatprep.subr.bf16.mxu0 0
        %1414 = vmatpush1.bf16.msra.mxu0 %v1364
        %1415 = vmatprep.subr.bf16.mxu0 0
        %1416 = vmatpush1.bf16.msra.mxu0 %v1365
        %1417 = vmatprep.subr.bf16.mxu0 0
        %1418 = vmatpush1.bf16.msra.mxu0 %v1366
        %1419 = vmatprep.subr.bf16.mxu0 0
        %1420 = vmatpush1.bf16.msra.mxu0 %v1367
        %1421 = vmatprep.subr.bf16.mxu0 0
        %1422 = vmatpush1.bf16.msra.mxu0 %v1368
        %1423 = vmatprep.subr.bf16.mxu0 0
        %1424 = vmatpush1.bf16.msra.mxu0 %v1369
        %1425 = vmatprep.subr.bf16.mxu0 0
        %1426 = vmatpush1.bf16.msra.mxu0 %v1370
        %1427 = vmatprep.subr.bf16.mxu0 0
        %1428 = vmatpush1.bf16.msra.mxu0 %v1371
        %1429 = vmatprep.subr.bf16.mxu0 0
        %1430 = vmatpush1.bf16.msra.mxu0 %v1372
        %1431 = vmatprep.subr.bf16.mxu0 0
        %1432 = vmatpush1.bf16.msra.mxu0 %v1373
        %1433 = vmatprep.subr.bf16.mxu0 0
        %1434 = vmatpush1.bf16.msra.mxu0 %v1374
        %1435 = vmatprep.subr.bf16.mxu0 0
        %1436 = vmatpush1.bf16.msra.mxu0 %v1375
        %1437 = vmatprep.subr.bf16.mxu0 0
        %1438 = vmatpush1.bf16.msra.mxu0 %v1376
        %1439 = vmatprep.subr.bf16.mxu0 0
        %1440 = vmatpush1.bf16.msra.mxu0 %v1377
        %1441 = vmatprep.subr.bf16.mxu0 0
        %1442 = vmatpush1.bf16.msra.mxu0 %v1378
        %1443 = vmatprep.mubr.bf16.mxu0 %v604
        %1444 = vmatmul.mubr.bf16.gmra.mrb[0].mxu0 %v780
        %v1445 = vpop.f32.mrb[0].mxu0
        %v1446 = vadd.f32 %v1205, %v1445
        %v1447 = vpop.f32.mrb[0].mxu0
        %v1448 = vpop.f32.mrb[0].mxu0
        %v1449 = vadd.f32 %v1208, %v1448
        %v1450 = vpop.f32.mrb[0].mxu0
        %1451 = vmatprep.mubr.bf16.mxu0 %v605
        %1452 = vmatmul.mubr.bf16.gmra.mrb[0].mxu0 %v781
        %v1453 = vpop.f32.mrb[0].mxu0
        %v1454 = vadd.f32 %v1213, %v1453
        %v1455 = vpop.f32.mrb[0].mxu0
        %v1456 = vpop.f32.mrb[0].mxu0
        %v1457 = vadd.f32 %v1216, %v1456
        %v1458 = vpop.f32.mrb[0].mxu0
        %1459 = vmatprep.mubr.bf16.mxu0 %v606
        %1460 = vmatmul.mubr.bf16.gmra.mrb[0].mxu0 %v782
        %v1461 = vpop.f32.mrb[0].mxu0
        %v1462 = vadd.f32 %v1221, %v1461
        %v1463 = vpop.f32.mrb[0].mxu0
        %v1464 = vpop.f32.mrb[0].mxu0
        %v1465 = vadd.f32 %v1224, %v1464
        %v1466 = vpop.f32.mrb[0].mxu0
        %1467 = vmatprep.mubr.bf16.mxu0 %v607
        %1468 = vmatmul.mubr.bf16.gmra.mrb[0].mxu0 %v783
        %v1469 = vpop.f32.mrb[0].mxu0
        %v1470 = vadd.f32 %v1229, %v1469
        %v1471 = vpop.f32.mrb[0].mxu0
        %v1472 = vpop.f32.mrb[0].mxu0
        %v1473 = vadd.f32 %v1232, %v1472
        %v1474 = vpop.f32.mrb[0].mxu0
        %1475 = vmatprep.mubr.bf16.mxu0 %v608
        %1476 = vmatmul.mubr.bf16.gmra.mrb[0].mxu0 %v784
        %v1477 = vpop.f32.mrb[0].mxu0
        %v1478 = vadd.f32 %v1237, %v1477
        %v1479 = vpop.f32.mrb[0].mxu0
        %v1480 = vpop.f32.mrb[0].mxu0
        %v1481 = vadd.f32 %v1240, %v1480
        %v1482 = vpop.f32.mrb[0].mxu0
        %1483 = vmatprep.mubr.bf16.mxu0 %v609
        %1484 = vmatmul.mubr.bf16.gmra.mrb[0].mxu0 %v785
        %v1485 = vpop.f32.mrb[0].mxu0
        %v1486 = vadd.f32 %v1245, %v1485
        %v1487 = vpop.f32.mrb[0].mxu0
        %v1488 = vpop.f32.mrb[0].mxu0
        %v1489 = vadd.f32 %v1248, %v1488
        %v1490 = vpop.f32.mrb[0].mxu0
        %1491 = vmatprep.mubr.bf16.mxu0 %v610
        %1492 = vmatmul.mubr.bf16.gmra.mrb[0].mxu0 %v786
        %v1493 = vpop.f32.mrb[0].mxu0
        %v1494 = vadd.f32 %v1253, %v1493
        %v1495 = vpop.f32.mrb[0].mxu0
        %v1496 = vpop.f32.mrb[0].mxu0
        %v1497 = vadd.f32 %v1256, %v1496
        %v1498 = vpop.f32.mrb[0].mxu0
        %1499 = vmatprep.mubr.bf16.mxu0 %v611
        %1500 = vmatmul.mubr.bf16.gmra.mrb[0].mxu0 %v787
        %v1501 = vpop.f32.mrb[0].mxu0
        %v1502 = vadd.f32 %v1261, %v1501
        %v1503 = vpop.f32.mrb[0].mxu0
        %v1504 = vpop.f32.mrb[0].mxu0
        %v1505 = vadd.f32 %v1264, %v1504
        %v1506 = vpop.f32.mrb[0].mxu0
        %1507 = vdwg.mxu0
        %1508 = vmatprep.subr.bf16.mxu0 0
        %1509 = vmatpush1.bf16.msra.mxu0 %v1379
        %1510 = vmatprep.subr.bf16.mxu0 0
        %1511 = vmatpush1.bf16.msra.mxu0 %v1380
        %1512 = vmatprep.subr.bf16.mxu0 0
        %1513 = vmatpush1.bf16.msra.mxu0 %v1381
        %1514 = vmatprep.subr.bf16.mxu0 0
        %1515 = vmatpush1.bf16.msra.mxu0 %v1382
        %1516 = vmatprep.subr.bf16.mxu0 0
        %1517 = vmatpush1.bf16.msra.mxu0 %v1383
        %1518 = vmatprep.subr.bf16.mxu0 0
        %1519 = vmatpush1.bf16.msra.mxu0 %v1384
        %1520 = vmatprep.subr.bf16.mxu0 0
        %1521 = vmatpush1.bf16.msra.mxu0 %v1385
        %1522 = vmatprep.subr.bf16.mxu0 0
        %1523 = vmatpush1.bf16.msra.mxu0 %v1386
        %1524 = vmatprep.subr.bf16.mxu0 0
        %1525 = vmatpush1.bf16.msra.mxu0 0
        %1526 = vmatprep.subr.bf16.mxu0 0
        %1527 = vmatpush1.bf16.msra.mxu0 0
        %1528 = vmatprep.subr.bf16.mxu0 0
        %1529 = vmatpush1.bf16.msra.mxu0 0
        %1530 = vmatprep.subr.bf16.mxu0 0
        %1531 = vmatpush1.bf16.msra.mxu0 0
        %1532 = vmatprep.subr.bf16.mxu0 0
        %1533 = vmatpush1.bf16.msra.mxu0 0
        %1534 = vmatprep.subr.bf16.mxu0 0
        %1535 = vmatpush1.bf16.msra.mxu0 0
        %1536 = vmatprep.subr.bf16.mxu0 0
        %1537 = vmatpush1.bf16.msra.mxu0 0
        %1538 = vmatprep.subr.bf16.mxu0 0
        %1539 = vmatpush1.bf16.msra.mxu0 0
        %1540 = vmatprep.mubr.bf16.mxu0 0
        %1541 = vmatmul.mubr.bf16.gmra.mrb[0].mxu0 %v823
        %v1542 = vpop.f32.mrb[0].mxu0
        %v1543 = vadd.f32 %v1446, %v1542
        %v1544 = vpop.f32.mrb[0].mxu0
        %v1545 = vpop.f32.mrb[0].mxu0
        %v1546 = vadd.f32 %v1449, %v1545
        %v1547 = vpop.f32.mrb[0].mxu0
        %1548 = vmatprep.mubr.bf16.mxu0 0
        %1549 = vmatmul.mubr.bf16.gmra.mrb[0].mxu0 %v824
        %v1550 = vpop.f32.mrb[0].mxu0
        %v1551 = vadd.f32 %v1454, %v1550
        %v1552 = vpop.f32.mrb[0].mxu0
        %v1553 = vpop.f32.mrb[0].mxu0
        %v1554 = vadd.f32 %v1457, %v1553
        %v1555 = vpop.f32.mrb[0].mxu0
        %1556 = vmatprep.mubr.bf16.mxu0 0
        %1557 = vmatmul.mubr.bf16.gmra.mrb[0].mxu0 %v825
        %v1558 = vpop.f32.mrb[0].mxu0
        %v1559 = vadd.f32 %v1462, %v1558
        %v1560 = vpop.f32.mrb[0].mxu0
        %v1561 = vpop.f32.mrb[0].mxu0
        %v1562 = vadd.f32 %v1465, %v1561
        %v1563 = vpop.f32.mrb[0].mxu0
        %1564 = vmatprep.mubr.bf16.mxu0 0
        %1565 = vmatmul.mubr.bf16.gmra.mrb[0].mxu0 %v826
        %v1566 = vpop.f32.mrb[0].mxu0
        %v1567 = vadd.f32 %v1470, %v1566
        %v1568 = vpop.f32.mrb[0].mxu0
        %v1569 = vpop.f32.mrb[0].mxu0
        %v1570 = vadd.f32 %v1473, %v1569
        %v1571 = vpop.f32.mrb[0].mxu0
        %1572 = vmatprep.mubr.bf16.mxu0 0
        %1573 = vmatmul.mubr.bf16.gmra.mrb[0].mxu0 %v827
        %v1574 = vpop.f32.mrb[0].mxu0
        %v1575 = vadd.f32 %v1478, %v1574
        %v1576 = vpop.f32.mrb[0].mxu0
        %v1577 = vpop.f32.mrb[0].mxu0
        %v1578 = vadd.f32 %v1481, %v1577
        %v1579 = vpop.f32.mrb[0].mxu0
        %1580 = vmatprep.mubr.bf16.mxu0 0
        %1581 = vmatmul.mubr.bf16.gmra.mrb[0].mxu0 %v828
        %v1582 = vpop.f32.mrb[0].mxu0
        %v1583 = vadd.f32 %v1486, %v1582
        %v1584 = vpop.f32.mrb[0].mxu0
        %v1585 = vpop.f32.mrb[0].mxu0
        %v1586 = vadd.f32 %v1489, %v1585
        %v1587 = vpop.f32.mrb[0].mxu0
        %1588 = vmatprep.mubr.bf16.mxu0 0
        %1589 = vmatmul.mubr.bf16.gmra.mrb[0].mxu0 %v829
        %v1590 = vpop.f32.mrb[0].mxu0
        %v1591 = vadd.f32 %v1494, %v1590
        %v1592 = vpop.f32.mrb[0].mxu0
        %v1593 = vpop.f32.mrb[0].mxu0
        %v1594 = vadd.f32 %v1497, %v1593
        %v1595 = vpop.f32.mrb[0].mxu0
        %1596 = vmatprep.mubr.bf16.mxu0 0
        %1597 = vmatmul.mubr.bf16.gmra.mrb[0].mxu0 %v830
        %v1598 = vpop.f32.mrb[0].mxu0
        %v1599 = vadd.f32 %v1502, %v1598
        %v1600 = vpop.f32.mrb[0].mxu0
        %v1601 = vpop.f32.mrb[0].mxu0
        %v1602 = vadd.f32 %v1505, %v1601
        %v1603 = vpop.f32.mrb[0].mxu0
        %1604 = vdwg.mxu0
        %s1605 = scalar_lea.vmem [#allocation5], 384
        %v1606 = vld [vmem:[%s1605] sm:$0xf]
        %v1607 = vld [vmem:[%s1605 + $0x4] sm:$0xf]
        %v1608 = vld [vmem:[%s1605 + $0x8] sm:$0xf]
        %v1609 = vld [vmem:[%s1605 + $0xc] sm:$0xf]
        %v1610 = vld [vmem:[%s1605 + $0x10] sm:$0xf]
        %v1611 = vld [vmem:[%s1605 + $0x14] sm:$0xf]
        %v1612 = vld [vmem:[%s1605 + $0x18] sm:$0xf]
        %v1613 = vld [vmem:[%s1605 + $0x1c] sm:$0xf]
        %v1614 = vld [vmem:[%s1605 + $0x20] sm:$0xf]
        %v1615 = vld [vmem:[%s1605 + $0x24] sm:$0xf]
        %v1616 = vld [vmem:[%s1605 + $0x28] sm:$0xf]
        %v1617 = vld [vmem:[%s1605 + $0x2c] sm:$0xf]
        %v1618 = vld [vmem:[%s1605 + $0x30] sm:$0xf]
        %v1619 = vld [vmem:[%s1605 + $0x34] sm:$0xf]
        %v1620 = vld [vmem:[%s1605 + $0x38] sm:$0xf]
        %v1621 = vld [vmem:[%s1605 + $0x3c] sm:$0xf]
        %v1622 = vld [vmem:[%s1605 + $0x40] sm:$0xf]
        %v1623 = vld [vmem:[%s1605 + $0x44] sm:$0xf]
        %v1624 = vld [vmem:[%s1605 + $0x48] sm:$0xf]
        %v1625 = vld [vmem:[%s1605 + $0x4c] sm:$0xf]
        %v1626 = vld [vmem:[%s1605 + $0x50] sm:$0xf]
        %v1627 = vld [vmem:[%s1605 + $0x54] sm:$0xf]
        %v1628 = vld [vmem:[%s1605 + $0x58] sm:$0xf]
        %v1629 = vld [vmem:[%s1605 + $0x5c] sm:$0xf]
        %v1630 = vld [vmem:[%s1605 + $0x60] sm:$0xf]
        %v1631 = vld [vmem:[%s1605 + $0x64] sm:$0xf]
        %v1632 = vld [vmem:[%s1605 + $0x68] sm:$0xf]
        %v1633 = vld [vmem:[%s1605 + $0x6c] sm:$0xf]
        %v1634 = vld [vmem:[%s1605 + $0x70] sm:$0xf]
        %v1635 = vld [vmem:[%s1605 + $0x74] sm:$0xf]
        %v1636 = vld [vmem:[%s1605 + $0x78] sm:$0xf]
        %v1637 = vld [vmem:[%s1605 + $0x7c] sm:$0xf]
        %v1638 = vld [vmem:[%s1605 + $0x80] sm:$0xf]
        %v1639 = vld [vmem:[%s1605 + $0x84] sm:$0xf]
        %v1640 = vld [vmem:[%s1605 + $0x88] sm:$0xf]
        %v1641 = vld [vmem:[%s1605 + $0x8c] sm:$0xf]
        %v1642 = vld [vmem:[%s1605 + $0x90] sm:$0xf]
        %v1643 = vld [vmem:[%s1605 + $0x94] sm:$0xf]
        %v1644 = vld [vmem:[%s1605 + $0x98] sm:$0xf]
        %v1645 = vld [vmem:[%s1605 + $0x9c] sm:$0xf]
        %v1646 = vld [vmem:[%s1605 + $0xa0] sm:$0xf]
        %v1647 = vld [vmem:[%s1605 + $0xa4] sm:$0xf]
        %v1648 = vld [vmem:[%s1605 + $0xa8] sm:$0xf]
        %v1649 = vld [vmem:[%s1605 + $0xac] sm:$0xf]
        %v1650 = vld [vmem:[%s1605 + $0xb0] sm:$0xf]
        %v1651 = vld [vmem:[%s1605 + $0xb4] sm:$0xf]
        %v1652 = vld [vmem:[%s1605 + $0xb8] sm:$0xf]
        %v1653 = vld [vmem:[%s1605 + $0xbc] sm:$0xf]
        %v1702 = vunpack.c.l.b16 %v1606
        %v1703 = vunpack.c.l.b16 %v1607
        %v1704 = vunpack.c.l.b16 %v1608
        %v1705 = vunpack.c.l.b16 %v1609
        %v1706 = vunpack.c.l.b16 %v1610
        %v1707 = vunpack.c.l.b16 %v1611
        %v1708 = vunpack.c.l.b16 %v1612
        %v1709 = vunpack.c.l.b16 %v1613
        %v1710 = vunpack.c.l.b16 %v1614
        %v1711 = vunpack.c.l.b16 %v1615
        %v1712 = vunpack.c.l.b16 %v1616
        %v1713 = vunpack.c.l.b16 %v1617
        %v1714 = vunpack.c.l.b16 %v1618
        %v1715 = vunpack.c.l.b16 %v1619
        %v1716 = vunpack.c.l.b16 %v1620
        %v1717 = vunpack.c.l.b16 %v1621
        %v1718 = vunpack.c.l.b16 %v1622
        %v1719 = vunpack.c.l.b16 %v1623
        %v1720 = vunpack.c.l.b16 %v1624
        %v1721 = vunpack.c.l.b16 %v1625
        %v1722 = vunpack.c.l.b16 %v1626
        %v1723 = vunpack.c.l.b16 %v1627
        %v1724 = vunpack.c.l.b16 %v1628
        %v1725 = vunpack.c.l.b16 %v1629
        %v1726 = vunpack.c.l.b16 %v1630
        %v1727 = vunpack.c.l.b16 %v1631
        %v1728 = vunpack.c.l.b16 %v1632
        %v1729 = vunpack.c.l.b16 %v1633
        %v1730 = vunpack.c.l.b16 %v1634
        %v1731 = vunpack.c.l.b16 %v1635
        %v1732 = vunpack.c.l.b16 %v1636
        %v1733 = vunpack.c.l.b16 %v1637
        %v1734 = vunpack.c.l.b16 %v1638
        %v1735 = vunpack.c.l.b16 %v1639
        %v1736 = vunpack.c.l.b16 %v1640
        %v1737 = vunpack.c.l.b16 %v1641
        %v1738 = vunpack.c.l.b16 %v1642
        %v1739 = vunpack.c.l.b16 %v1643
        %v1740 = vunpack.c.l.b16 %v1644
        %v1741 = vunpack.c.l.b16 %v1645
        %v1742 = vunpack.c.l.b16 %v1646
        %v1743 = vunpack.c.l.b16 %v1647
        %v1744 = vunpack.c.l.b16 %v1648
        %v1745 = vunpack.c.l.b16 %v1649
        %v1746 = vunpack.c.l.b16 %v1650
        %v1747 = vunpack.c.l.b16 %v1651
        %v1748 = vunpack.c.l.b16 %v1652
        %v1749 = vunpack.c.l.b16 %v1653
        %v1750 = vpack.c.b16 %v1703, %v1702
        %v1751 = vpack.c.b16 %v1705, %v1704
        %v1752 = vpack.c.b16 %v1707, %v1706
        %v1753 = vpack.c.b16 %v1709, %v1708
        %v1754 = vpack.c.b16 %v1711, %v1710
        %v1755 = vpack.c.b16 %v1713, %v1712
        %v1756 = vpack.c.b16 %v1715, %v1714
        %v1757 = vpack.c.b16 %v1717, %v1716
        %v1758 = vpack.c.b16 %v1719, %v1718
        %v1759 = vpack.c.b16 %v1721, %v1720
        %v1760 = vpack.c.b16 %v1723, %v1722
        %v1761 = vpack.c.b16 %v1725, %v1724
        %v1762 = vpack.c.b16 %v1727, %v1726
        %v1763 = vpack.c.b16 %v1729, %v1728
        %v1764 = vpack.c.b16 %v1731, %v1730
        %v1765 = vpack.c.b16 %v1733, %v1732
        %v1766 = vpack.c.b16 %v1735, %v1734
        %v1767 = vpack.c.b16 %v1737, %v1736
        %v1768 = vpack.c.b16 %v1739, %v1738
        %v1769 = vpack.c.b16 %v1741, %v1740
        %v1770 = vpack.c.b16 %v1743, %v1742
        %v1771 = vpack.c.b16 %v1745, %v1744
        %v1772 = vpack.c.b16 %v1747, %v1746
        %v1773 = vpack.c.b16 %v1749, %v1748
        %1798 = vmatprep.subr.bf16.mxu0 0
        %1799 = vmatpush1.bf16.msra.mxu0 %v1750
        %1800 = vmatprep.subr.bf16.mxu0 0
        %1801 = vmatpush1.bf16.msra.mxu0 %v1751
        %1802 = vmatprep.subr.bf16.mxu0 0
        %1803 = vmatpush1.bf16.msra.mxu0 %v1752
        %1804 = vmatprep.subr.bf16.mxu0 0
        %1805 = vmatpush1.bf16.msra.mxu0 %v1753
        %1806 = vmatprep.subr.bf16.mxu0 0
        %1807 = vmatpush1.bf16.msra.mxu0 %v1754
        %1808 = vmatprep.subr.bf16.mxu0 0
        %1809 = vmatpush1.bf16.msra.mxu0 %v1755
        %1810 = vmatprep.subr.bf16.mxu0 0
        %1811 = vmatpush1.bf16.msra.mxu0 %v1756
        %1812 = vmatprep.subr.bf16.mxu0 0
        %1813 = vmatpush1.bf16.msra.mxu0 %v1757
        %1814 = vmatprep.subr.bf16.mxu0 0
        %1815 = vmatpush1.bf16.msra.mxu0 %v1758
        %1816 = vmatprep.subr.bf16.mxu0 0
        %1817 = vmatpush1.bf16.msra.mxu0 %v1759
        %1818 = vmatprep.subr.bf16.mxu0 0
        %1819 = vmatpush1.bf16.msra.mxu0 %v1760
        %1820 = vmatprep.subr.bf16.mxu0 0
        %1821 = vmatpush1.bf16.msra.mxu0 %v1761
        %1822 = vmatprep.subr.bf16.mxu0 0
        %1823 = vmatpush1.bf16.msra.mxu0 %v1762
        %1824 = vmatprep.subr.bf16.mxu0 0
        %1825 = vmatpush1.bf16.msra.mxu0 %v1763
        %1826 = vmatprep.subr.bf16.mxu0 0
        %1827 = vmatpush1.bf16.msra.mxu0 %v1764
        %1828 = vmatprep.subr.bf16.mxu0 0
        %1829 = vmatpush1.bf16.msra.mxu0 %v1765
        %1830 = vmatprep.mubr.bf16.mxu0 %v605
        %1831 = vmatmul.mubr.bf16.gmra.mrb[0].mxu0 %v781
        %v1832 = vpop.f32.mrb[0].mxu0
        %v1833 = vadd.f32 0.0, %v1832
        %v1834 = vpop.f32.mrb[0].mxu0
        %v1835 = vpop.f32.mrb[0].mxu0
        %v1836 = vadd.f32 0.0, %v1835
        %v1837 = vpop.f32.mrb[0].mxu0
        %1838 = vmatprep.mubr.bf16.mxu0 %v606
        %1839 = vmatmul.mubr.bf16.gmra.mrb[0].mxu0 %v782
        %v1840 = vpop.f32.mrb[0].mxu0
        %v1841 = vadd.f32 0.0, %v1840
        %v1842 = vpop.f32.mrb[0].mxu0
        %v1843 = vpop.f32.mrb[0].mxu0
        %v1844 = vadd.f32 0.0, %v1843
        %v1845 = vpop.f32.mrb[0].mxu0
        %1846 = vmatprep.mubr.bf16.mxu0 %v607
        %1847 = vmatmul.mubr.bf16.gmra.mrb[0].mxu0 %v783
        %v1848 = vpop.f32.mrb[0].mxu0
        %v1849 = vadd.f32 0.0, %v1848
        %v1850 = vpop.f32.mrb[0].mxu0
        %v1851 = vpop.f32.mrb[0].mxu0
        %v1852 = vadd.f32 0.0, %v1851
        %v1853 = vpop.f32.mrb[0].mxu0
        %1854 = vmatprep.mubr.bf16.mxu0 %v608
        %1855 = vmatmul.mubr.bf16.gmra.mrb[0].mxu0 %v784
        %v1856 = vpop.f32.mrb[0].mxu0
        %v1857 = vadd.f32 0.0, %v1856
        %v1858 = vpop.f32.mrb[0].mxu0
        %v1859 = vpop.f32.mrb[0].mxu0
        %v1860 = vadd.f32 0.0, %v1859
        %v1861 = vpop.f32.mrb[0].mxu0
        %1862 = vmatprep.mubr.bf16.mxu0 %v609
        %1863 = vmatmul.mubr.bf16.gmra.mrb[0].mxu0 %v785
        %v1864 = vpop.f32.mrb[0].mxu0
        %v1865 = vadd.f32 0.0, %v1864
        %v1866 = vpop.f32.mrb[0].mxu0
        %v1867 = vpop.f32.mrb[0].mxu0
        %v1868 = vadd.f32 0.0, %v1867
        %v1869 = vpop.f32.mrb[0].mxu0
        %1870 = vmatprep.mubr.bf16.mxu0 %v610
        %1871 = vmatmul.mubr.bf16.gmra.mrb[0].mxu0 %v786
        %v1872 = vpop.f32.mrb[0].mxu0
        %v1873 = vadd.f32 0.0, %v1872
        %v1874 = vpop.f32.mrb[0].mxu0
        %v1875 = vpop.f32.mrb[0].mxu0
        %v1876 = vadd.f32 0.0, %v1875
        %v1877 = vpop.f32.mrb[0].mxu0
        %1878 = vmatprep.mubr.bf16.mxu0 %v611
        %1879 = vmatmul.mubr.bf16.gmra.mrb[0].mxu0 %v787
        %v1880 = vpop.f32.mrb[0].mxu0
        %v1881 = vadd.f32 0.0, %v1880
        %v1882 = vpop.f32.mrb[0].mxu0
        %v1883 = vpop.f32.mrb[0].mxu0
        %v1884 = vadd.f32 0.0, %v1883
        %v1885 = vpop.f32.mrb[0].mxu0
        %1886 = vmatprep.mubr.bf16.mxu0 %v695
        %1887 = vmatmul.mubr.bf16.gmra.mrb[0].mxu0 %v788
        %v1888 = vpop.f32.mrb[0].mxu0
        %v1889 = vadd.f32 0.0, %v1888
        %v1890 = vpop.f32.mrb[0].mxu0
        %v1891 = vpop.f32.mrb[0].mxu0
        %v1892 = vadd.f32 0.0, %v1891
        %v1893 = vpop.f32.mrb[0].mxu0
        %1894 = vdwg.mxu0
        %1895 = vmatprep.subr.bf16.mxu0 0
        %1896 = vmatpush1.bf16.msra.mxu0 %v1766
        %1897 = vmatprep.subr.bf16.mxu0 0
        %1898 = vmatpush1.bf16.msra.mxu0 %v1767
        %1899 = vmatprep.subr.bf16.mxu0 0
        %1900 = vmatpush1.bf16.msra.mxu0 %v1768
        %1901 = vmatprep.subr.bf16.mxu0 0
        %1902 = vmatpush1.bf16.msra.mxu0 %v1769
        %1903 = vmatprep.subr.bf16.mxu0 0
        %1904 = vmatpush1.bf16.msra.mxu0 %v1770
        %1905 = vmatprep.subr.bf16.mxu0 0
        %1906 = vmatpush1.bf16.msra.mxu0 %v1771
        %1907 = vmatprep.subr.bf16.mxu0 0
        %1908 = vmatpush1.bf16.msra.mxu0 %v1772
        %1909 = vmatprep.subr.bf16.mxu0 0
        %1910 = vmatpush1.bf16.msra.mxu0 %v1773
        %1911 = vmatprep.subr.bf16.mxu0 0
        %1912 = vmatpush1.bf16.msra.mxu0 0
        %1913 = vmatprep.subr.bf16.mxu0 0
        %1914 = vmatpush1.bf16.msra.mxu0 0
        %1915 = vmatprep.subr.bf16.mxu0 0
        %1916 = vmatpush1.bf16.msra.mxu0 0
        %1917 = vmatprep.subr.bf16.mxu0 0
        %1918 = vmatpush1.bf16.msra.mxu0 0
        %1919 = vmatprep.subr.bf16.mxu0 0
        %1920 = vmatpush1.bf16.msra.mxu0 0
        %1921 = vmatprep.subr.bf16.mxu0 0
        %1922 = vmatpush1.bf16.msra.mxu0 0
        %1923 = vmatprep.subr.bf16.mxu0 0
        %1924 = vmatpush1.bf16.msra.mxu0 0
        %1925 = vmatprep.subr.bf16.mxu0 0
        %1926 = vmatpush1.bf16.msra.mxu0 0
        %1927 = vmatprep.mubr.bf16.mxu0 0
        %1928 = vmatmul.mubr.bf16.gmra.mrb[0].mxu0 %v824
        %v1929 = vpop.f32.mrb[0].mxu0
        %v1930 = vadd.f32 %v1833, %v1929
        %v1931 = vpop.f32.mrb[0].mxu0
        %v1932 = vpop.f32.mrb[0].mxu0
        %v1933 = vadd.f32 %v1836, %v1932
        %v1934 = vpop.f32.mrb[0].mxu0
        %1935 = vmatprep.mubr.bf16.mxu0 0
        %1936 = vmatmul.mubr.bf16.gmra.mrb[0].mxu0 %v825
        %v1937 = vpop.f32.mrb[0].mxu0
        %v1938 = vadd.f32 %v1841, %v1937
        %v1939 = vpop.f32.mrb[0].mxu0
        %v1940 = vpop.f32.mrb[0].mxu0
        %v1941 = vadd.f32 %v1844, %v1940
        %v1942 = vpop.f32.mrb[0].mxu0
        %1943 = vmatprep.mubr.bf16.mxu0 0
        %1944 = vmatmul.mubr.bf16.gmra.mrb[0].mxu0 %v826
        %v1945 = vpop.f32.mrb[0].mxu0
        %v1946 = vadd.f32 %v1849, %v1945
        %v1947 = vpop.f32.mrb[0].mxu0
        %v1948 = vpop.f32.mrb[0].mxu0
        %v1949 = vadd.f32 %v1852, %v1948
        %v1950 = vpop.f32.mrb[0].mxu0
        %1951 = vmatprep.mubr.bf16.mxu0 0
        %1952 = vmatmul.mubr.bf16.gmra.mrb[0].mxu0 %v827
        %v1953 = vpop.f32.mrb[0].mxu0
        %v1954 = vadd.f32 %v1857, %v1953
        %v1955 = vpop.f32.mrb[0].mxu0
        %v1956 = vpop.f32.mrb[0].mxu0
        %v1957 = vadd.f32 %v1860, %v1956
        %v1958 = vpop.f32.mrb[0].mxu0
        %1959 = vmatprep.mubr.bf16.mxu0 0
        %1960 = vmatmul.mubr.bf16.gmra.mrb[0].mxu0 %v828
        %v1961 = vpop.f32.mrb[0].mxu0
        %v1962 = vadd.f32 %v1865, %v1961
        %v1963 = vpop.f32.mrb[0].mxu0
        %v1964 = vpop.f32.mrb[0].mxu0
        %v1965 = vadd.f32 %v1868, %v1964
        %v1966 = vpop.f32.mrb[0].mxu0
        %1967 = vmatprep.mubr.bf16.mxu0 0
        %1968 = vmatmul.mubr.bf16.gmra.mrb[0].mxu0 %v829
        %v1969 = vpop.f32.mrb[0].mxu0
        %v1970 = vadd.f32 %v1873, %v1969
        %v1971 = vpop.f32.mrb[0].mxu0
        %v1972 = vpop.f32.mrb[0].mxu0
        %v1973 = vadd.f32 %v1876, %v1972
        %v1974 = vpop.f32.mrb[0].mxu0
        %1975 = vmatprep.mubr.bf16.mxu0 0
        %1976 = vmatmul.mubr.bf16.gmra.mrb[0].mxu0 %v830
        %v1977 = vpop.f32.mrb[0].mxu0
        %v1978 = vadd.f32 %v1881, %v1977
        %v1979 = vpop.f32.mrb[0].mxu0
        %v1980 = vpop.f32.mrb[0].mxu0
        %v1981 = vadd.f32 %v1884, %v1980
        %v1982 = vpop.f32.mrb[0].mxu0
        %1983 = vmatprep.mubr.bf16.mxu0 0
        %1984 = vmatmul.mubr.bf16.gmra.mrb[0].mxu0 %v831
        %v1985 = vpop.f32.mrb[0].mxu0
        %v1986 = vadd.f32 %v1889, %v1985
        %v1987 = vpop.f32.mrb[0].mxu0
        %v1988 = vpop.f32.mrb[0].mxu0
        %v1989 = vadd.f32 %v1892, %v1988
        %v1990 = vpop.f32.mrb[0].mxu0
        %1991 = vdwg.mxu0
        %v1992 = vadd.f32 %v1543, %v1930
        %v1993 = vadd.f32 %v1546, %v1933
        %v1994 = vadd.f32 %v1551, %v1938
        %v1995 = vadd.f32 %v1554, %v1941
        %v1996 = vadd.f32 %v1559, %v1946
        %v1997 = vadd.f32 %v1562, %v1949
        %v1998 = vadd.f32 %v1567, %v1954
        %v1999 = vadd.f32 %v1570, %v1957
        %v2000 = vadd.f32 %v1575, %v1962
        %v2001 = vadd.f32 %v1578, %v1965
        %v2002 = vadd.f32 %v1583, %v1970
        %v2003 = vadd.f32 %v1586, %v1973
        %v2004 = vadd.f32 %v1591, %v1978
        %v2005 = vadd.f32 %v1594, %v1981
        %v2006 = vadd.f32 %v1599, %v1986
        %v2007 = vadd.f32 %v1602, %v1989
        %v2008 = vadd.f32 %v453, %v1992
        %v2009 = vadd.f32 %v454, %v1993
        %v2010 = vadd.f32 %v455, %v1994
        %v2011 = vadd.f32 %v456, %v1995
        %v2012 = vadd.f32 %v457, %v1996
        %v2013 = vadd.f32 %v458, %v1997
        %v2014 = vadd.f32 %v459, %v1998
        %v2015 = vadd.f32 %v460, %v1999
        %v2016 = vadd.f32 %v461, %v2000
        %v2017 = vadd.f32 %v462, %v2001
        %v2018 = vadd.f32 %v463, %v2002
        %v2019 = vadd.f32 %v464, %v2003
        %v2020 = vadd.f32 %v465, %v2004
        %v2021 = vadd.f32 %v466, %v2005
        %v2022 = vadd.f32 %v467, %v2006
        %v2023 = vadd.f32 %v468, %v2007
        %v2024 = vld [vmem:[%s3] sm:$0x1]
        %v2026 = vlaneseq
        %v2027 = vshrl.u32 %v2026, 7
        %v2028 = vsub.s32 0, %v2027
        %v2029 = vrot.slane %v2024, %v2028
        %v2031 = vadd.f32 %v2008, %v2029
        %v2032 = vadd.f32 %v2009, %v2029
        %v2033 = vadd.f32 %v2010, %v2029
        %v2034 = vadd.f32 %v2011, %v2029
        %v2035 = vadd.f32 %v2012, %v2029
        %v2036 = vadd.f32 %v2013, %v2029
        %v2037 = vadd.f32 %v2014, %v2029
        %v2038 = vadd.f32 %v2015, %v2029
        %v2039 = vadd.f32 %v2016, %v2029
        %v2040 = vadd.f32 %v2017, %v2029
        %v2041 = vadd.f32 %v2018, %v2029
        %v2042 = vadd.f32 %v2019, %v2029
        %v2043 = vadd.f32 %v2020, %v2029
        %v2044 = vadd.f32 %v2021, %v2029
        %v2045 = vadd.f32 %v2022, %v2029
        %v2046 = vadd.f32 %v2023, %v2029
        %vm2047 = vcmp.ge.f32.partialorder %v2031, 0.0
        %vm2048 = vcmp.ge.f32.partialorder %v2032, 0.0
        %vm2049 = vcmp.ge.f32.partialorder %v2033, 0.0
        %vm2050 = vcmp.ge.f32.partialorder %v2034, 0.0
        %vm2051 = vcmp.ge.f32.partialorder %v2035, 0.0
        %vm2052 = vcmp.ge.f32.partialorder %v2036, 0.0
        %vm2053 = vcmp.ge.f32.partialorder %v2037, 0.0
        %vm2054 = vcmp.ge.f32.partialorder %v2038, 0.0
        %vm2055 = vcmp.ge.f32.partialorder %v2039, 0.0
        %vm2056 = vcmp.ge.f32.partialorder %v2040, 0.0
        %vm2057 = vcmp.ge.f32.partialorder %v2041, 0.0
        %vm2058 = vcmp.ge.f32.partialorder %v2042, 0.0
        %vm2059 = vcmp.ge.f32.partialorder %v2043, 0.0
        %vm2060 = vcmp.ge.f32.partialorder %v2044, 0.0
        %vm2061 = vcmp.ge.f32.partialorder %v2045, 0.0
        %vm2062 = vcmp.ge.f32.partialorder %v2046, 0.0
        %v2063 = vld [vmem:[%s4] sm:$0x1]
        %v2065 = vlaneseq
        %v2066 = vshrl.u32 %v2065, 7
        %v2067 = vsub.s32 0, %v2066
        %v2068 = vrot.slane %v2063, %v2067
        %v2070 = vmul.f32 %v2068, %v2031
        %v2071 = vmul.f32 %v2068, %v2032
        %v2072 = vmul.f32 %v2068, %v2033
        %v2073 = vmul.f32 %v2068, %v2034
        %v2074 = vmul.f32 %v2068, %v2035
        %v2075 = vmul.f32 %v2068, %v2036
        %v2076 = vmul.f32 %v2068, %v2037
        %v2077 = vmul.f32 %v2068, %v2038
        %v2078 = vmul.f32 %v2068, %v2039
        %v2079 = vmul.f32 %v2068, %v2040
        %v2080 = vmul.f32 %v2068, %v2041
        %v2081 = vmul.f32 %v2068, %v2042
        %v2082 = vmul.f32 %v2068, %v2043
        %v2083 = vmul.f32 %v2068, %v2044
        %v2084 = vmul.f32 %v2068, %v2045
        %v2085 = vmul.f32 %v2068, %v2046
        %v2086 = vsel %vm2047, %v2031, %v2070
        %v2087 = vsel %vm2048, %v2032, %v2071
        %v2088 = vsel %vm2049, %v2033, %v2072
        %v2089 = vsel %vm2050, %v2034, %v2073
        %v2090 = vsel %vm2051, %v2035, %v2074
        %v2091 = vsel %vm2052, %v2036, %v2075
        %v2092 = vsel %vm2053, %v2037, %v2076
        %v2093 = vsel %vm2054, %v2038, %v2077
        %v2094 = vsel %vm2055, %v2039, %v2078
        %v2095 = vsel %vm2056, %v2040, %v2079
        %v2096 = vsel %vm2057, %v2041, %v2080
        %v2097 = vsel %vm2058, %v2042, %v2081
        %v2098 = vsel %vm2059, %v2043, %v2082
        %v2099 = vsel %vm2060, %v2044, %v2083
        %v2100 = vsel %vm2061, %v2045, %v2084
        %v2101 = vsel %vm2062, %v2046, %v2085
        %v2102 = vld [vmem:[%s5] sm:$0x1]
        %v2104 = vlaneseq
        %v2105 = vshrl.u32 %v2104, 7
        %v2106 = vsub.s32 0, %v2105
        %v2107 = vrot.slane %v2102, %v2106
        %v2109 = vadd.f32 %v2086, %v2107
        %v2110 = vadd.f32 %v2087, %v2107
        %v2111 = vadd.f32 %v2088, %v2107
        %v2112 = vadd.f32 %v2089, %v2107
        %v2113 = vadd.f32 %v2090, %v2107
        %v2114 = vadd.f32 %v2091, %v2107
        %v2115 = vadd.f32 %v2092, %v2107
        %v2116 = vadd.f32 %v2093, %v2107
        %v2117 = vadd.f32 %v2094, %v2107
        %v2118 = vadd.f32 %v2095, %v2107
        %v2119 = vadd.f32 %v2096, %v2107
        %v2120 = vadd.f32 %v2097, %v2107
        %v2121 = vadd.f32 %v2098, %v2107
        %v2122 = vadd.f32 %v2099, %v2107
        %v2123 = vadd.f32 %v2100, %v2107
        %v2124 = vadd.f32 %v2101, %v2107
        %v2125 = vld [vmem:[%s6] sm:$0x1]
        %v2127 = vlaneseq
        %v2128 = vshrl.u32 %v2127, 7
        %v2129 = vsub.s32 0, %v2128
        %v2130 = vrot.slane %v2125, %v2129
        %v2132 = vadd.f32 %v2109, %v2130
        %v2133 = vadd.f32 %v2110, %v2130
        %v2134 = vadd.f32 %v2111, %v2130
        %v2135 = vadd.f32 %v2112, %v2130
        %v2136 = vadd.f32 %v2113, %v2130
        %v2137 = vadd.f32 %v2114, %v2130
        %v2138 = vadd.f32 %v2115, %v2130
        %v2139 = vadd.f32 %v2116, %v2130
        %v2140 = vadd.f32 %v2117, %v2130
        %v2141 = vadd.f32 %v2118, %v2130
        %v2142 = vadd.f32 %v2119, %v2130
        %v2143 = vadd.f32 %v2120, %v2130
        %v2144 = vadd.f32 %v2121, %v2130
        %v2145 = vadd.f32 %v2122, %v2130
        %v2146 = vadd.f32 %v2123, %v2130
        %v2147 = vadd.f32 %v2124, %v2130
        %vm2148 = vcmp.gt.f32.partialorder %v2132, 0.0
        %vm2149 = vcmp.gt.f32.partialorder %v2133, 0.0
        %vm2150 = vcmp.gt.f32.partialorder %v2134, 0.0
        %vm2151 = vcmp.gt.f32.partialorder %v2135, 0.0
        %vm2152 = vcmp.gt.f32.partialorder %v2136, 0.0
        %vm2153 = vcmp.gt.f32.partialorder %v2137, 0.0
        %vm2154 = vcmp.gt.f32.partialorder %v2138, 0.0
        %vm2155 = vcmp.gt.f32.partialorder %v2139, 0.0
        %vm2156 = vcmp.gt.f32.partialorder %v2140, 0.0
        %vm2157 = vcmp.gt.f32.partialorder %v2141, 0.0
        %vm2158 = vcmp.gt.f32.partialorder %v2142, 0.0
        %vm2159 = vcmp.gt.f32.partialorder %v2143, 0.0
        %vm2160 = vcmp.gt.f32.partialorder %v2144, 0.0
        %vm2161 = vcmp.gt.f32.partialorder %v2145, 0.0
        %vm2162 = vcmp.gt.f32.partialorder %v2146, 0.0
        %vm2163 = vcmp.gt.f32.partialorder %v2147, 0.0
        %v2164 = vsel %vm2148, 1, 0
        %v2165 = vsel %vm2149, 1, 0
        %v2166 = vsel %vm2150, 1, 0
        %v2167 = vsel %vm2151, 1, 0
        %v2168 = vsel %vm2152, 1, 0
        %v2169 = vsel %vm2153, 1, 0
        %v2170 = vsel %vm2154, 1, 0
        %v2171 = vsel %vm2155, 1, 0
        %v2172 = vsel %vm2156, 1, 0
        %v2173 = vsel %vm2157, 1, 0
        %v2174 = vsel %vm2158, 1, 0
        %v2175 = vsel %vm2159, 1, 0
        %v2176 = vsel %vm2160, 1, 0
        %v2177 = vsel %vm2161, 1, 0
        %v2178 = vsel %vm2162, 1, 0
        %v2179 = vsel %vm2163, 1, 0
        %v2180 = vcvt.s32.f32 %v2164
        %v2181 = vcvt.s32.f32 %v2165
        %v2182 = vcvt.s32.f32 %v2166
        %v2183 = vcvt.s32.f32 %v2167
        %v2184 = vcvt.s32.f32 %v2168
        %v2185 = vcvt.s32.f32 %v2169
        %v2186 = vcvt.s32.f32 %v2170
        %v2187 = vcvt.s32.f32 %v2171
        %v2188 = vcvt.s32.f32 %v2172
        %v2189 = vcvt.s32.f32 %v2173
        %v2190 = vcvt.s32.f32 %v2174
        %v2191 = vcvt.s32.f32 %v2175
        %v2192 = vcvt.s32.f32 %v2176
        %v2193 = vcvt.s32.f32 %v2177
        %v2194 = vcvt.s32.f32 %v2178
        %v2195 = vcvt.s32.f32 %v2179
        %v2196 = vpack.c.bf16 %v2181, %v2180
        %v2197 = vpack.c.bf16 %v2183, %v2182
        %v2198 = vpack.c.bf16 %v2185, %v2184
        %v2199 = vpack.c.bf16 %v2187, %v2186
        %v2200 = vpack.c.bf16 %v2189, %v2188
        %v2201 = vpack.c.bf16 %v2191, %v2190
        %v2202 = vpack.c.bf16 %v2193, %v2192
        %v2203 = vpack.c.bf16 %v2195, %v2194
        %vm2204 = vcmp.lt.f32.partialorder %v2132, 0.0
        %vm2205 = vcmp.lt.f32.partialorder %v2133, 0.0
        %vm2206 = vcmp.lt.f32.partialorder %v2134, 0.0
        %vm2207 = vcmp.lt.f32.partialorder %v2135, 0.0
        %vm2208 = vcmp.lt.f32.partialorder %v2136, 0.0
        %vm2209 = vcmp.lt.f32.partialorder %v2137, 0.0
        %vm2210 = vcmp.lt.f32.partialorder %v2138, 0.0
        %vm2211 = vcmp.lt.f32.partialorder %v2139, 0.0
        %vm2212 = vcmp.lt.f32.partialorder %v2140, 0.0
        %vm2213 = vcmp.lt.f32.partialorder %v2141, 0.0
        %vm2214 = vcmp.lt.f32.partialorder %v2142, 0.0
        %vm2215 = vcmp.lt.f32.partialorder %v2143, 0.0
        %vm2216 = vcmp.lt.f32.partialorder %v2144, 0.0
        %vm2217 = vcmp.lt.f32.partialorder %v2145, 0.0
        %vm2218 = vcmp.lt.f32.partialorder %v2146, 0.0
        %vm2219 = vcmp.lt.f32.partialorder %v2147, 0.0
        %v2220 = vsel %vm2204, 1, 0
        %v2221 = vsel %vm2205, 1, 0
        %v2222 = vsel %vm2206, 1, 0
        %v2223 = vsel %vm2207, 1, 0
        %v2224 = vsel %vm2208, 1, 0
        %v2225 = vsel %vm2209, 1, 0
        %v2226 = vsel %vm2210, 1, 0
        %v2227 = vsel %vm2211, 1, 0
        %v2228 = vsel %vm2212, 1, 0
        %v2229 = vsel %vm2213, 1, 0
        %v2230 = vsel %vm2214, 1, 0
        %v2231 = vsel %vm2215, 1, 0
        %v2232 = vsel %vm2216, 1, 0
        %v2233 = vsel %vm2217, 1, 0
        %v2234 = vsel %vm2218, 1, 0
        %v2235 = vsel %vm2219, 1, 0
        %v2236 = vcvt.s32.f32 %v2220
        %v2237 = vcvt.s32.f32 %v2221
        %v2238 = vcvt.s32.f32 %v2222
        %v2239 = vcvt.s32.f32 %v2223
        %v2240 = vcvt.s32.f32 %v2224
        %v2241 = vcvt.s32.f32 %v2225
        %v2242 = vcvt.s32.f32 %v2226
        %v2243 = vcvt.s32.f32 %v2227
        %v2244 = vcvt.s32.f32 %v2228
        %v2245 = vcvt.s32.f32 %v2229
        %v2246 = vcvt.s32.f32 %v2230
        %v2247 = vcvt.s32.f32 %v2231
        %v2248 = vcvt.s32.f32 %v2232
        %v2249 = vcvt.s32.f32 %v2233
        %v2250 = vcvt.s32.f32 %v2234
        %v2251 = vcvt.s32.f32 %v2235
        %v2252 = vpack.c.bf16 %v2237, %v2236
        %v2253 = vpack.c.bf16 %v2239, %v2238
        %v2254 = vpack.c.bf16 %v2241, %v2240
        %v2255 = vpack.c.bf16 %v2243, %v2242
        %v2256 = vpack.c.bf16 %v2245, %v2244
        %v2257 = vpack.c.bf16 %v2247, %v2246
        %v2258 = vpack.c.bf16 %v2249, %v2248
        %v2259 = vpack.c.bf16 %v2251, %v2250
        %v2260 = vsub.bf16 %v2196, %v2252
        %v2261 = vsub.bf16 %v2197, %v2253
        %v2262 = vsub.bf16 %v2198, %v2254
        %v2263 = vsub.bf16 %v2199, %v2255
        %v2264 = vsub.bf16 %v2200, %v2256
        %v2265 = vsub.bf16 %v2201, %v2257
        %v2266 = vsub.bf16 %v2202, %v2258
        %v2267 = vsub.bf16 %v2203, %v2259
        %v2268 = vld [vmem:[#allocation7] sm:$0xf]
        %v2269 = vld [vmem:[#allocation7 + $0x4] sm:$0xf]
        %v2270 = vld [vmem:[#allocation7 + $0x8] sm:$0xf]
        %v2271 = vld [vmem:[#allocation7 + $0xc] sm:$0xf]
        %v2272 = vld [vmem:[#allocation7 + $0x10] sm:$0xf]
        %v2273 = vld [vmem:[#allocation7 + $0x14] sm:$0xf]
        %v2274 = vld [vmem:[#allocation7 + $0x18] sm:$0xf]
        %v2275 = vld [vmem:[#allocation7 + $0x1c] sm:$0xf]
        %v2276 = vld [vmem:[#allocation7 + $0x20] sm:$0xf]
        %v2277 = vld [vmem:[#allocation7 + $0x24] sm:$0xf]
        %v2278 = vld [vmem:[#allocation7 + $0x28] sm:$0xf]
        %v2279 = vld [vmem:[#allocation7 + $0x2c] sm:$0xf]
        %v2280 = vld [vmem:[#allocation7 + $0x30] sm:$0xf]
        %v2281 = vld [vmem:[#allocation7 + $0x34] sm:$0xf]
        %v2282 = vld [vmem:[#allocation7 + $0x38] sm:$0xf]
        %v2283 = vld [vmem:[#allocation7 + $0x3c] sm:$0xf]
        %v2300 = vunpack.c.l.b16 %v2268
        %v2301 = vunpack.c.l.b16 %v2269
        %v2302 = vunpack.c.l.b16 %v2270
        %v2303 = vunpack.c.l.b16 %v2271
        %v2304 = vunpack.c.l.b16 %v2272
        %v2305 = vunpack.c.l.b16 %v2273
        %v2306 = vunpack.c.l.b16 %v2274
        %v2307 = vunpack.c.l.b16 %v2275
        %v2308 = vunpack.c.l.b16 %v2276
        %v2309 = vunpack.c.l.b16 %v2277
        %v2310 = vunpack.c.l.b16 %v2278
        %v2311 = vunpack.c.l.b16 %v2279
        %v2312 = vunpack.c.l.b16 %v2280
        %v2313 = vunpack.c.l.b16 %v2281
        %v2314 = vunpack.c.l.b16 %v2282
        %v2315 = vunpack.c.l.b16 %v2283
        %v2316 = vpack.c.b16 %v2301, %v2300
        %v2317 = vpack.c.b16 %v2303, %v2302
        %v2318 = vpack.c.b16 %v2305, %v2304
        %v2319 = vpack.c.b16 %v2307, %v2306
        %v2320 = vpack.c.b16 %v2309, %v2308
        %v2321 = vpack.c.b16 %v2311, %v2310
        %v2322 = vpack.c.b16 %v2313, %v2312
        %v2323 = vpack.c.b16 %v2315, %v2314
        %2332 = vmatprep.subr.bf16.mxu0 0
        %2333 = vmatpush1.bf16.msra.mxu0 %v2316
        %2334 = vmatprep.subr.bf16.mxu0 0
        %2335 = vmatpush1.bf16.msra.mxu0 %v2317
        %2336 = vmatprep.subr.bf16.mxu0 0
        %2337 = vmatpush1.bf16.msra.mxu0 %v2318
        %2338 = vmatprep.subr.bf16.mxu0 0
        %2339 = vmatpush1.bf16.msra.mxu0 %v2319
        %2340 = vmatprep.subr.bf16.mxu0 0
        %2341 = vmatpush1.bf16.msra.mxu0 %v2320
        %2342 = vmatprep.subr.bf16.mxu0 0
        %2343 = vmatpush1.bf16.msra.mxu0 %v2321
        %2344 = vmatprep.subr.bf16.mxu0 0
        %2345 = vmatpush1.bf16.msra.mxu0 %v2322
        %2346 = vmatprep.subr.bf16.mxu0 0
        %2347 = vmatpush1.bf16.msra.mxu0 %v2323
        %2348 = vmatprep.subr.bf16.mxu0 0
        %2349 = vmatpush1.bf16.msra.mxu0 0
        %2350 = vmatprep.subr.bf16.mxu0 0
        %2351 = vmatpush1.bf16.msra.mxu0 0
        %2352 = vmatprep.subr.bf16.mxu0 0
        %2353 = vmatpush1.bf16.msra.mxu0 0
        %2354 = vmatprep.subr.bf16.mxu0 0
        %2355 = vmatpush1.bf16.msra.mxu0 0
        %2356 = vmatprep.subr.bf16.mxu0 0
        %2357 = vmatpush1.bf16.msra.mxu0 0
        %2358 = vmatprep.subr.bf16.mxu0 0
        %2359 = vmatpush1.bf16.msra.mxu0 0
        %2360 = vmatprep.subr.bf16.mxu0 0
        %2361 = vmatpush1.bf16.msra.mxu0 0
        %2362 = vmatprep.subr.bf16.mxu0 0
        %2363 = vmatpush1.bf16.msra.mxu0 0
        %2364 = vmatprep.mubr.bf16.mxu0 0
        %2365 = vmatmul.mubr.bf16.gmra.mrb[0].mxu0 %v2260
        %v2366 = vpop.f32.mrb[0].mxu0
        %v2367 = vadd.f32 %v2109, %v2366
        %v2368 = vpop.f32.mrb[0].mxu0
        %v2369 = vpop.f32.mrb[0].mxu0
        %v2370 = vadd.f32 %v2110, %v2369
        %v2371 = vpop.f32.mrb[0].mxu0
        %2372 = vmatprep.mubr.bf16.mxu0 0
        %2373 = vmatmul.mubr.bf16.gmra.mrb[0].mxu0 %v2261
        %v2374 = vpop.f32.mrb[0].mxu0
        %v2375 = vadd.f32 %v2111, %v2374
        %v2376 = vpop.f32.mrb[0].mxu0
        %v2377 = vpop.f32.mrb[0].mxu0
        %v2378 = vadd.f32 %v2112, %v2377
        %v2379 = vpop.f32.mrb[0].mxu0
        %2380 = vmatprep.mubr.bf16.mxu0 0
        %2381 = vmatmul.mubr.bf16.gmra.mrb[0].mxu0 %v2262
        %v2382 = vpop.f32.mrb[0].mxu0
        %v2383 = vadd.f32 %v2113, %v2382
        %v2384 = vpop.f32.mrb[0].mxu0
        %v2385 = vpop.f32.mrb[0].mxu0
        %v2386 = vadd.f32 %v2114, %v2385
        %v2387 = vpop.f32.mrb[0].mxu0
        %2388 = vmatprep.mubr.bf16.mxu0 0
        %2389 = vmatmul.mubr.bf16.gmra.mrb[0].mxu0 %v2263
        %v2390 = vpop.f32.mrb[0].mxu0
        %v2391 = vadd.f32 %v2115, %v2390
        %v2392 = vpop.f32.mrb[0].mxu0
        %v2393 = vpop.f32.mrb[0].mxu0
        %v2394 = vadd.f32 %v2116, %v2393
        %v2395 = vpop.f32.mrb[0].mxu0
        %2396 = vmatprep.mubr.bf16.mxu0 0
        %2397 = vmatmul.mubr.bf16.gmra.mrb[0].mxu0 %v2264
        %v2398 = vpop.f32.mrb[0].mxu0
        %v2399 = vadd.f32 %v2117, %v2398
        %v2400 = vpop.f32.mrb[0].mxu0
        %v2401 = vpop.f32.mrb[0].mxu0
        %v2402 = vadd.f32 %v2118, %v2401
        %v2403 = vpop.f32.mrb[0].mxu0
        %2404 = vmatprep.mubr.bf16.mxu0 0
        %2405 = vmatmul.mubr.bf16.gmra.mrb[0].mxu0 %v2265
        %v2406 = vpop.f32.mrb[0].mxu0
        %v2407 = vadd.f32 %v2119, %v2406
        %v2408 = vpop.f32.mrb[0].mxu0
        %v2409 = vpop.f32.mrb[0].mxu0
        %v2410 = vadd.f32 %v2120, %v2409
        %v2411 = vpop.f32.mrb[0].mxu0
        %2412 = vmatprep.mubr.bf16.mxu0 0
        %2413 = vmatmul.mubr.bf16.gmra.mrb[0].mxu0 %v2266
        %v2414 = vpop.f32.mrb[0].mxu0
        %v2415 = vadd.f32 %v2121, %v2414
        %v2416 = vpop.f32.mrb[0].mxu0
        %v2417 = vpop.f32.mrb[0].mxu0
        %v2418 = vadd.f32 %v2122, %v2417
        %v2419 = vpop.f32.mrb[0].mxu0
        %2420 = vmatprep.mubr.bf16.mxu0 0
        %2421 = vmatmul.mubr.bf16.gmra.mrb[0].mxu0 %v2267
        %v2422 = vpop.f32.mrb[0].mxu0
        %v2423 = vadd.f32 %v2123, %v2422
        %v2424 = vpop.f32.mrb[0].mxu0
        %v2425 = vpop.f32.mrb[0].mxu0
        %v2426 = vadd.f32 %v2124, %v2425
        %v2427 = vpop.f32.mrb[0].mxu0
        %2428 = vdwg.mxu0
        %v2429 = vld [vmem:[%s8] sm:$0x1]
        %v2431 = vlaneseq
        %v2432 = vshrl.u32 %v2431, 7
        %v2433 = vsub.s32 0, %v2432
        %v2434 = vrot.slane %v2429, %v2433
        %v2436 = vadd.f32 %v2367, %v2434
        %v2437 = vadd.f32 %v2370, %v2434
        %v2438 = vadd.f32 %v2375, %v2434
        %v2439 = vadd.f32 %v2378, %v2434
        %v2440 = vadd.f32 %v2383, %v2434
        %v2441 = vadd.f32 %v2386, %v2434
        %v2442 = vadd.f32 %v2391, %v2434
        %v2443 = vadd.f32 %v2394, %v2434
        %v2444 = vadd.f32 %v2399, %v2434
        %v2445 = vadd.f32 %v2402, %v2434
        %v2446 = vadd.f32 %v2407, %v2434
        %v2447 = vadd.f32 %v2410, %v2434
        %v2448 = vadd.f32 %v2415, %v2434
        %v2449 = vadd.f32 %v2418, %v2434
        %v2450 = vadd.f32 %v2423, %v2434
        %v2451 = vadd.f32 %v2426, %v2434
        %vm2452 = vcmp.ge.f32.partialorder %v2436, 0.0
        %vm2453 = vcmp.ge.f32.partialorder %v2437, 0.0
        %vm2454 = vcmp.ge.f32.partialorder %v2438, 0.0
        %vm2455 = vcmp.ge.f32.partialorder %v2439, 0.0
        %vm2456 = vcmp.ge.f32.partialorder %v2440, 0.0
        %vm2457 = vcmp.ge.f32.partialorder %v2441, 0.0
        %vm2458 = vcmp.ge.f32.partialorder %v2442, 0.0
        %vm2459 = vcmp.ge.f32.partialorder %v2443, 0.0
        %vm2460 = vcmp.ge.f32.partialorder %v2444, 0.0
        %vm2461 = vcmp.ge.f32.partialorder %v2445, 0.0
        %vm2462 = vcmp.ge.f32.partialorder %v2446, 0.0
        %vm2463 = vcmp.ge.f32.partialorder %v2447, 0.0
        %vm2464 = vcmp.ge.f32.partialorder %v2448, 0.0
        %vm2465 = vcmp.ge.f32.partialorder %v2449, 0.0
        %vm2466 = vcmp.ge.f32.partialorder %v2450, 0.0
        %vm2467 = vcmp.ge.f32.partialorder %v2451, 0.0
        %v2468 = vld [vmem:[%s9] sm:$0x1]
        %v2470 = vlaneseq
        %v2471 = vshrl.u32 %v2470, 7
        %v2472 = vsub.s32 0, %v2471
        %v2473 = vrot.slane %v2468, %v2472
        %v2475 = vmul.f32 %v2473, %v2436
        %v2476 = vmul.f32 %v2473, %v2437
        %v2477 = vmul.f32 %v2473, %v2438
        %v2478 = vmul.f32 %v2473, %v2439
        %v2479 = vmul.f32 %v2473, %v2440
        %v2480 = vmul.f32 %v2473, %v2441
        %v2481 = vmul.f32 %v2473, %v2442
        %v2482 = vmul.f32 %v2473, %v2443
        %v2483 = vmul.f32 %v2473, %v2444
        %v2484 = vmul.f32 %v2473, %v2445
        %v2485 = vmul.f32 %v2473, %v2446
        %v2486 = vmul.f32 %v2473, %v2447
        %v2487 = vmul.f32 %v2473, %v2448
        %v2488 = vmul.f32 %v2473, %v2449
        %v2489 = vmul.f32 %v2473, %v2450
        %v2490 = vmul.f32 %v2473, %v2451
        %v2491 = vsel %vm2452, %v2436, %v2475
        %v2492 = vsel %vm2453, %v2437, %v2476
        %v2493 = vsel %vm2454, %v2438, %v2477
        %v2494 = vsel %vm2455, %v2439, %v2478
        %v2495 = vsel %vm2456, %v2440, %v2479
        %v2496 = vsel %vm2457, %v2441, %v2480
        %v2497 = vsel %vm2458, %v2442, %v2481
        %v2498 = vsel %vm2459, %v2443, %v2482
        %v2499 = vsel %vm2460, %v2444, %v2483
        %v2500 = vsel %vm2461, %v2445, %v2484
        %v2501 = vsel %vm2462, %v2446, %v2485
        %v2502 = vsel %vm2463, %v2447, %v2486
        %v2503 = vsel %vm2464, %v2448, %v2487
        %v2504 = vsel %vm2465, %v2449, %v2488
        %v2505 = vsel %vm2466, %v2450, %v2489
        %v2506 = vsel %vm2467, %v2451, %v2490
        %v2507 = vld [vmem:[%s10] sm:$0x1]
        %v2509 = vlaneseq
        %v2510 = vshrl.u32 %v2509, 7
        %v2511 = vsub.s32 0, %v2510
        %v2512 = vrot.slane %v2507, %v2511
        %v2514 = vadd.f32 %v2491, %v2512
        %v2515 = vadd.f32 %v2492, %v2512
        %v2516 = vadd.f32 %v2493, %v2512
        %v2517 = vadd.f32 %v2494, %v2512
        %v2518 = vadd.f32 %v2495, %v2512
        %v2519 = vadd.f32 %v2496, %v2512
        %v2520 = vadd.f32 %v2497, %v2512
        %v2521 = vadd.f32 %v2498, %v2512
        %v2522 = vadd.f32 %v2499, %v2512
        %v2523 = vadd.f32 %v2500, %v2512
        %v2524 = vadd.f32 %v2501, %v2512
        %v2525 = vadd.f32 %v2502, %v2512
        %v2526 = vadd.f32 %v2503, %v2512
        %v2527 = vadd.f32 %v2504, %v2512
        %v2528 = vadd.f32 %v2505, %v2512
        %v2529 = vadd.f32 %v2506, %v2512
        %2530 = vst [vmem:[%s447] sm:$0xff] %v2514
        %2531 = vst [vmem:[%s447 + $0x8] sm:$0xff] %v2515
        %2532 = vst [vmem:[%s447 + $0x10] sm:$0xff] %v2516
        %2533 = vst [vmem:[%s447 + $0x18] sm:$0xff] %v2517
        %2534 = vst [vmem:[%s447 + $0x20] sm:$0xff] %v2518
        %2535 = vst [vmem:[%s447 + $0x28] sm:$0xff] %v2519
        %2536 = vst [vmem:[%s447 + $0x30] sm:$0xff] %v2520
        %2537 = vst [vmem:[%s447 + $0x38] sm:$0xff] %v2521
        %2538 = vst [vmem:[%s447 + $0x40] sm:$0xff] %v2522
        %2539 = vst [vmem:[%s447 + $0x48] sm:$0xff] %v2523
        %2540 = vst [vmem:[%s447 + $0x50] sm:$0xff] %v2524
        %2541 = vst [vmem:[%s447 + $0x58] sm:$0xff] %v2525
        %2542 = vst [vmem:[%s447 + $0x60] sm:$0xff] %v2526
        %2543 = vst [vmem:[%s447 + $0x68] sm:$0xff] %v2527
        %2544 = vst [vmem:[%s447 + $0x70] sm:$0xff] %v2528
        %2545 = vst [vmem:[%s447 + $0x78] sm:$0xff] %v2529
        %s2546 = sand.u32 %s287, 1
        %s2547 = scalar_lea.sflag [#allocation4], %s2546
        %s2548 = sand.u32 %s287, 1
        %s2549 = smul.addr %s2548, 128
        %s2550 = scalar_lea.vmem [#allocation8], %s2549
        // Predicated region
        $region77: #{tpu_custom_call.1} parent=63 // pred_check
          %p2551 = pneg %p297
        $region78: #{tpu_custom_call.1} parent=63 // pred_check_branch
          %2553 = sbr.rel (%p2551) target = $region80
        $region79: #{tpu_custom_call.1} parent=63 // pred_region
          %s2554 = smul.u32 8, %s34
          %s2556 = ssub.s32 2048, 2048
          %2557 = vsyncadd %s2547, %s2556
          %s2558 = smul.addr %s2554, 2
          %s2559 = smul.addr %s33, 32
          %s2560 = sadd.s32 %s2558, %s2559
          %s2561 = smul.addr %s2560, 128
          %s2562 = scalar_lea.hbm %s11, %s2561
          %s2563 = sshll.u32 %s2550, 4
          %s2564 = int_to_ptr.vmem [resolvable:$true] %s2563
          %2569 = dma.vmem_to_hbm [thread:$0]  %s2564, 2048, %s2562, %s2547, 128, 128, 8
        $region80: #{tpu_custom_call.1} parent=63 // pred_fallthru
          _
      $region64: #{tpu_custom_call.1} parent=5 // pred_fallthru
        _
      %p2570 = scmp.le.s32.totalorder 2, %s24
      // Predicated region
      $region81: #{tpu_custom_call.1} parent=5 // pred_check
        %p2571 = pneg %p2570
      $region82: #{tpu_custom_call.1} parent=5 // pred_check_branch
        %2573 = sbr.rel (%p2571) target = $region84
      $region83: #{tpu_custom_call.1} parent=5 // pred_region
        %s2574 = ssub.s32 %s24, 2
        // Predicated region
        $region85: #{tpu_custom_call.1} parent=83 // pred_check
          %p2575 = pneg %p303
        $region86: #{tpu_custom_call.1} parent=83 // pred_check_branch
          %2577 = sbr.rel (%p2575) target = $region88
        $region87: #{tpu_custom_call.1} parent=83 // pred_region
          %s2578 = sand.u32 %s288, 1
          %s2579 = scalar_lea.sflag [#allocation4], %s2578
          %s2580 = sand.u32 %s288, 1
          %s2581 = smul.addr %s2580, 128
          %s2582 = scalar_lea.vmem [#allocation8], %s2581
          %2583 = dma.done %s2579, 2048
        $region88: #{tpu_custom_call.1} parent=83 // pred_fallthru
          _
      $region84: #{tpu_custom_call.1} parent=5 // pred_fallthru
        _
    $region6: #{tpu_custom_call.1} parent=1 // loop_footer
      %s28 = sadd.s32 1, %s24
    $region7: #{tpu_custom_call.1} parent=1 // loop_footer_branch
      %23 = sbr.rel target = $region3
    $region8: #{tpu_custom_call.1} parent=1 // loop_exit
      _
    %2584 = vsyncpa [#allocation3], 1
    %s2585 = scalar_lea.sflag [#allocation3], 1
    %2586 = vsyncpa %s2585, 1
    %2587 = vsyncpa [#allocation6], 1
    %2588 = vsyncpa [#allocation4], 1
    %s2589 = scalar_lea.sflag [#allocation4], 1
    %2590 = vsyncpa %s2589, 1

</llo_original>
